<compile_context>
chip_gen: v7x
topology: tpu7x:2x2x1
jax: 0.10.0
libtpu: 0.0.40
codegen_flags: <defaults>
</compile_context>

<pallas_src>
import math
import functools

import jax
import jax.numpy as jnp
from jax.experimental import pallas as pl
from jax.experimental.pallas import tpu as pltpu


# ---------------------------- tiling helpers ----------------------------

def _round_up(x, m):
    return ((x + m - 1) // m) * m


def _pick_tile(dim, desired, align):
    """Full-extent block when small (always legal); otherwise an `align`-multiple."""
    if dim <= desired:
        return dim
    return max(align, (desired // align) * align)


def _pad_axis(x, axis, new_size):
    pad = new_size - x.shape[axis]
    if pad <= 0:
        return x
    widths = [(0, 0)] * x.ndim
    widths[axis] = (0, pad)
    return jnp.pad(x, widths)


def _preferred_seq_tile():
    # v5e/v5p MXUs are 128x128 -> 128 tiles already saturate them; v6e/v7x want 256.
    try:
        kind = jax.devices()[0].device_kind.lower()
        if "v5" in kind:
            return 128
    except Exception:
        pass
    return 256


def _seq_tile(length):
    """Returns (tile, padded_length). Pads to a tile multiple instead of using a
    full-length tile (keeps the (tq, tk) score temp bounded)."""
    t = _preferred_seq_tile()
    if length <= t:
        lp = _round_up(length, 8)
        return lp, lp
    lp = _round_up(length, t)
    return t, lp


# ---------------------------- fused multi-output linear ----------------------------

def _fused_linear_kernel(x_ref, *refs, n_out):
    x = x_ref[...]                                  # bf16 (tn, K)
    for idx in range(n_out):
        w = refs[idx][...]                          # bf16 (K, tc)
        b = refs[n_out + idx][...]                  # f32 (1, tc)
        o = refs[2 * n_out + idx]
        y = jnp.dot(x, w, preferred_element_type=jnp.float32) + b
        o[...] = y.astype(o.dtype)


def fused_linear(x, wts, bs, *, out_dtype=jnp.bfloat16, row_tile=256, col_tile=512):
    """y_i = x @ wts[i] + bs[i], one pallas_call (x tile loaded once per column block).
    x: (N, K) bf16;  wts[i]: (K, Dout) bf16 (pre-transposed);  bs[i]: (Dout,) f32.
    Grid is (cols, rows) so each weight column block stays VMEM-resident across all
    row tiles (weights streamed exactly once — matters for the (D, V) vocab matrix)."""
    n_out = len(wts)
    n, k = x.shape
    dout = wts[0].shape[1]
    tn = _pick_tile(n, row_tile, 8)
    tc = _pick_tile(dout, col_tile, 128)
    n_p = _round_up(n, tn)
    d_p = _round_up(dout, tc)
    x_p = _pad_axis(x, 0, n_p)
    wts_p = [_pad_axis(w, 1, d_p) for w in wts]
    bs_p = [_pad_axis(b.reshape(1, dout).astype(jnp.float32), 1, d_p) for b in bs]

    in_specs = ([pl.BlockSpec((tn, k), lambda j, i: (i, 0))]
                + [pl.BlockSpec((k, tc), lambda j, i: (0, j))] * n_out
                + [pl.BlockSpec((1, tc), lambda j, i: (0, j))] * n_out)
    out_specs = tuple(pl.BlockSpec((tn, tc), lambda j, i: (i, j)) for _ in range(n_out))
    out_shapes = tuple(jax.ShapeDtypeStruct((n_p, d_p), out_dtype) for _ in range(n_out))

    outs = pl.pallas_call(
        functools.partial(_fused_linear_kernel, n_out=n_out),
        out_shape=out_shapes,
        grid=(d_p // tc, n_p // tn),
        in_specs=in_specs,
        out_specs=out_specs,
        compiler_params=pltpu.CompilerParams(
            dimension_semantics=("parallel", "parallel")),
    )(x_p, *wts_p, *bs_p)
    if not isinstance(outs, (list, tuple)):
        outs = (outs,)
    if n_p != n or d_p != dout:
        outs = [o[:n, :dout] for o in outs]
    return list(outs)


def linear(x, wt, b, *, out_dtype=jnp.bfloat16, row_tile=256, col_tile=512):
    return fused_linear(x, [wt], [b], out_dtype=out_dtype,
                        row_tile=row_tile, col_tile=col_tile)[0]


# ---------------------------- residual add + LayerNorm ----------------------------

def _add_ln_kernel(x_ref, r_ref, g_ref, b_ref, o_ref, *, eps):
    z = x_ref[...].astype(jnp.float32) + r_ref[...].astype(jnp.float32)
    mu = jnp.mean(z, axis=-1, keepdims=True)
    var = jnp.mean(jnp.square(z - mu), axis=-1, keepdims=True)
    y = (z - mu) * jax.lax.rsqrt(var + eps)
    o_ref[...] = (y * g_ref[...] + b_ref[...]).astype(o_ref.dtype)


def add_layernorm(x, r, gamma, beta, *, eps=1e-5, row_tile=512):
    n, d = x.shape
    tn = _pick_tile(n, row_tile, 8)
    n_p = _round_up(n, tn)
    x_p = _pad_axis(x, 0, n_p)
    r_p = _pad_axis(r, 0, n_p)
    out = pl.pallas_call(
        functools.partial(_add_ln_kernel, eps=eps),
        out_shape=jax.ShapeDtypeStruct((n_p, d), jnp.bfloat16),
        grid=(n_p // tn,),
        in_specs=[pl.BlockSpec((tn, d), lambda i: (i, 0)),
                  pl.BlockSpec((tn, d), lambda i: (i, 0)),
                  pl.BlockSpec((1, d), lambda i: (0, 0)),
                  pl.BlockSpec((1, d), lambda i: (0, 0))],
        out_specs=pl.BlockSpec((tn, d), lambda i: (i, 0)),
        compiler_params=pltpu.CompilerParams(dimension_semantics=("parallel",)),
    )(x_p, r_p, gamma.reshape(1, d).astype(jnp.float32),
      beta.reshape(1, d).astype(jnp.float32))
    return out[:n] if n_p != n else out


# ---------------------------- fused FFN (+ residual + LayerNorm), dff-tiled ----------------------------

def _ffn_ln_kernel(x_ref, w1_ref, b1_ref, w2_ref, b2_ref, g_ref, be_ref, o_ref,
                   acc_ref, *, eps):
    f = pl.program_id(1)

    @pl.when(f == 0)
    def _():
        acc_ref[...] = jnp.zeros_like(acc_ref)

    x = x_ref[...]                                                    # bf16 (tn, d)
    h = jnp.dot(x, w1_ref[...], preferred_element_type=jnp.float32) + b1_ref[...]
    h = jnp.maximum(h, 0.0)
    acc_ref[...] += jnp.dot(h.astype(jnp.bfloat16), w2_ref[...],
                            preferred_element_type=jnp.float32)

    @pl.when(f == pl.num_programs(1) - 1)
    def _():
        z = acc_ref[...] + b2_ref[...] + x_ref[...].astype(jnp.float32)
        mu = jnp.mean(z, axis=-1, keepdims=True)
        var = jnp.mean(jnp.square(z - mu), axis=-1, keepdims=True)
        zn = (z - mu) * jax.lax.rsqrt(var + eps)
        o_ref[...] = (zn * g_ref[...] + be_ref[...]).astype(o_ref.dtype)


def ffn_add_layernorm(x, w1t, b1, w2t, b2, gamma, beta, *, eps=1e-5,
                      row_tile=256, dff_tile=512):
    n, d = x.shape
    dff = w1t.shape[1]
    tn = _pick_tile(n, row_tile, 8)
    tf = _pick_tile(dff, dff_tile, 128)
    n_p = _round_up(n, tn)
    f_p = _round_up(dff, tf)
    x_p = _pad_axis(x, 0, n_p)
    w1t_p = _pad_axis(w1t, 1, f_p)                          # zero cols -> relu(0)=0
    b1_p = _pad_axis(b1.reshape(1, dff).astype(jnp.float32), 1, f_p)
    w2t_p = _pad_axis(w2t, 0, f_p)                          # zero rows -> no contribution
    out = pl.pallas_call(
        functools.partial(_ffn_ln_kernel, eps=eps),
        out_shape=jax.ShapeDtypeStruct((n_p, d), jnp.bfloat16),
        grid=(n_p // tn, f_p // tf),
        in_specs=[pl.BlockSpec((tn, d), lambda i, f: (i, 0)),
                  pl.BlockSpec((d, tf), lambda i, f: (0, f)),
                  pl.BlockSpec((1, tf), lambda i, f: (0, f)),
                  pl.BlockSpec((tf, d), lambda i, f: (f, 0)),
                  pl.BlockSpec((1, d), lambda i, f: (0, 0)),
                  pl.BlockSpec((1, d), lambda i, f: (0, 0)),
                  pl.BlockSpec((1, d), lambda i, f: (0, 0))],
        out_specs=pl.BlockSpec((tn, d), lambda i, f: (i, 0)),
        scratch_shapes=[pltpu.VMEM((tn, d), jnp.float32)],
        compiler_params=pltpu.CompilerParams(
            dimension_semantics=("parallel", "arbitrary")),
    )(x_p, w1t_p, b1_p, w2t_p, b2.reshape(1, d).astype(jnp.float32),
      gamma.reshape(1, d).astype(jnp.float32), beta.reshape(1, d).astype(jnp.float32))
    return out[:n] if n_p != n else out


# ---------------------------- flash attention (lane-dense, head via index_map) ----------------------------
# q/k/v layout: (B, L, H*dkp) with dkp=128 padded head lanes (zeros), so every
# block is (1, tq, 128). 1/sqrt(dk) is pre-folded into the Q projection weight.

def _flash_causal_kernel(qi_ref, ki_ref, q_ref, k_ref, v_ref, o_ref,
                         m_sc, l_sc, acc_sc, *, tq, tk):
    t = pl.program_id(2)
    qi = qi_ref[t]
    ki = ki_ref[t]

    @pl.when(ki == 0)
    def _():
        m_sc[...] = jnp.full(m_sc.shape, -jnp.inf, m_sc.dtype)
        l_sc[...] = jnp.zeros(l_sc.shape, l_sc.dtype)
        acc_sc[...] = jnp.zeros(acc_sc.shape, acc_sc.dtype)

    q = q_ref[0]                                    # (tq, 128) bf16
    k = k_ref[0]
    v = v_ref[0]
    s = jax.lax.dot_general(q, k, (((1,), (1,)), ((), ())),
                            preferred_element_type=jnp.float32)
    # Only lower-triangular tile pairs are visited; the mask only bites on the
    # diagonal tile (no-op below it). Also masks padded key positions (>= real T).
    row = qi * tq + jax.lax.broadcasted_iota(jnp.int32, s.shape, 0)
    col = ki * tk + jax.lax.broadcasted_iota(jnp.int32, s.shape, 1)
    s = jnp.where(col <= row, s, -jnp.inf)

    m_prev = m_sc[...]
    m_new = jnp.maximum(m_prev, jnp.max(s, axis=-1, keepdims=True))
    alpha = jnp.exp(m_prev - m_new)
    p = jnp.exp(s - m_new)
    l_sc[...] = alpha * l_sc[...] + jnp.sum(p, axis=-1, keepdims=True)
    acc_sc[...] = alpha * acc_sc[...] + jax.lax.dot_general(
        p.astype(jnp.bfloat16), v, (((1,), (0,)), ((), ())),
        preferred_element_type=jnp.float32)
    m_sc[...] = m_new

    # The diagonal pair is always the LAST visited pair of this q row (the pair
    # table enumerates ki = 0..qi in order), so finalizing here is safe.
    @pl.when(ki == qi)
    def _():
        o_ref[0] = (acc_sc[...] *
                    pl.reciprocal(l_sc[...], approx=True)).astype(o_ref.dtype)


def flash_attention_causal(q, k, v, *, nheads, dkp):
    """Self-attention with causal mask. q/k/v: (B, L, nheads*dkp) bf16."""
    b, lq, hp = q.shape
    tq, lp = _seq_tile(lq)
    q = _pad_axis(q, 1, lp)
    k = _pad_axis(k, 1, lp)
    v = _pad_axis(v, 1, lp)
    nqt = lp // tq
    # Lower-triangular (qi, ki) tile pairs -> fully-masked kv tiles are never DMA'd.
    pairs = [(qi, ki) for qi in range(nqt) for ki in range(qi + 1)]
    qi_ids = jnp.asarray([p[0] for p in pairs], jnp.int32)
    ki_ids = jnp.asarray([p[1] for p in pairs], jnp.int32)

    out = pl.pallas_call(
        functools.partial(_flash_causal_kernel, tq=tq, tk=tq),
        out_shape=jax.ShapeDtypeStruct((b, lp, hp), jnp.bfloat16),
        grid_spec=pltpu.PrefetchScalarGridSpec(
            num_scalar_prefetch=2,
            grid=(b, nheads, len(pairs)),
            in_specs=[
                pl.BlockSpec((1, tq, dkp), lambda bi, h, t, qi, ki: (bi, qi[t], h)),
                pl.BlockSpec((1, tq, dkp), lambda bi, h, t, qi, ki: (bi, ki[t], h)),
                pl.BlockSpec((1, tq, dkp), lambda bi, h, t, qi, ki: (bi, ki[t], h)),
            ],
            out_specs=pl.BlockSpec((1, tq, dkp), lambda bi, h, t, qi, ki: (bi, qi[t], h)),
            scratch_shapes=[pltpu.VMEM((tq, 1), jnp.float32),
                            pltpu.VMEM((tq, 1), jnp.float32),
                            pltpu.VMEM((tq, dkp), jnp.float32)]),
        compiler_params=pltpu.CompilerParams(
            dimension_semantics=("parallel", "parallel", "arbitrary")),
    )(qi_ids, ki_ids, q, k, v)
    return out[:, :lq] if lp != lq else out


def _flash_cross_kernel(q_ref, k_ref, v_ref, o_ref, m_sc, l_sc, acc_sc, *, tk, kv_len):
    ki = pl.program_id(3)

    @pl.when(ki == 0)
    def _():
        m_sc[...] = jnp.full(m_sc.shape, -jnp.inf, m_sc.dtype)
        l_sc[...] = jnp.zeros(l_sc.shape, l_sc.dtype)
        acc_sc[...] = jnp.zeros(acc_sc.shape, acc_sc.dtype)

    q = q_ref[0]
    k = k_ref[0]
    v = v_ref[0]
    s = jax.lax.dot_general(q, k, (((1,), (1,)), ((), ())),
                            preferred_element_type=jnp.float32)
    if kv_len is not None:     # mask padded memory positions (only compiled if padded)
        col = ki * tk + jax.lax.broadcasted_iota(jnp.int32, s.shape, 1)
        s = jnp.where(col < kv_len, s, -jnp.inf)

    m_prev = m_sc[...]
    m_new = jnp.maximum(m_prev, jnp.max(s, axis=-1, keepdims=True))
    alpha = jnp.exp(m_prev - m_new)
    p = jnp.exp(s - m_new)
    l_sc[...] = alpha * l_sc[...] + jnp.sum(p, axis=-1, keepdims=True)
    acc_sc[...] = alpha * acc_sc[...] + jax.lax.dot_general(
        p.astype(jnp.bfloat16), v, (((1,), (0,)), ((), ())),
        preferred_element_type=jnp.float32)
    m_sc[...] = m_new

    @pl.when(ki == pl.num_programs(3) - 1)
    def _():
        o_ref[0] = (acc_sc[...] *
                    pl.reciprocal(l_sc[...], approx=True)).astype(o_ref.dtype)


def flash_attention_cross(q, k, v, *, nheads, dkp):
    """Cross-attention (no mask in the reference model). q: (B,Lq,H*dkp), k/v: (B,Lk,H*dkp)."""
    b, lq, hp = q.shape
    lk = k.shape[1]
    tq, lqp = _seq_tile(lq)
    tk, lkp = _seq_tile(lk)
    q = _pad_axis(q, 1, lqp)
    k = _pad_axis(k, 1, lkp)
    v = _pad_axis(v, 1, lkp)
    kv_len = lk if lkp != lk else None

    out = pl.pallas_call(
        functools.partial(_flash_cross_kernel, tk=tk, kv_len=kv_len),
        out_shape=jax.ShapeDtypeStruct((b, lqp, hp), jnp.bfloat16),
        grid=(b, nheads, lqp // tq, lkp // tk),
        in_specs=[pl.BlockSpec((1, tq, dkp), lambda bi, h, qi, ki: (bi, qi, h)),
                  pl.BlockSpec((1, tk, dkp), lambda bi, h, qi, ki: (bi, ki, h)),
                  pl.BlockSpec((1, tk, dkp), lambda bi, h, qi, ki: (bi, ki, h))],
        out_specs=pl.BlockSpec((1, tq, dkp), lambda bi, h, qi, ki: (bi, qi, h)),
        scratch_shapes=[pltpu.VMEM((tq, 1), jnp.float32),
                        pltpu.VMEM((tq, 1), jnp.float32),
                        pltpu.VMEM((tq, dkp), jnp.float32)],
        compiler_params=pltpu.CompilerParams(
            dimension_semantics=("parallel", "parallel", "parallel", "arbitrary")),
    )(q, k, v)
    return out[:, :lq] if lqp != lq else out


# ---------------------------- multi-head attention glue (no transposes) ----------------------------

def multi_head_attention_self(x, p, nhead, dkp):
    B, T, D = x.shape
    hp = nhead * dkp
    q, k, v = fused_linear(x.reshape(B * T, D),
                           [p["wq"], p["wk"], p["wv"]],
                           [p["bq"], p["bk"], p["bv"]])
    ctx = flash_attention_causal(q.reshape(B, T, hp), k.reshape(B, T, hp),
                                 v.reshape(B, T, hp), nheads=nhead, dkp=dkp)
    return linear(ctx.reshape(B * T, hp), p["wo"], p["bo"]).reshape(B, T, D)


def multi_head_attention_cross(x, k_mem, v_mem, p, nhead, dkp):
    B, T, D = x.shape
    hp = nhead * dkp
    q = linear(x.reshape(B * T, D), p["wq"], p["bq"]).reshape(B, T, hp)
    ctx = flash_attention_cross(q, k_mem, v_mem, nheads=nhead, dkp=dkp)
    return linear(ctx.reshape(B * T, hp), p["wo"], p["bo"]).reshape(B, T, D)


# ---------------------------- model ----------------------------

def make_pe(max_len, d_model):
    position = jnp.arange(max_len, dtype=jnp.float32)[:, None]
    div_term = jnp.exp(jnp.arange(0, d_model, 2, dtype=jnp.float32)
                       * (-math.log(10000.0) / d_model))
    pe = jnp.zeros((max_len, d_model), jnp.float32)
    pe = pe.at[:, 0::2].set(jnp.sin(position * div_term))
    pe = pe.at[:, 1::2].set(jnp.cos(position * div_term))
    return pe                                        # (max_len, d_model)


def decoder_transformer_forward(params, captions, features, *, nhead):
    """captions: (B, T) int32 ; features: (B, S, D) f32 ; returns (B, T, vocab) f32."""
    B, T = captions.shape
    S = features.shape[1]
    D = params["embedding"].shape[1]
    hp = params["layers"][0]["self_attn"]["wq"].shape[1]
    dkp = hp // nhead

    # Batch-major (B, T, D) everywhere: every non-attention op is position-wise, so
    # the PyTorch (T, B, D) permutes (and the final output permute) are dropped.
    embeds = jnp.take(params["embedding"], captions, axis=0) * math.sqrt(D)
    x = (embeds + params["pe"][:T][None, :, :]).astype(jnp.bfloat16)    # (B, T, D)
    feats2d = features.astype(jnp.bfloat16).reshape(B * S, D)
    # TODO(synk): dropout (p=0.1) from PositionalEncoding / decoder layers omitted (eval mode).

    x2 = x.reshape(B * T, D)
    for lp in params["layers"]:
        # post-norm TransformerDecoderLayer (PyTorch default, ReLU activation)
        sa = multi_head_attention_self(x2.reshape(B, T, D), lp["self_attn"], nhead, dkp)
        x2 = add_layernorm(x2, sa.reshape(B * T, D), lp["ln1_g"], lp["ln1_b"])

        k_mem, v_mem = fused_linear(
            feats2d,
            [lp["cross_attn"]["wk"], lp["cross_attn"]["wv"]],
            [lp["cross_attn"]["bk"], lp["cross_attn"]["bv"]])
        ca = multi_head_attention_cross(
            x2.reshape(B, T, D), k_mem.reshape(B, S, hp), v_mem.reshape(B, S, hp),
            lp["cross_attn"], nhead, dkp)
        x2 = add_layernorm(x2, ca.reshape(B * T, D), lp["ln2_g"], lp["ln2_b"])

        x2 = ffn_add_layernorm(x2, lp["lin1_wt"], lp["lin1_b"],
                               lp["lin2_wt"], lp["lin2_b"],
                               lp["ln3_g"], lp["ln3_b"])

    logits = linear(x2, params["fc_wt"], params["fc_b"],
                    out_dtype=jnp.float32, col_tile=1024)      # vocab weight streamed once
    V = params["fc_b"].shape[0]
    return logits.reshape(B, T, V)


# ---------------------------- parameter init ----------------------------

def _pad_head_cols(wt, nhead, dk, dkp):
    """(Din, nhead*dk) -> (Din, nhead*dkp): each head's output cols padded to 128 lanes."""
    din = wt.shape[0]
    wt = wt.reshape(din, nhead, dk)
    out = jnp.zeros((din, nhead, dkp), wt.dtype).at[:, :, :dk].set(wt)
    return out.reshape(din, nhead * dkp)


def _pad_head_rows(wt, nhead, dk, dkp):
    """(nhead*dk, Dout) -> (nhead*dkp, Dout): zero rows for the padded head lanes."""
    dout = wt.shape[1]
    wt = wt.reshape(nhead, dk, dout)
    out = jnp.zeros((nhead, dkp, dout), wt.dtype).at[:, :dk, :].set(wt)
    return out.reshape(nhead * dkp, dout)


def _pad_head_bias(b, nhead, dk, dkp):
    b = b.reshape(nhead, dk)
    out = jnp.zeros((nhead, dkp), b.dtype).at[:, :dk].set(b)
    return out.reshape(nhead * dkp)


def init_params(key, embedding_matrix, vocab, d, nhead, nlayers, dff, max_len=5000):
    dk = d // nhead
    dkp = max(128, _round_up(dk, 128))            # lane-dense padded head dim
    scale = 1.0 / math.sqrt(dk)

    def glorot(k, shape):
        lim = math.sqrt(6.0 / (shape[0] + shape[1]))
        return jax.random.uniform(k, shape, jnp.float32, -lim, lim)

    def bf(w):
        return w.astype(jnp.bfloat16)

    def attn_params(kw, ko):
        in_w = glorot(kw, (3 * d, d))             # PyTorch in_proj_weight layout
        in_b = jnp.zeros((3 * d,), jnp.float32)
        out_w = glorot(ko, (d, d))
        out_b = jnp.zeros((d,), jnp.float32)
        wq = in_w[:d].T * scale                   # fold 1/sqrt(dk) into the Q projection
        bq = in_b[:d] * scale
        wk, bk = in_w[d:2 * d].T, in_b[d:2 * d]
        wv, bv = in_w[2 * d:].T, in_b[2 * d:]
        return {
            "wq": bf(_pad_head_cols(wq, nhead, dk, dkp)), "bq": _pad_head_bias(bq, nhead, dk, dkp),
            "wk": bf(_pad_head_cols(wk, nhead, dk, dkp)), "bk": _pad_head_bias(bk, nhead, dk, dkp),
            "wv": bf(_pad_head_cols(wv, nhead, dk, dkp)), "bv": _pad_head_bias(bv, nhead, dk, dkp),
            "wo": bf(_pad_head_rows(out_w.T, nhead, dk, dkp)), "bo": out_b,
        }

    params = {"embedding": jnp.asarray(embedding_matrix, jnp.float32),
              "pe": make_pe(max_len, d), "layers": []}
    keys = jax.random.split(key, nlayers + 1)
    for i in range(nlayers):
        lk = jax.random.split(keys[i], 6)
        params["layers"].append({
            "self_attn": attn_params(lk[0], lk[1]),
            "cross_attn": attn_params(lk[2], lk[3]),
            "lin1_wt": bf(glorot(lk[4], (dff, d)).T), "lin1_b": jnp.zeros((dff,), jnp.float32),
            "lin2_wt": bf(glorot(lk[5], (d, dff)).T), "lin2_b": jnp.zeros((d,), jnp.float32),
            "ln1_g": jnp.ones((d,), jnp.float32), "ln1_b": jnp.zeros((d,), jnp.float32),
            "ln2_g": jnp.ones((d,), jnp.float32), "ln2_b": jnp.zeros((d,), jnp.float32),
            "ln3_g": jnp.ones((d,), jnp.float32), "ln3_b": jnp.zeros((d,), jnp.float32),
        })
    fk = jax.random.split(keys[-1], 2)
    params["fc_wt"] = bf(glorot(fk[0], (vocab, d)).T)
    params["fc_b"] = jnp.zeros((vocab,), jnp.float32)
    return params


if __name__ == "__main__":
    vocab_size = 50
    embedding_dim = 32
    nhead = 4
    num_decoder_layers = 2
    dim_feedforward = 64
    B, T, S = 2, 8, 8

    key = jax.random.PRNGKey(0)
    k_emb, k_par, k_cap, k_feat = jax.random.split(key, 4)

    embedding_matrix = jax.random.normal(k_emb, (vocab_size, embedding_dim), jnp.float32)
    params = init_params(k_par, embedding_matrix, vocab_size, embedding_dim,
                         nhead, num_decoder_layers, dim_feedforward)

    captions = jax.random.randint(k_cap, (B, T), 0, vocab_size, dtype=jnp.int32)
    features = jax.random.normal(k_feat, (B, S, embedding_dim), jnp.float32)

    fwd = jax.jit(functools.partial(decoder_transformer_forward, nhead=nhead))
    out = fwd(params, captions, features)
    jax.block_until_ready(out)
    assert out.shape == (B, T, vocab_size), out.shape
    assert bool(jnp.all(jnp.isfinite(out)))
    print("KERNEL_OK")
</pallas_src>

<mosaic_0001>
module attributes {stable_mosaic.version = 11 : i64} {
  func.func @_fused_linear_kernel(%arg0: i32, %arg1: i32, %arg2: memref<16x32xbf16, #tpu.memory_space<vmem>>, %arg3: memref<32x512xbf16, #tpu.memory_space<vmem>>, %arg4: memref<32x512xbf16, #tpu.memory_space<vmem>>, %arg5: memref<32x512xbf16, #tpu.memory_space<vmem>>, %arg6: memref<1x512xf32, #tpu.memory_space<vmem>>, %arg7: memref<1x512xf32, #tpu.memory_space<vmem>>, %arg8: memref<1x512xf32, #tpu.memory_space<vmem>>, %arg9: memref<16x512xbf16, #tpu.memory_space<vmem>>, %arg10: memref<16x512xbf16, #tpu.memory_space<vmem>>, %arg11: memref<16x512xbf16, #tpu.memory_space<vmem>>) attributes {dimension_semantics = [#tpu.dimension_semantics<parallel>, #tpu.dimension_semantics<parallel>], iteration_bounds = array<i64: 1, 1>, scalar_prefetch = 0 : i64, scratch_operands = 0 : i64, tpu.core_type = #tpu.core_type<tc>, window_params = [{transform_indices = @transform_0, window_bounds = array<i64: 16, 32>}, {transform_indices = @transform_1, window_bounds = array<i64: 32, 512>}, {transform_indices = @transform_2, window_bounds = array<i64: 32, 512>}, {transform_indices = @transform_3, window_bounds = array<i64: 32, 512>}, {transform_indices = @transform_4, window_bounds = array<i64: 1, 512>}, {transform_indices = @transform_5, window_bounds = array<i64: 1, 512>}, {transform_indices = @transform_6, window_bounds = array<i64: 1, 512>}, {transform_indices = @transform_7, window_bounds = array<i64: 16, 512>}, {transform_indices = @transform_8, window_bounds = array<i64: 16, 512>}, {transform_indices = @transform_9, window_bounds = array<i64: 16, 512>}]} {
    %c0 = arith.constant 0 : index
    %c0_0 = arith.constant 0 : index
    %0 = vector.load %arg2[%c0, %c0_0] : memref<16x32xbf16, #tpu.memory_space<vmem>>, vector<16x32xbf16>
    %c0_1 = arith.constant 0 : index
    %c0_2 = arith.constant 0 : index
    %1 = vector.load %arg3[%c0_1, %c0_2] : memref<32x512xbf16, #tpu.memory_space<vmem>>, vector<32x512xbf16>
    %c0_3 = arith.constant 0 : index
    %c0_4 = arith.constant 0 : index
    %2 = vector.load %arg6[%c0_3, %c0_4] : memref<1x512xf32, #tpu.memory_space<vmem>>, vector<1x512xf32>
    %cst = arith.constant dense<0.000000e+00> : vector<16x512xf32>
    %3 = tpu.matmul %0, %1, %cst {dimension_numbers = #tpu.dot_dimension_numbers<[1], [0], [0], [1], [0, 0, 1, 1], [], []>} : vector<16x32xbf16>, vector<32x512xbf16>, vector<16x512xf32> -> vector<16x512xf32>
    %4 = vector.broadcast %2 : vector<1x512xf32> to vector<16x512xf32>
    %5 = arith.addf %3, %4 : vector<16x512xf32>
    %6 = arith.truncf %5 : vector<16x512xf32> to vector<16x512xbf16>
    %c0_5 = arith.constant 0 : index
    %c0_6 = arith.constant 0 : index
    %7 = vector.load %arg9[%c0_5, %c0_6] : memref<16x512xbf16, #tpu.memory_space<vmem>>, vector<16x512xbf16>
    tpu.vector_store %arg9[%c0_5, %c0_6], %6 {strides = array<i32>} : memref<16x512xbf16, #tpu.memory_space<vmem>>, vector<16x512xbf16>,
    %c0_7 = arith.constant 0 : index
    %c0_8 = arith.constant 0 : index
    %8 = vector.load %arg4[%c0_7, %c0_8] : memref<32x512xbf16, #tpu.memory_space<vmem>>, vector<32x512xbf16>
    %c0_9 = arith.constant 0 : index
    %c0_10 = arith.constant 0 : index
    %9 = vector.load %arg7[%c0_9, %c0_10] : memref<1x512xf32, #tpu.memory_space<vmem>>, vector<1x512xf32>
    %cst_11 = arith.constant dense<0.000000e+00> : vector<16x512xf32>
    %10 = tpu.matmul %0, %8, %cst_11 {dimension_numbers = #tpu.dot_dimension_numbers<[1], [0], [0], [1], [0, 0, 1, 1], [], []>} : vector<16x32xbf16>, vector<32x512xbf16>, vector<16x512xf32> -> vector<16x512xf32>
    %11 = vector.broadcast %9 : vector<1x512xf32> to vector<16x512xf32>
    %12 = arith.addf %10, %11 : vector<16x512xf32>
    %13 = arith.truncf %12 : vector<16x512xf32> to vector<16x512xbf16>
    %c0_12 = arith.constant 0 : index
    %c0_13 = arith.constant 0 : index
    %14 = vector.load %arg10[%c0_12, %c0_13] : memref<16x512xbf16, #tpu.memory_space<vmem>>, vector<16x512xbf16>
    tpu.vector_store %arg10[%c0_12, %c0_13], %13 {strides = array<i32>} : memref<16x512xbf16, #tpu.memory_space<vmem>>, vector<16x512xbf16>,
    %c0_14 = arith.constant 0 : index
    %c0_15 = arith.constant 0 : index
    %15 = vector.load %arg5[%c0_14, %c0_15] : memref<32x512xbf16, #tpu.memory_space<vmem>>, vector<32x512xbf16>
    %c0_16 = arith.constant 0 : index
    %c0_17 = arith.constant 0 : index
    %16 = vector.load %arg8[%c0_16, %c0_17] : memref<1x512xf32, #tpu.memory_space<vmem>>, vector<1x512xf32>
    %cst_18 = arith.constant dense<0.000000e+00> : vector<16x512xf32>
    %17 = tpu.matmul %0, %15, %cst_18 {dimension_numbers = #tpu.dot_dimension_numbers<[1], [0], [0], [1], [0, 0, 1, 1], [], []>} : vector<16x32xbf16>, vector<32x512xbf16>, vector<16x512xf32> -> vector<16x512xf32>
    %18 = vector.broadcast %16 : vector<1x512xf32> to vector<16x512xf32>
    %19 = arith.addf %17, %18 : vector<16x512xf32>
    %20 = arith.truncf %19 : vector<16x512xf32> to vector<16x512xbf16>
    %c0_19 = arith.constant 0 : index
    %c0_20 = arith.constant 0 : index
    %21 = vector.load %arg11[%c0_19, %c0_20] : memref<16x512xbf16, #tpu.memory_space<vmem>>, vector<16x512xbf16>
    tpu.vector_store %arg11[%c0_19, %c0_20], %20 {strides = array<i32>} : memref<16x512xbf16, #tpu.memory_space<vmem>>, vector<16x512xbf16>,
    return
  }
  func.func @transform_0(%arg0: i32, %arg1: i32) -> (i32, i32) {
    %c0_i32 = arith.constant 0 : i32
    %c0_i32_0 = arith.constant 0 : i32
    return %arg1, %c0_i32 : i32, i32
  }
  func.func @transform_1(%arg0: i32, %arg1: i32) -> (i32, i32) {
    %c0_i32 = arith.constant 0 : i32
    %c0_i32_0 = arith.constant 0 : i32
    return %c0_i32, %arg0 : i32, i32
  }
  func.func @transform_2(%arg0: i32, %arg1: i32) -> (i32, i32) {
    %c0_i32 = arith.constant 0 : i32
    %c0_i32_0 = arith.constant 0 : i32
    return %c0_i32, %arg0 : i32, i32
  }
  func.func @transform_3(%arg0: i32, %arg1: i32) -> (i32, i32) {
    %c0_i32 = arith.constant 0 : i32
    %c0_i32_0 = arith.constant 0 : i32
    return %c0_i32, %arg0 : i32, i32
  }
  func.func @transform_4(%arg0: i32, %arg1: i32) -> (i32, i32) {
    %c0_i32 = arith.constant 0 : i32
    %c0_i32_0 = arith.constant 0 : i32
    return %c0_i32, %arg0 : i32, i32
  }
  func.func @transform_5(%arg0: i32, %arg1: i32) -> (i32, i32) {
    %c0_i32 = arith.constant 0 : i32
    %c0_i32_0 = arith.constant 0 : i32
    return %c0_i32, %arg0 : i32, i32
  }
  func.func @transform_6(%arg0: i32, %arg1: i32) -> (i32, i32) {
    %c0_i32 = arith.constant 0 : i32
    %c0_i32_0 = arith.constant 0 : i32
    return %c0_i32, %arg0 : i32, i32
  }
  func.func @transform_7(%arg0: i32, %arg1: i32) -> (i32, i32) {
    %c0_i32 = arith.constant 0 : i32
    return %arg1, %arg0 : i32, i32
  }
  func.func @transform_8(%arg0: i32, %arg1: i32) -> (i32, i32) {
    %c0_i32 = arith.constant 0 : i32
    return %arg1, %arg0 : i32, i32
  }
  func.func @transform_9(%arg0: i32, %arg1: i32) -> (i32, i32) {
    %c0_i32 = arith.constant 0 : i32
    return %arg1, %arg0 : i32, i32
  }
}

module attributes {stable_mosaic.version = 11 : i64} {
  func.func @_flash_causal_kernel(%arg0: i32, %arg1: i32, %arg2: i32, %arg3: memref<1xi32, #tpu.memory_space<smem>>, %arg4: memref<1xi32, #tpu.memory_space<smem>>, %arg5: memref<1x8x128xbf16, #tpu.memory_space<vmem>>, %arg6: memref<1x8x128xbf16, #tpu.memory_space<vmem>>, %arg7: memref<1x8x128xbf16, #tpu.memory_space<vmem>>, %arg8: memref<1x8x128xbf16, #tpu.memory_space<vmem>>, %arg9: memref<8x1xf32, #tpu.memory_space<vmem>>, %arg10: memref<8x1xf32, #tpu.memory_space<vmem>>, %arg11: memref<8x128xf32, #tpu.memory_space<vmem>>) attributes {dimension_semantics = [#tpu.dimension_semantics<parallel>, #tpu.dimension_semantics<parallel>, #tpu.dimension_semantics<arbitrary>], iteration_bounds = array<i64: 2, 4, 1>, scalar_prefetch = 2 : i64, scratch_operands = 3 : i64, tpu.core_type = #tpu.core_type<tc>, window_params = [{transform_indices = @transform_0, window_bounds = array<i64: 1, 8, 128>}, {transform_indices = @transform_1, window_bounds = array<i64: 1, 8, 128>}, {transform_indices = @transform_2, window_bounds = array<i64: 1, 8, 128>}, {transform_indices = @transform_3, window_bounds = array<i64: 1, 8, 128>}]} {
    %0 = arith.index_cast %arg2 : i32 to index
    %1 = memref.load %arg3[%0] : memref<1xi32, #tpu.memory_space<smem>>
    %2 = arith.index_cast %arg2 : i32 to index
    %3 = memref.load %arg4[%2] : memref<1xi32, #tpu.memory_space<smem>>
    %c0_i32 = arith.constant 0 : i32
    %4 = arith.cmpi eq, %3, %c0_i32 : i32
    %5 = arith.extui %4 : i1 to i32
    %c0_i32_0 = arith.constant 0 : i32
    %6 = arith.cmpi ne, %5, %c0_i32_0 : i32
    scf.if %6 {
      %cst_27 = arith.constant 0xFF800000 : f32
      %51 = vector.broadcast %cst_27 : f32 to vector<8x1xf32>
      %c0_28 = arith.constant 0 : index
      %c0_29 = arith.constant 0 : index
      %52 = vector.load %arg9[%c0_28, %c0_29] : memref<8x1xf32, #tpu.memory_space<vmem>>, vector<8x1xf32>
      tpu.vector_store %arg9[%c0_28, %c0_29], %51 {strides = array<i32>} : memref<8x1xf32, #tpu.memory_space<vmem>>, vector<8x1xf32>,
      %cst_30 = arith.constant 0.000000e+00 : f32
      %53 = vector.broadcast %cst_30 : f32 to vector<8x1xf32>
      %c0_31 = arith.constant 0 : index
      %c0_32 = arith.constant 0 : index
      %54 = vector.load %arg10[%c0_31, %c0_32] : memref<8x1xf32, #tpu.memory_space<vmem>>, vector<8x1xf32>
      tpu.vector_store %arg10[%c0_31, %c0_32], %53 {strides = array<i32>} : memref<8x1xf32, #tpu.memory_space<vmem>>, vector<8x1xf32>,
      %cst_33 = arith.constant 0.000000e+00 : f32
      %55 = vector.broadcast %cst_33 : f32 to vector<8x128xf32>
      %c0_34 = arith.constant 0 : index
      %c0_35 = arith.constant 0 : index
      %56 = vector.load %arg11[%c0_34, %c0_35] : memref<8x128xf32, #tpu.memory_space<vmem>>, vector<8x128xf32>
      tpu.vector_store %arg11[%c0_34, %c0_35], %55 {strides = array<i32>} : memref<8x128xf32, #tpu.memory_space<vmem>>, vector<8x128xf32>,
    } else {
    }
    %c0 = arith.constant 0 : index
    %c0_1 = arith.constant 0 : index
    %c0_2 = arith.constant 0 : index
    %7 = vector.load %arg5[%c0, %c0_1, %c0_2] : memref<1x8x128xbf16, #tpu.memory_space<vmem>>, vector<1x8x128xbf16>
    %8 = vector.shape_cast %7 : vector<1x8x128xbf16> to vector<8x128xbf16>
    %c0_3 = arith.constant 0 : index
    %c0_4 = arith.constant 0 : index
    %c0_5 = arith.constant 0 : index
    %9 = vector.load %arg6[%c0_3, %c0_4, %c0_5] : memref<1x8x128xbf16, #tpu.memory_space<vmem>>, vector<1x8x128xbf16>
    %10 = vector.shape_cast %9 : vector<1x8x128xbf16> to vector<8x128xbf16>
    %c0_6 = arith.constant 0 : index
    %c0_7 = arith.constant 0 : index
    %c0_8 = arith.constant 0 : index
    %11 = vector.load %arg7[%c0_6, %c0_7, %c0_8] : memref<1x8x128xbf16, #tpu.memory_space<vmem>>, vector<1x8x128xbf16>
    %12 = vector.shape_cast %11 : vector<1x8x128xbf16> to vector<8x128xbf16>
    %cst = arith.constant dense<0.000000e+00> : vector<8x8xf32>
    %13 = tpu.matmul %8, %10, %cst {dimension_numbers = #tpu.dot_dimension_numbers<[1], [1], [0], [0], [0, 0, 1, 0], [], []>} : vector<8x128xbf16>, vector<8x128xbf16>, vector<8x8xf32> -> vector<8x8xf32>
    %c8_i32 = arith.constant 8 : i32
    %14 = arith.muli %1, %c8_i32 : i32
    %15 = tpu.iota {dimensions = array<i32: 0>} : vector<8x8xi32>
    %16 = vector.broadcast %14 : i32 to vector<8x8xi32>
    %17 = arith.addi %16, %15 : vector<8x8xi32>
    %c8_i32_9 = arith.constant 8 : i32
    %18 = arith.muli %3, %c8_i32_9 : i32
    %19 = tpu.iota {dimensions = array<i32: 1>} : vector<8x8xi32>
    %20 = vector.broadcast %18 : i32 to vector<8x8xi32>
    %21 = arith.addi %20, %19 : vector<8x8xi32>
    %22 = arith.cmpi sle, %21, %17 : vector<8x8xi32>
    %cst_10 = arith.constant 0xFF800000 : f32
    %23 = vector.broadcast %cst_10 : f32 to vector<8x8xf32>
    %24 = arith.select %22, %13, %23 : vector<8x8xi1>, vector<8x8xf32>
    %c0_11 = arith.constant 0 : index
    %c0_12 = arith.constant 0 : index
    %25 = vector.load %arg9[%c0_11, %c0_12] : memref<8x1xf32, #tpu.memory_space<vmem>>, vector<8x1xf32>
    %cst_13 = arith.constant dense<0xFF800000> : vector<8xf32>
    %26 = vector.multi_reduction <maximumf>, %24, %cst_13 [1] : vector<8x8xf32> to vector<8xf32>
    %27 = vector.shape_cast %26 : vector<8xf32> to vector<8x1xf32>
    %28 = arith.maximumf %25, %27 : vector<8x1xf32>
    %29 = arith.subf %25, %28 : vector<8x1xf32>
    %30 = math.exp %29 : vector<8x1xf32>
    %31 = vector.broadcast %28 : vector<8x1xf32> to vector<8x8xf32>
    %32 = arith.subf %24, %31 : vector<8x8xf32>
    %33 = math.exp %32 : vector<8x8xf32>
    %c0_14 = arith.constant 0 : index
    %c0_15 = arith.constant 0 : index
    %34 = vector.load %arg10[%c0_14, %c0_15] : memref<8x1xf32, #tpu.memory_space<vmem>>, vector<8x1xf32>
    %35 = arith.mulf %30, %34 : vector<8x1xf32>
    %cst_16 = arith.constant dense<0.000000e+00> : vector<8xf32>
    %36 = vector.multi_reduction <add>, %33, %cst_16 [1] : vector<8x8xf32> to vector<8xf32>
    %37 = vector.shape_cast %36 : vector<8xf32> to vector<8x1xf32>
    %38 = arith.addf %35, %37 : vector<8x1xf32>
    %c0_17 = arith.constant 0 : index
    %c0_18 = arith.constant 0 : index
    %39 = vector.load %arg10[%c0_17, %c0_18] : memref<8x1xf32, #tpu.memory_space<vmem>>, vector<8x1xf32>
    tpu.vector_store %arg10[%c0_17, %c0_18], %38 {strides = array<i32>} : memref<8x1xf32, #tpu.memory_space<vmem>>, vector<8x1xf32>,
    %c0_19 = arith.constant 0 : index
    %c0_20 = arith.constant 0 : index
    %40 = vector.load %arg11[%c0_19, %c0_20] : memref<8x128xf32, #tpu.memory_space<vmem>>, vector<8x128xf32>
    %41 = vector.broadcast %30 : vector<8x1xf32> to vector<8x128xf32>
    %42 = arith.mulf %41, %40 : vector<8x128xf32>
    %43 = arith.truncf %33 : vector<8x8xf32> to vector<8x8xbf16>
    %cst_21 = arith.constant dense<0.000000e+00> : vector<8x128xf32>
    %44 = tpu.matmul %43, %12, %cst_21 {dimension_numbers = #tpu.dot_dimension_numbers<[1], [0], [0], [1], [0, 0, 1, 1], [], []>} : vector<8x8xbf16>, vector<8x128xbf16>, vector<8x128xf32> -> vector<8x128xf32>
    %45 = arith.addf %42, %44 : vector<8x128xf32>
    %c0_22 = arith.constant 0 : index
    %c0_23 = arith.constant 0 : index
    %46 = vector.load %arg11[%c0_22, %c0_23] : memref<8x128xf32, #tpu.memory_space<vmem>>, vector<8x128xf32>
    tpu.vector_store %arg11[%c0_22, %c0_23], %45 {strides = array<i32>} : memref<8x128xf32, #tpu.memory_space<vmem>>, vector<8x128xf32>,
    %c0_24 = arith.constant 0 : index
    %c0_25 = arith.constant 0 : index
    %47 = vector.load %arg9[%c0_24, %c0_25] : memref<8x1xf32, #tpu.memory_space<vmem>>, vector<8x1xf32>
    tpu.vector_store %arg9[%c0_24, %c0_25], %28 {strides = array<i32>} : memref<8x1xf32, #tpu.memory_space<vmem>>, vector<8x1xf32>,
    %48 = arith.cmpi eq, %3, %1 : i32
    %49 = arith.extui %48 : i1 to i32
    %c0_i32_26 = arith.constant 0 : i32
    %50 = arith.cmpi ne, %49, %c0_i32_26 : i32
    scf.if %50 {
      %c0_27 = arith.constant 0 : index
      %c0_28 = arith.constant 0 : index
      %51 = vector.load %arg11[%c0_27, %c0_28] : memref<8x128xf32, #tpu.memory_space<vmem>>, vector<8x128xf32>
      %c0_29 = arith.constant 0 : index
      %c0_30 = arith.constant 0 : index
      %52 = vector.load %arg10[%c0_29, %c0_30] : memref<8x1xf32, #tpu.memory_space<vmem>>, vector<8x1xf32>
      %53 = tpu.reciprocal %52 {approx = true} : vector<8x1xf32> -> vector<8x1xf32>
      %54 = vector.broadcast %53 : vector<8x1xf32> to vector<8x128xf32>
      %55 = arith.mulf %51, %54 : vector<8x128xf32>
      %56 = arith.truncf %55 : vector<8x128xf32> to vector<8x128xbf16>
      %c0_31 = arith.constant 0 : index
      %c0_32 = arith.constant 0 : index
      %c0_33 = arith.constant 0 : index
      %57 = vector.load %arg8[%c0_31, %c0_32, %c0_33] : memref<1x8x128xbf16, #tpu.memory_space<vmem>>, vector<1x8x128xbf16>
      %58 = vector.shape_cast %57 : vector<1x8x128xbf16> to vector<8x128xbf16>
      %59 = vector.shape_cast %56 : vector<8x128xbf16> to vector<1x8x128xbf16>
      tpu.vector_store %arg8[%c0_31, %c0_32, %c0_33], %59 {strides = array<i32>} : memref<1x8x128xbf16, #tpu.memory_space<vmem>>, vector<1x8x128xbf16>,
    } else {
    }
    return
  }
  func.func @transform_0(%arg0: i32, %arg1: i32, %arg2: i32, %arg3: memref<1xi32, #tpu.memory_space<smem>>, %arg4: memref<1xi32, #tpu.memory_space<smem>>) -> (i32, i32, i32) {
    %0 = arith.index_cast %arg2 : i32 to index
    %1 = memref.load %arg3[%0] : memref<1xi32, #tpu.memory_space<smem>>
    %c0_i32 = arith.constant 0 : i32
    return %arg0, %1, %arg1 : i32, i32, i32
  }
  func.func @transform_1(%arg0: i32, %arg1: i32, %arg2: i32, %arg3: memref<1xi32, #tpu.memory_space<smem>>, %arg4: memref<1xi32, #tpu.memory_space<smem>>) -> (i32, i32, i32) {
    %0 = arith.index_cast %arg2 : i32 to index
    %1 = memref.load %arg4[%0] : memref<1xi32, #tpu.memory_space<smem>>
    %c0_i32 = arith.constant 0 : i32
    return %arg0, %1, %arg1 : i32, i32, i32
  }
  func.func @transform_2(%arg0: i32, %arg1: i32, %arg2: i32, %arg3: memref<1xi32, #tpu.memory_space<smem>>, %arg4: memref<1xi32, #tpu.memory_space<smem>>) -> (i32, i32, i32) {
    %0 = arith.index_cast %arg2 : i32 to index
    %1 = memref.load %arg4[%0] : memref<1xi32, #tpu.memory_space<smem>>
    %c0_i32 = arith.constant 0 : i32
    return %arg0, %1, %arg1 : i32, i32, i32
  }
  func.func @transform_3(%arg0: i32, %arg1: i32, %arg2: i32, %arg3: memref<1xi32, #tpu.memory_space<smem>>, %arg4: memref<1xi32, #tpu.memory_space<smem>>) -> (i32, i32, i32) {
    %0 = arith.index_cast %arg2 : i32 to index
    %1 = memref.load %arg3[%0] : memref<1xi32, #tpu.memory_space<smem>>
    %c0_i32 = arith.constant 0 : i32
    return %arg0, %1, %arg1 : i32, i32, i32
  }
}

module attributes {stable_mosaic.version = 11 : i64} {
  func.func @_fused_linear_kernel(%arg0: i32, %arg1: i32, %arg2: memref<16x512xbf16, #tpu.memory_space<vmem>>, %arg3: memref<512x32xbf16, #tpu.memory_space<vmem>>, %arg4: memref<1x32xf32, #tpu.memory_space<vmem>>, %arg5: memref<16x32xbf16, #tpu.memory_space<vmem>>) attributes {dimension_semantics = [#tpu.dimension_semantics<parallel>, #tpu.dimension_semantics<parallel>], iteration_bounds = array<i64: 1, 1>, scalar_prefetch = 0 : i64, scratch_operands = 0 : i64, tpu.core_type = #tpu.core_type<tc>, window_params = [{transform_indices = @transform_0, window_bounds = array<i64: 16, 512>}, {transform_indices = @transform_1, window_bounds = array<i64: 512, 32>}, {transform_indices = @transform_2, window_bounds = array<i64: 1, 32>}, {transform_indices = @transform_3, window_bounds = array<i64: 16, 32>}]} {
    %c0 = arith.constant 0 : index
    %c0_0 = arith.constant 0 : index
    %0 = vector.load %arg2[%c0, %c0_0] : memref<16x512xbf16, #tpu.memory_space<vmem>>, vector<16x512xbf16>
    %c0_1 = arith.constant 0 : index
    %c0_2 = arith.constant 0 : index
    %1 = vector.load %arg3[%c0_1, %c0_2] : memref<512x32xbf16, #tpu.memory_space<vmem>>, vector<512x32xbf16>
    %c0_3 = arith.constant 0 : index
    %c0_4 = arith.constant 0 : index
    %2 = vector.load %arg4[%c0_3, %c0_4] : memref<1x32xf32, #tpu.memory_space<vmem>>, vector<1x32xf32>
    %cst = arith.constant dense<0.000000e+00> : vector<16x32xf32>
    %3 = tpu.matmul %0, %1, %cst {dimension_numbers = #tpu.dot_dimension_numbers<[1], [0], [0], [1], [0, 0, 1, 1], [], []>} : vector<16x512xbf16>, vector<512x32xbf16>, vector<16x32xf32> -> vector<16x32xf32>
    %4 = vector.broadcast %2 : vector<1x32xf32> to vector<16x32xf32>
    %5 = arith.addf %3, %4 : vector<16x32xf32>
    %6 = arith.truncf %5 : vector<16x32xf32> to vector<16x32xbf16>
    %c0_5 = arith.constant 0 : index
    %c0_6 = arith.constant 0 : index
    %7 = vector.load %arg5[%c0_5, %c0_6] : memref<16x32xbf16, #tpu.memory_space<vmem>>, vector<16x32xbf16>
    tpu.vector_store %arg5[%c0_5, %c0_6], %6 {strides = array<i32>} : memref<16x32xbf16, #tpu.memory_space<vmem>>, vector<16x32xbf16>,
    return
  }
  func.func @transform_0(%arg0: i32, %arg1: i32) -> (i32, i32) {
    %c0_i32 = arith.constant 0 : i32
    %c0_i32_0 = arith.constant 0 : i32
    return %arg1, %c0_i32 : i32, i32
  }
  func.func @transform_1(%arg0: i32, %arg1: i32) -> (i32, i32) {
    %c0_i32 = arith.constant 0 : i32
    %c0_i32_0 = arith.constant 0 : i32
    return %c0_i32, %arg0 : i32, i32
  }
  func.func @transform_2(%arg0: i32, %arg1: i32) -> (i32, i32) {
    %c0_i32 = arith.constant 0 : i32
    %c0_i32_0 = arith.constant 0 : i32
    return %c0_i32, %arg0 : i32, i32
  }
  func.func @transform_3(%arg0: i32, %arg1: i32) -> (i32, i32) {
    %c0_i32 = arith.constant 0 : i32
    return %arg1, %arg0 : i32, i32
  }
}

module attributes {stable_mosaic.version = 11 : i64} {
  func.func @_add_ln_kernel(%arg0: i32, %arg1: memref<16x32xbf16, #tpu.memory_space<vmem>>, %arg2: memref<16x32xbf16, #tpu.memory_space<vmem>>, %arg3: memref<1x32xf32, #tpu.memory_space<vmem>>, %arg4: memref<1x32xf32, #tpu.memory_space<vmem>>, %arg5: memref<16x32xbf16, #tpu.memory_space<vmem>>) attributes {dimension_semantics = [#tpu.dimension_semantics<parallel>], iteration_bounds = array<i64: 1>, scalar_prefetch = 0 : i64, scratch_operands = 0 : i64, tpu.core_type = #tpu.core_type<tc>, window_params = [{transform_indices = @transform_0, window_bounds = array<i64: 16, 32>}, {transform_indices = @transform_1, window_bounds = array<i64: 16, 32>}, {pipeline_mode = #tpu.pipeline_mode<synchronous>, transform_indices = @transform_2, window_bounds = array<i64: 1, 32>}, {pipeline_mode = #tpu.pipeline_mode<synchronous>, transform_indices = @transform_3, window_bounds = array<i64: 1, 32>}, {transform_indices = @transform_4, window_bounds = array<i64: 16, 32>}]} {
    %c0 = arith.constant 0 : index
    %c0_0 = arith.constant 0 : index
    %0 = vector.load %arg1[%c0, %c0_0] : memref<16x32xbf16, #tpu.memory_space<vmem>>, vector<16x32xbf16>
    %1 = arith.extf %0 : vector<16x32xbf16> to vector<16x32xf32>
    %c0_1 = arith.constant 0 : index
    %c0_2 = arith.constant 0 : index
    %2 = vector.load %arg2[%c0_1, %c0_2] : memref<16x32xbf16, #tpu.memory_space<vmem>>, vector<16x32xbf16>
    %3 = arith.extf %2 : vector<16x32xbf16> to vector<16x32xf32>
    %4 = arith.addf %1, %3 : vector<16x32xf32>
    %cst = arith.constant dense<0.000000e+00> : vector<16xf32>
    %5 = vector.multi_reduction <add>, %4, %cst [1] : vector<16x32xf32> to vector<16xf32>
    %6 = vector.shape_cast %5 : vector<16xf32> to vector<16x1xf32>
    %cst_3 = arith.constant 3.200000e+01 : f32
    %7 = vector.broadcast %cst_3 : f32 to vector<16x1xf32>
    %8 = arith.divf %6, %7 : vector<16x1xf32>
    %9 = vector.broadcast %8 : vector<16x1xf32> to vector<16x32xf32>
    %10 = arith.subf %4, %9 : vector<16x32xf32>
    %11 = arith.mulf %10, %10 : vector<16x32xf32>
    %cst_4 = arith.constant dense<0.000000e+00> : vector<16xf32>
    %12 = vector.multi_reduction <add>, %11, %cst_4 [1] : vector<16x32xf32> to vector<16xf32>
    %13 = vector.shape_cast %12 : vector<16xf32> to vector<16x1xf32>
    %cst_5 = arith.constant 3.200000e+01 : f32
    %14 = vector.broadcast %cst_5 : f32 to vector<16x1xf32>
    %15 = arith.divf %13, %14 : vector<16x1xf32>
    %16 = vector.broadcast %8 : vector<16x1xf32> to vector<16x32xf32>
    %17 = arith.subf %4, %16 : vector<16x32xf32>
    %cst_6 = arith.constant 9.99999974E-6 : f32
    %18 = vector.broadcast %cst_6 : f32 to vector<16x1xf32>
    %19 = arith.addf %15, %18 : vector<16x1xf32>
    %20 = math.rsqrt %19 : vector<16x1xf32>
    %21 = vector.broadcast %20 : vector<16x1xf32> to vector<16x32xf32>
    %22 = arith.mulf %17, %21 : vector<16x32xf32>
    %c0_7 = arith.constant 0 : index
    %c0_8 = arith.constant 0 : index
    %23 = vector.load %arg3[%c0_7, %c0_8] : memref<1x32xf32, #tpu.memory_space<vmem>>, vector<1x32xf32>
    %24 = vector.broadcast %23 : vector<1x32xf32> to vector<16x32xf32>
    %25 = arith.mulf %22, %24 : vector<16x32xf32>
    %c0_9 = arith.constant 0 : index
    %c0_10 = arith.constant 0 : index
    %26 = vector.load %arg4[%c0_9, %c0_10] : memref<1x32xf32, #tpu.memory_space<vmem>>, vector<1x32xf32>
    %27 = vector.broadcast %26 : vector<1x32xf32> to vector<16x32xf32>
    %28 = arith.addf %25, %27 : vector<16x32xf32>
    %29 = arith.truncf %28 : vector<16x32xf32> to vector<16x32xbf16>
    %c0_11 = arith.constant 0 : index
    %c0_12 = arith.constant 0 : index
    %30 = vector.load %arg5[%c0_11, %c0_12] : memref<16x32xbf16, #tpu.memory_space<vmem>>, vector<16x32xbf16>
    tpu.vector_store %arg5[%c0_11, %c0_12], %29 {strides = array<i32>} : memref<16x32xbf16, #tpu.memory_space<vmem>>, vector<16x32xbf16>,
    return
  }
  func.func @transform_0(%arg0: i32) -> (i32, i32) {
    %c0_i32 = arith.constant 0 : i32
    %c0_i32_0 = arith.constant 0 : i32
    return %arg0, %c0_i32 : i32, i32
  }
  func.func @transform_1(%arg0: i32) -> (i32, i32) {
    %c0_i32 = arith.constant 0 : i32
    %c0_i32_0 = arith.constant 0 : i32
    return %arg0, %c0_i32 : i32, i32
  }
  func.func @transform_2(%arg0: i32) -> (i32, i32) {
    %c0_i32 = arith.constant 0 : i32
    %c0_i32_0 = arith.constant 0 : i32
    %c0_i32_1 = arith.constant 0 : i32
    return %c0_i32, %c0_i32_0 : i32, i32
  }
  func.func @transform_3(%arg0: i32) -> (i32, i32) {
    %c0_i32 = arith.constant 0 : i32
    %c0_i32_0 = arith.constant 0 : i32
    %c0_i32_1 = arith.constant 0 : i32
    return %c0_i32, %c0_i32_0 : i32, i32
  }
  func.func @transform_4(%arg0: i32) -> (i32, i32) {
    %c0_i32 = arith.constant 0 : i32
    %c0_i32_0 = arith.constant 0 : i32
    return %arg0, %c0_i32 : i32, i32
  }
}

module attributes {stable_mosaic.version = 11 : i64} {
  func.func @_fused_linear_kernel(%arg0: i32, %arg1: i32, %arg2: memref<16x32xbf16, #tpu.memory_space<vmem>>, %arg3: memref<32x512xbf16, #tpu.memory_space<vmem>>, %arg4: memref<1x512xf32, #tpu.memory_space<vmem>>, %arg5: memref<16x512xbf16, #tpu.memory_space<vmem>>) attributes {dimension_semantics = [#tpu.dimension_semantics<parallel>, #tpu.dimension_semantics<parallel>], iteration_bounds = array<i64: 1, 1>, scalar_prefetch = 0 : i64, scratch_operands = 0 : i64, tpu.core_type = #tpu.core_type<tc>, window_params = [{transform_indices = @transform_0, window_bounds = array<i64: 16, 32>}, {transform_indices = @transform_1, window_bounds = array<i64: 32, 512>}, {transform_indices = @transform_2, window_bounds = array<i64: 1, 512>}, {transform_indices = @transform_3, window_bounds = array<i64: 16, 512>}]} {
    %c0 = arith.constant 0 : index
    %c0_0 = arith.constant 0 : index
    %0 = vector.load %arg2[%c0, %c0_0] : memref<16x32xbf16, #tpu.memory_space<vmem>>, vector<16x32xbf16>
    %c0_1 = arith.constant 0 : index
    %c0_2 = arith.constant 0 : index
    %1 = vector.load %arg3[%c0_1, %c0_2] : memref<32x512xbf16, #tpu.memory_space<vmem>>, vector<32x512xbf16>
    %c0_3 = arith.constant 0 : index
    %c0_4 = arith.constant 0 : index
    %2 = vector.load %arg4[%c0_3, %c0_4] : memref<1x512xf32, #tpu.memory_space<vmem>>, vector<1x512xf32>
    %cst = arith.constant dense<0.000000e+00> : vector<16x512xf32>
    %3 = tpu.matmul %0, %1, %cst {dimension_numbers = #tpu.dot_dimension_numbers<[1], [0], [0], [1], [0, 0, 1, 1], [], []>} : vector<16x32xbf16>, vector<32x512xbf16>, vector<16x512xf32> -> vector<16x512xf32>
    %4 = vector.broadcast %2 : vector<1x512xf32> to vector<16x512xf32>
    %5 = arith.addf %3, %4 : vector<16x512xf32>
    %6 = arith.truncf %5 : vector<16x512xf32> to vector<16x512xbf16>
    %c0_5 = arith.constant 0 : index
    %c0_6 = arith.constant 0 : index
    %7 = vector.load %arg5[%c0_5, %c0_6] : memref<16x512xbf16, #tpu.memory_space<vmem>>, vector<16x512xbf16>
    tpu.vector_store %arg5[%c0_5, %c0_6], %6 {strides = array<i32>} : memref<16x512xbf16, #tpu.memory_space<vmem>>, vector<16x512xbf16>,
    return
  }
  func.func @transform_0(%arg0: i32, %arg1: i32) -> (i32, i32) {
    %c0_i32 = arith.constant 0 : i32
    %c0_i32_0 = arith.constant 0 : i32
    return %arg1, %c0_i32 : i32, i32
  }
  func.func @transform_1(%arg0: i32, %arg1: i32) -> (i32, i32) {
    %c0_i32 = arith.constant 0 : i32
    %c0_i32_0 = arith.constant 0 : i32
    return %c0_i32, %arg0 : i32, i32
  }
  func.func @transform_2(%arg0: i32, %arg1: i32) -> (i32, i32) {
    %c0_i32 = arith.constant 0 : i32
    %c0_i32_0 = arith.constant 0 : i32
    return %c0_i32, %arg0 : i32, i32
  }
  func.func @transform_3(%arg0: i32, %arg1: i32) -> (i32, i32) {
    %c0_i32 = arith.constant 0 : i32
    return %arg1, %arg0 : i32, i32
  }
}

module attributes {stable_mosaic.version = 11 : i64} {
  func.func @_ffn_ln_kernel(%arg0: i32, %arg1: i32, %arg2: memref<16x32xbf16, #tpu.memory_space<vmem>>, %arg3: memref<32x64xbf16, #tpu.memory_space<vmem>>, %arg4: memref<1x64xf32, #tpu.memory_space<vmem>>, %arg5: memref<64x32xbf16, #tpu.memory_space<vmem>>, %arg6: memref<1x32xf32, #tpu.memory_space<vmem>>, %arg7: memref<1x32xf32, #tpu.memory_space<vmem>>, %arg8: memref<1x32xf32, #tpu.memory_space<vmem>>, %arg9: memref<16x32xbf16, #tpu.memory_space<vmem>>, %arg10: memref<16x32xf32, #tpu.memory_space<vmem>>) attributes {dimension_semantics = [#tpu.dimension_semantics<parallel>, #tpu.dimension_semantics<arbitrary>], iteration_bounds = array<i64: 1, 1>, scalar_prefetch = 0 : i64, scratch_operands = 1 : i64, tpu.core_type = #tpu.core_type<tc>, window_params = [{transform_indices = @transform_0, window_bounds = array<i64: 16, 32>}, {transform_indices = @transform_1, window_bounds = array<i64: 32, 64>}, {transform_indices = @transform_2, window_bounds = array<i64: 1, 64>}, {transform_indices = @transform_3, window_bounds = array<i64: 64, 32>}, {pipeline_mode = #tpu.pipeline_mode<synchronous>, transform_indices = @transform_4, window_bounds = array<i64: 1, 32>}, {pipeline_mode = #tpu.pipeline_mode<synchronous>, transform_indices = @transform_5, window_bounds = array<i64: 1, 32>}, {pipeline_mode = #tpu.pipeline_mode<synchronous>, transform_indices = @transform_6, window_bounds = array<i64: 1, 32>}, {transform_indices = @transform_7, window_bounds = array<i64: 16, 32>}]} {
    %c0_i32 = arith.constant 0 : i32
    %0 = arith.cmpi eq, %arg1, %c0_i32 : i32
    %1 = arith.extui %0 : i1 to i32
    %c0_i32_0 = arith.constant 0 : i32
    %2 = arith.cmpi ne, %1, %c0_i32_0 : i32
    scf.if %2 {
      %cst_16 = arith.constant 0.000000e+00 : f32
      %20 = vector.broadcast %cst_16 : f32 to vector<16x32xf32>
      %c0_17 = arith.constant 0 : index
      %c0_18 = arith.constant 0 : index
      %21 = vector.load %arg10[%c0_17, %c0_18] : memref<16x32xf32, #tpu.memory_space<vmem>>, vector<16x32xf32>
      tpu.vector_store %arg10[%c0_17, %c0_18], %20 {strides = array<i32>} : memref<16x32xf32, #tpu.memory_space<vmem>>, vector<16x32xf32>,
    } else {
    }
    %c0 = arith.constant 0 : index
    %c0_1 = arith.constant 0 : index
    %3 = vector.load %arg2[%c0, %c0_1] : memref<16x32xbf16, #tpu.memory_space<vmem>>, vector<16x32xbf16>
    %c0_2 = arith.constant 0 : index
    %c0_3 = arith.constant 0 : index
    %4 = vector.load %arg3[%c0_2, %c0_3] : memref<32x64xbf16, #tpu.memory_space<vmem>>, vector<32x64xbf16>
    %cst = arith.constant dense<0.000000e+00> : vector<16x64xf32>
    %5 = tpu.matmul %3, %4, %cst {dimension_numbers = #tpu.dot_dimension_numbers<[1], [0], [0], [1], [0, 0, 1, 1], [], []>} : vector<16x32xbf16>, vector<32x64xbf16>, vector<16x64xf32> -> vector<16x64xf32>
    %c0_4 = arith.constant 0 : index
    %c0_5 = arith.constant 0 : index
    %6 = vector.load %arg4[%c0_4, %c0_5] : memref<1x64xf32, #tpu.memory_space<vmem>>, vector<1x64xf32>
    %7 = vector.broadcast %6 : vector<1x64xf32> to vector<16x64xf32>
    %8 = arith.addf %5, %7 : vector<16x64xf32>
    %cst_6 = arith.constant 0.000000e+00 : f32
    %9 = vector.broadcast %cst_6 : f32 to vector<16x64xf32>
    %10 = arith.maximumf %8, %9 : vector<16x64xf32>
    %c0_7 = arith.constant 0 : index
    %c0_8 = arith.constant 0 : index
    %11 = vector.load %arg10[%c0_7, %c0_8] : memref<16x32xf32, #tpu.memory_space<vmem>>, vector<16x32xf32>
    %12 = arith.truncf %10 : vector<16x64xf32> to vector<16x64xbf16>
    %c0_9 = arith.constant 0 : index
    %c0_10 = arith.constant 0 : index
    %13 = vector.load %arg5[%c0_9, %c0_10] : memref<64x32xbf16, #tpu.memory_space<vmem>>, vector<64x32xbf16>
    %cst_11 = arith.constant dense<0.000000e+00> : vector<16x32xf32>
    %14 = tpu.matmul %12, %13, %cst_11 {dimension_numbers = #tpu.dot_dimension_numbers<[1], [0], [0], [1], [0, 0, 1, 1], [], []>} : vector<16x64xbf16>, vector<64x32xbf16>, vector<16x32xf32> -> vector<16x32xf32>
    %15 = arith.addf %11, %14 : vector<16x32xf32>
    %c0_12 = arith.constant 0 : index
    %c0_13 = arith.constant 0 : index
    %16 = vector.load %arg10[%c0_12, %c0_13] : memref<16x32xf32, #tpu.memory_space<vmem>>, vector<16x32xf32>
    tpu.vector_store %arg10[%c0_12, %c0_13], %15 {strides = array<i32>} : memref<16x32xf32, #tpu.memory_space<vmem>>, vector<16x32xf32>,
    %c0_i32_14 = arith.constant 0 : i32
    %17 = arith.cmpi eq, %arg1, %c0_i32_14 : i32
    %18 = arith.extui %17 : i1 to i32
    %c0_i32_15 = arith.constant 0 : i32
    %19 = arith.cmpi ne, %18, %c0_i32_15 : i32
    scf.if %19 {
      %c0_16 = arith.constant 0 : index
      %c0_17 = arith.constant 0 : index
      %20 = vector.load %arg10[%c0_16, %c0_17] : memref<16x32xf32, #tpu.memory_space<vmem>>, vector<16x32xf32>
      %c0_18 = arith.constant 0 : index
      %c0_19 = arith.constant 0 : index
      %21 = vector.load %arg6[%c0_18, %c0_19] : memref<1x32xf32, #tpu.memory_space<vmem>>, vector<1x32xf32>
      %22 = vector.broadcast %21 : vector<1x32xf32> to vector<16x32xf32>
      %23 = arith.addf %20, %22 : vector<16x32xf32>
      %c0_20 = arith.constant 0 : index
      %c0_21 = arith.constant 0 : index
      %24 = vector.load %arg2[%c0_20, %c0_21] : memref<16x32xbf16, #tpu.memory_space<vmem>>, vector<16x32xbf16>
      %25 = arith.extf %24 : vector<16x32xbf16> to vector<16x32xf32>
      %26 = arith.addf %23, %25 : vector<16x32xf32>
      %cst_22 = arith.constant dense<0.000000e+00> : vector<16xf32>
      %27 = vector.multi_reduction <add>, %26, %cst_22 [1] : vector<16x32xf32> to vector<16xf32>
      %28 = vector.shape_cast %27 : vector<16xf32> to vector<16x1xf32>
      %cst_23 = arith.constant 3.200000e+01 : f32
      %29 = vector.broadcast %cst_23 : f32 to vector<16x1xf32>
      %30 = arith.divf %28, %29 : vector<16x1xf32>
      %31 = vector.broadcast %30 : vector<16x1xf32> to vector<16x32xf32>
      %32 = arith.subf %26, %31 : vector<16x32xf32>
      %33 = arith.mulf %32, %32 : vector<16x32xf32>
      %cst_24 = arith.constant dense<0.000000e+00> : vector<16xf32>
      %34 = vector.multi_reduction <add>, %33, %cst_24 [1] : vector<16x32xf32> to vector<16xf32>
      %35 = vector.shape_cast %34 : vector<16xf32> to vector<16x1xf32>
      %cst_25 = arith.constant 3.200000e+01 : f32
      %36 = vector.broadcast %cst_25 : f32 to vector<16x1xf32>
      %37 = arith.divf %35, %36 : vector<16x1xf32>
      %38 = vector.broadcast %30 : vector<16x1xf32> to vector<16x32xf32>
      %39 = arith.subf %26, %38 : vector<16x32xf32>
      %cst_26 = arith.constant 9.99999974E-6 : f32
      %40 = vector.broadcast %cst_26 : f32 to vector<16x1xf32>
      %41 = arith.addf %37, %40 : vector<16x1xf32>
      %42 = math.rsqrt %41 : vector<16x1xf32>
      %43 = vector.broadcast %42 : vector<16x1xf32> to vector<16x32xf32>
      %44 = arith.mulf %39, %43 : vector<16x32xf32>
      %c0_27 = arith.constant 0 : index
      %c0_28 = arith.constant 0 : index
      %45 = vector.load %arg7[%c0_27, %c0_28] : memref<1x32xf32, #tpu.memory_space<vmem>>, vector<1x32xf32>
      %46 = vector.broadcast %45 : vector<1x32xf32> to vector<16x32xf32>
      %47 = arith.mulf %44, %46 : vector<16x32xf32>
      %c0_29 = arith.constant 0 : index
      %c0_30 = arith.constant 0 : index
      %48 = vector.load %arg8[%c0_29, %c0_30] : memref<1x32xf32, #tpu.memory_space<vmem>>, vector<1x32xf32>
      %49 = vector.broadcast %48 : vector<1x32xf32> to vector<16x32xf32>
      %50 = arith.addf %47, %49 : vector<16x32xf32>
      %51 = arith.truncf %50 : vector<16x32xf32> to vector<16x32xbf16>
      %c0_31 = arith.constant 0 : index
      %c0_32 = arith.constant 0 : index
      %52 = vector.load %arg9[%c0_31, %c0_32] : memref<16x32xbf16, #tpu.memory_space<vmem>>, vector<16x32xbf16>
      tpu.vector_store %arg9[%c0_31, %c0_32], %51 {strides = array<i32>} : memref<16x32xbf16, #tpu.memory_space<vmem>>, vector<16x32xbf16>,
    } else {
    }
    return
  }
  func.func @transform_0(%arg0: i32, %arg1: i32) -> (i32, i32) {
    %c0_i32 = arith.constant 0 : i32
    %c0_i32_0 = arith.constant 0 : i32
    return %arg0, %c0_i32 : i32, i32
  }
  func.func @transform_1(%arg0: i32, %arg1: i32) -> (i32, i32) {
    %c0_i32 = arith.constant 0 : i32
    %c0_i32_0 = arith.constant 0 : i32
    return %c0_i32, %arg1 : i32, i32
  }
  func.func @transform_2(%arg0: i32, %arg1: i32) -> (i32, i32) {
    %c0_i32 = arith.constant 0 : i32
    %c0_i32_0 = arith.constant 0 : i32
    return %c0_i32, %arg1 : i32, i32
  }
  func.func @transform_3(%arg0: i32, %arg1: i32) -> (i32, i32) {
    %c0_i32 = arith.constant 0 : i32
    %c0_i32_0 = arith.constant 0 : i32
    return %arg1, %c0_i32 : i32, i32
  }
  func.func @transform_4(%arg0: i32, %arg1: i32) -> (i32, i32) {
    %c0_i32 = arith.constant 0 : i32
    %c0_i32_0 = arith.constant 0 : i32
    %c0_i32_1 = arith.constant 0 : i32
    return %c0_i32, %c0_i32_0 : i32, i32
  }
  func.func @transform_5(%arg0: i32, %arg1: i32) -> (i32, i32) {
    %c0_i32 = arith.constant 0 : i32
    %c0_i32_0 = arith.constant 0 : i32
    %c0_i32_1 = arith.constant 0 : i32
    return %c0_i32, %c0_i32_0 : i32, i32
  }
  func.func @transform_6(%arg0: i32, %arg1: i32) -> (i32, i32) {
    %c0_i32 = arith.constant 0 : i32
    %c0_i32_0 = arith.constant 0 : i32
    %c0_i32_1 = arith.constant 0 : i32
    return %c0_i32, %c0_i32_0 : i32, i32
  }
  func.func @transform_7(%arg0: i32, %arg1: i32) -> (i32, i32) {
    %c0_i32 = arith.constant 0 : i32
    %c0_i32_0 = arith.constant 0 : i32
    return %arg0, %c0_i32 : i32, i32
  }
}

module attributes {stable_mosaic.version = 11 : i64} {
  func.func @_flash_cross_kernel(%arg0: i32, %arg1: i32, %arg2: i32, %arg3: i32, %arg4: memref<1x8x128xbf16, #tpu.memory_space<vmem>>, %arg5: memref<1x8x128xbf16, #tpu.memory_space<vmem>>, %arg6: memref<1x8x128xbf16, #tpu.memory_space<vmem>>, %arg7: memref<1x8x128xbf16, #tpu.memory_space<vmem>>, %arg8: memref<8x1xf32, #tpu.memory_space<vmem>>, %arg9: memref<8x1xf32, #tpu.memory_space<vmem>>, %arg10: memref<8x128xf32, #tpu.memory_space<vmem>>) attributes {dimension_semantics = [#tpu.dimension_semantics<parallel>, #tpu.dimension_semantics<parallel>, #tpu.dimension_semantics<parallel>, #tpu.dimension_semantics<arbitrary>], iteration_bounds = array<i64: 2, 4, 1, 1>, scalar_prefetch = 0 : i64, scratch_operands = 3 : i64, tpu.core_type = #tpu.core_type<tc>, window_params = [{transform_indices = @transform_0, window_bounds = array<i64: 1, 8, 128>}, {transform_indices = @transform_1, window_bounds = array<i64: 1, 8, 128>}, {transform_indices = @transform_2, window_bounds = array<i64: 1, 8, 128>}, {transform_indices = @transform_3, window_bounds = array<i64: 1, 8, 128>}]} {
    %c0_i32 = arith.constant 0 : i32
    %0 = arith.cmpi eq, %arg3, %c0_i32 : i32
    %1 = arith.extui %0 : i1 to i32
    %c0_i32_0 = arith.constant 0 : i32
    %2 = arith.cmpi ne, %1, %c0_i32_0 : i32
    scf.if %2 {
      %cst_26 = arith.constant 0xFF800000 : f32
      %36 = vector.broadcast %cst_26 : f32 to vector<8x1xf32>
      %c0_27 = arith.constant 0 : index
      %c0_28 = arith.constant 0 : index
      %37 = vector.load %arg8[%c0_27, %c0_28] : memref<8x1xf32, #tpu.memory_space<vmem>>, vector<8x1xf32>
      tpu.vector_store %arg8[%c0_27, %c0_28], %36 {strides = array<i32>} : memref<8x1xf32, #tpu.memory_space<vmem>>, vector<8x1xf32>,
      %cst_29 = arith.constant 0.000000e+00 : f32
      %38 = vector.broadcast %cst_29 : f32 to vector<8x1xf32>
      %c0_30 = arith.constant 0 : index
      %c0_31 = arith.constant 0 : index
      %39 = vector.load %arg9[%c0_30, %c0_31] : memref<8x1xf32, #tpu.memory_space<vmem>>, vector<8x1xf32>
      tpu.vector_store %arg9[%c0_30, %c0_31], %38 {strides = array<i32>} : memref<8x1xf32, #tpu.memory_space<vmem>>, vector<8x1xf32>,
      %cst_32 = arith.constant 0.000000e+00 : f32
      %40 = vector.broadcast %cst_32 : f32 to vector<8x128xf32>
      %c0_33 = arith.constant 0 : index
      %c0_34 = arith.constant 0 : index
      %41 = vector.load %arg10[%c0_33, %c0_34] : memref<8x128xf32, #tpu.memory_space<vmem>>, vector<8x128xf32>
      tpu.vector_store %arg10[%c0_33, %c0_34], %40 {strides = array<i32>} : memref<8x128xf32, #tpu.memory_space<vmem>>, vector<8x128xf32>,
    } else {
    }
    %c0 = arith.constant 0 : index
    %c0_1 = arith.constant 0 : index
    %c0_2 = arith.constant 0 : index
    %3 = vector.load %arg4[%c0, %c0_1, %c0_2] : memref<1x8x128xbf16, #tpu.memory_space<vmem>>, vector<1x8x128xbf16>
    %4 = vector.shape_cast %3 : vector<1x8x128xbf16> to vector<8x128xbf16>
    %c0_3 = arith.constant 0 : index
    %c0_4 = arith.constant 0 : index
    %c0_5 = arith.constant 0 : index
    %5 = vector.load %arg5[%c0_3, %c0_4, %c0_5] : memref<1x8x128xbf16, #tpu.memory_space<vmem>>, vector<1x8x128xbf16>
    %6 = vector.shape_cast %5 : vector<1x8x128xbf16> to vector<8x128xbf16>
    %c0_6 = arith.constant 0 : index
    %c0_7 = arith.constant 0 : index
    %c0_8 = arith.constant 0 : index
    %7 = vector.load %arg6[%c0_6, %c0_7, %c0_8] : memref<1x8x128xbf16, #tpu.memory_space<vmem>>, vector<1x8x128xbf16>
    %8 = vector.shape_cast %7 : vector<1x8x128xbf16> to vector<8x128xbf16>
    %cst = arith.constant dense<0.000000e+00> : vector<8x8xf32>
    %9 = tpu.matmul %4, %6, %cst {dimension_numbers = #tpu.dot_dimension_numbers<[1], [1], [0], [0], [0, 0, 1, 0], [], []>} : vector<8x128xbf16>, vector<8x128xbf16>, vector<8x8xf32> -> vector<8x8xf32>
    %c0_9 = arith.constant 0 : index
    %c0_10 = arith.constant 0 : index
    %10 = vector.load %arg8[%c0_9, %c0_10] : memref<8x1xf32, #tpu.memory_space<vmem>>, vector<8x1xf32>
    %cst_11 = arith.constant dense<0xFF800000> : vector<8xf32>
    %11 = vector.multi_reduction <maximumf>, %9, %cst_11 [1] : vector<8x8xf32> to vector<8xf32>
    %12 = vector.shape_cast %11 : vector<8xf32> to vector<8x1xf32>
    %13 = arith.maximumf %10, %12 : vector<8x1xf32>
    %14 = arith.subf %10, %13 : vector<8x1xf32>
    %15 = math.exp %14 : vector<8x1xf32>
    %16 = vector.broadcast %13 : vector<8x1xf32> to vector<8x8xf32>
    %17 = arith.subf %9, %16 : vector<8x8xf32>
    %18 = math.exp %17 : vector<8x8xf32>
    %c0_12 = arith.constant 0 : index
    %c0_13 = arith.constant 0 : index
    %19 = vector.load %arg9[%c0_12, %c0_13] : memref<8x1xf32, #tpu.memory_space<vmem>>, vector<8x1xf32>
    %20 = arith.mulf %15, %19 : vector<8x1xf32>
    %cst_14 = arith.constant dense<0.000000e+00> : vector<8xf32>
    %21 = vector.multi_reduction <add>, %18, %cst_14 [1] : vector<8x8xf32> to vector<8xf32>
    %22 = vector.shape_cast %21 : vector<8xf32> to vector<8x1xf32>
    %23 = arith.addf %20, %22 : vector<8x1xf32>
    %c0_15 = arith.constant 0 : index
    %c0_16 = arith.constant 0 : index
    %24 = vector.load %arg9[%c0_15, %c0_16] : memref<8x1xf32, #tpu.memory_space<vmem>>, vector<8x1xf32>
    tpu.vector_store %arg9[%c0_15, %c0_16], %23 {strides = array<i32>} : memref<8x1xf32, #tpu.memory_space<vmem>>, vector<8x1xf32>,
    %c0_17 = arith.constant 0 : index
    %c0_18 = arith.constant 0 : index
    %25 = vector.load %arg10[%c0_17, %c0_18] : memref<8x128xf32, #tpu.memory_space<vmem>>, vector<8x128xf32>
    %26 = vector.broadcast %15 : vector<8x1xf32> to vector<8x128xf32>
    %27 = arith.mulf %26, %25 : vector<8x128xf32>
    %28 = arith.truncf %18 : vector<8x8xf32> to vector<8x8xbf16>
    %cst_19 = arith.constant dense<0.000000e+00> : vector<8x128xf32>
    %29 = tpu.matmul %28, %8, %cst_19 {dimension_numbers = #tpu.dot_dimension_numbers<[1], [0], [0], [1], [0, 0, 1, 1], [], []>} : vector<8x8xbf16>, vector<8x128xbf16>, vector<8x128xf32> -> vector<8x128xf32>
    %30 = arith.addf %27, %29 : vector<8x128xf32>
    %c0_20 = arith.constant 0 : index
    %c0_21 = arith.constant 0 : index
    %31 = vector.load %arg10[%c0_20, %c0_21] : memref<8x128xf32, #tpu.memory_space<vmem>>, vector<8x128xf32>
    tpu.vector_store %arg10[%c0_20, %c0_21], %30 {strides = array<i32>} : memref<8x128xf32, #tpu.memory_space<vmem>>, vector<8x128xf32>,
    %c0_22 = arith.constant 0 : index
    %c0_23 = arith.constant 0 : index
    %32 = vector.load %arg8[%c0_22, %c0_23] : memref<8x1xf32, #tpu.memory_space<vmem>>, vector<8x1xf32>
    tpu.vector_store %arg8[%c0_22, %c0_23], %13 {strides = array<i32>} : memref<8x1xf32, #tpu.memory_space<vmem>>, vector<8x1xf32>,
    %c0_i32_24 = arith.constant 0 : i32
    %33 = arith.cmpi eq, %arg3, %c0_i32_24 : i32
    %34 = arith.extui %33 : i1 to i32
    %c0_i32_25 = arith.constant 0 : i32
    %35 = arith.cmpi ne, %34, %c0_i32_25 : i32
    scf.if %35 {
      %c0_26 = arith.constant 0 : index
      %c0_27 = arith.constant 0 : index
      %36 = vector.load %arg10[%c0_26, %c0_27] : memref<8x128xf32, #tpu.memory_space<vmem>>, vector<8x128xf32>
      %c0_28 = arith.constant 0 : index
      %c0_29 = arith.constant 0 : index
      %37 = vector.load %arg9[%c0_28, %c0_29] : memref<8x1xf32, #tpu.memory_space<vmem>>, vector<8x1xf32>
      %38 = tpu.reciprocal %37 {approx = true} : vector<8x1xf32> -> vector<8x1xf32>
      %39 = vector.broadcast %38 : vector<8x1xf32> to vector<8x128xf32>
      %40 = arith.mulf %36, %39 : vector<8x128xf32>
      %41 = arith.truncf %40 : vector<8x128xf32> to vector<8x128xbf16>
      %c0_30 = arith.constant 0 : index
      %c0_31 = arith.constant 0 : index
      %c0_32 = arith.constant 0 : index
      %42 = vector.load %arg7[%c0_30, %c0_31, %c0_32] : memref<1x8x128xbf16, #tpu.memory_space<vmem>>, vector<1x8x128xbf16>
      %43 = vector.shape_cast %42 : vector<1x8x128xbf16> to vector<8x128xbf16>
      %44 = vector.shape_cast %41 : vector<8x128xbf16> to vector<1x8x128xbf16>
      tpu.vector_store %arg7[%c0_30, %c0_31, %c0_32], %44 {strides = array<i32>} : memref<1x8x128xbf16, #tpu.memory_space<vmem>>, vector<1x8x128xbf16>,
    } else {
    }
    return
  }
  func.func @transform_0(%arg0: i32, %arg1: i32, %arg2: i32, %arg3: i32) -> (i32, i32, i32) {
    %c0_i32 = arith.constant 0 : i32
    return %arg0, %arg2, %arg1 : i32, i32, i32
  }
  func.func @transform_1(%arg0: i32, %arg1: i32, %arg2: i32, %arg3: i32) -> (i32, i32, i32) {
    %c0_i32 = arith.constant 0 : i32
    return %arg0, %arg3, %arg1 : i32, i32, i32
  }
  func.func @transform_2(%arg0: i32, %arg1: i32, %arg2: i32, %arg3: i32) -> (i32, i32, i32) {
    %c0_i32 = arith.constant 0 : i32
    return %arg0, %arg3, %arg1 : i32, i32, i32
  }
  func.func @transform_3(%arg0: i32, %arg1: i32, %arg2: i32, %arg3: i32) -> (i32, i32, i32) {
    %c0_i32 = arith.constant 0 : i32
    return %arg0, %arg2, %arg1 : i32, i32, i32
  }
}

module attributes {stable_mosaic.version = 11 : i64} {
  func.func @_fused_linear_kernel(%arg0: i32, %arg1: i32, %arg2: memref<16x32xbf16, #tpu.memory_space<vmem>>, %arg3: memref<32x512xbf16, #tpu.memory_space<vmem>>, %arg4: memref<32x512xbf16, #tpu.memory_space<vmem>>, %arg5: memref<1x512xf32, #tpu.memory_space<vmem>>, %arg6: memref<1x512xf32, #tpu.memory_space<vmem>>, %arg7: memref<16x512xbf16, #tpu.memory_space<vmem>>, %arg8: memref<16x512xbf16, #tpu.memory_space<vmem>>) attributes {dimension_semantics = [#tpu.dimension_semantics<parallel>, #tpu.dimension_semantics<parallel>], iteration_bounds = array<i64: 1, 1>, scalar_prefetch = 0 : i64, scratch_operands = 0 : i64, tpu.core_type = #tpu.core_type<tc>, window_params = [{transform_indices = @transform_0, window_bounds = array<i64: 16, 32>}, {transform_indices = @transform_1, window_bounds = array<i64: 32, 512>}, {transform_indices = @transform_2, window_bounds = array<i64: 32, 512>}, {transform_indices = @transform_3, window_bounds = array<i64: 1, 512>}, {transform_indices = @transform_4, window_bounds = array<i64: 1, 512>}, {transform_indices = @transform_5, window_bounds = array<i64: 16, 512>}, {transform_indices = @transform_6, window_bounds = array<i64: 16, 512>}]} {
    %c0 = arith.constant 0 : index
    %c0_0 = arith.constant 0 : index
    %0 = vector.load %arg2[%c0, %c0_0] : memref<16x32xbf16, #tpu.memory_space<vmem>>, vector<16x32xbf16>
    %c0_1 = arith.constant 0 : index
    %c0_2 = arith.constant 0 : index
    %1 = vector.load %arg3[%c0_1, %c0_2] : memref<32x512xbf16, #tpu.memory_space<vmem>>, vector<32x512xbf16>
    %c0_3 = arith.constant 0 : index
    %c0_4 = arith.constant 0 : index
    %2 = vector.load %arg5[%c0_3, %c0_4] : memref<1x512xf32, #tpu.memory_space<vmem>>, vector<1x512xf32>
    %cst = arith.constant dense<0.000000e+00> : vector<16x512xf32>
    %3 = tpu.matmul %0, %1, %cst {dimension_numbers = #tpu.dot_dimension_numbers<[1], [0], [0], [1], [0, 0, 1, 1], [], []>} : vector<16x32xbf16>, vector<32x512xbf16>, vector<16x512xf32> -> vector<16x512xf32>
    %4 = vector.broadcast %2 : vector<1x512xf32> to vector<16x512xf32>
    %5 = arith.addf %3, %4 : vector<16x512xf32>
    %6 = arith.truncf %5 : vector<16x512xf32> to vector<16x512xbf16>
    %c0_5 = arith.constant 0 : index
    %c0_6 = arith.constant 0 : index
    %7 = vector.load %arg7[%c0_5, %c0_6] : memref<16x512xbf16, #tpu.memory_space<vmem>>, vector<16x512xbf16>
    tpu.vector_store %arg7[%c0_5, %c0_6], %6 {strides = array<i32>} : memref<16x512xbf16, #tpu.memory_space<vmem>>, vector<16x512xbf16>,
    %c0_7 = arith.constant 0 : index
    %c0_8 = arith.constant 0 : index
    %8 = vector.load %arg4[%c0_7, %c0_8] : memref<32x512xbf16, #tpu.memory_space<vmem>>, vector<32x512xbf16>
    %c0_9 = arith.constant 0 : index
    %c0_10 = arith.constant 0 : index
    %9 = vector.load %arg6[%c0_9, %c0_10] : memref<1x512xf32, #tpu.memory_space<vmem>>, vector<1x512xf32>
    %cst_11 = arith.constant dense<0.000000e+00> : vector<16x512xf32>
    %10 = tpu.matmul %0, %8, %cst_11 {dimension_numbers = #tpu.dot_dimension_numbers<[1], [0], [0], [1], [0, 0, 1, 1], [], []>} : vector<16x32xbf16>, vector<32x512xbf16>, vector<16x512xf32> -> vector<16x512xf32>
    %11 = vector.broadcast %9 : vector<1x512xf32> to vector<16x512xf32>
    %12 = arith.addf %10, %11 : vector<16x512xf32>
    %13 = arith.truncf %12 : vector<16x512xf32> to vector<16x512xbf16>
    %c0_12 = arith.constant 0 : index
    %c0_13 = arith.constant 0 : index
    %14 = vector.load %arg8[%c0_12, %c0_13] : memref<16x512xbf16, #tpu.memory_space<vmem>>, vector<16x512xbf16>
    tpu.vector_store %arg8[%c0_12, %c0_13], %13 {strides = array<i32>} : memref<16x512xbf16, #tpu.memory_space<vmem>>, vector<16x512xbf16>,
    return
  }
  func.func @transform_0(%arg0: i32, %arg1: i32) -> (i32, i32) {
    %c0_i32 = arith.constant 0 : i32
    %c0_i32_0 = arith.constant 0 : i32
    return %arg1, %c0_i32 : i32, i32
  }
  func.func @transform_1(%arg0: i32, %arg1: i32) -> (i32, i32) {
    %c0_i32 = arith.constant 0 : i32
    %c0_i32_0 = arith.constant 0 : i32
    return %c0_i32, %arg0 : i32, i32
  }
  func.func @transform_2(%arg0: i32, %arg1: i32) -> (i32, i32) {
    %c0_i32 = arith.constant 0 : i32
    %c0_i32_0 = arith.constant 0 : i32
    return %c0_i32, %arg0 : i32, i32
  }
  func.func @transform_3(%arg0: i32, %arg1: i32) -> (i32, i32) {
    %c0_i32 = arith.constant 0 : i32
    %c0_i32_0 = arith.constant 0 : i32
    return %c0_i32, %arg0 : i32, i32
  }
  func.func @transform_4(%arg0: i32, %arg1: i32) -> (i32, i32) {
    %c0_i32 = arith.constant 0 : i32
    %c0_i32_0 = arith.constant 0 : i32
    return %c0_i32, %arg0 : i32, i32
  }
  func.func @transform_5(%arg0: i32, %arg1: i32) -> (i32, i32) {
    %c0_i32 = arith.constant 0 : i32
    return %arg1, %arg0 : i32, i32
  }
  func.func @transform_6(%arg0: i32, %arg1: i32) -> (i32, i32) {
    %c0_i32 = arith.constant 0 : i32
    return %arg1, %arg0 : i32, i32
  }
}

module attributes {stable_mosaic.version = 11 : i64} {
  func.func @_fused_linear_kernel(%arg0: i32, %arg1: i32, %arg2: memref<16x32xbf16, #tpu.memory_space<vmem>>, %arg3: memref<32x50xbf16, #tpu.memory_space<vmem>>, %arg4: memref<1x50xf32, #tpu.memory_space<vmem>>, %arg5: memref<16x50xf32, #tpu.memory_space<vmem>>) attributes {dimension_semantics = [#tpu.dimension_semantics<parallel>, #tpu.dimension_semantics<parallel>], iteration_bounds = array<i64: 1, 1>, scalar_prefetch = 0 : i64, scratch_operands = 0 : i64, tpu.core_type = #tpu.core_type<tc>, window_params = [{transform_indices = @transform_0, window_bounds = array<i64: 16, 32>}, {transform_indices = @transform_1, window_bounds = array<i64: 32, 50>}, {transform_indices = @transform_2, window_bounds = array<i64: 1, 50>}, {transform_indices = @transform_3, window_bounds = array<i64: 16, 50>}]} {
    %c0 = arith.constant 0 : index
    %c0_0 = arith.constant 0 : index
    %0 = vector.load %arg2[%c0, %c0_0] : memref<16x32xbf16, #tpu.memory_space<vmem>>, vector<16x32xbf16>
    %c0_1 = arith.constant 0 : index
    %c0_2 = arith.constant 0 : index
    %1 = vector.load %arg3[%c0_1, %c0_2] : memref<32x50xbf16, #tpu.memory_space<vmem>>, vector<32x50xbf16>
    %c0_3 = arith.constant 0 : index
    %c0_4 = arith.constant 0 : index
    %2 = vector.load %arg4[%c0_3, %c0_4] : memref<1x50xf32, #tpu.memory_space<vmem>>, vector<1x50xf32>
    %cst = arith.constant dense<0.000000e+00> : vector<16x50xf32>
    %3 = tpu.matmul %0, %1, %cst {dimension_numbers = #tpu.dot_dimension_numbers<[1], [0], [0], [1], [0, 0, 1, 1], [], []>} : vector<16x32xbf16>, vector<32x50xbf16>, vector<16x50xf32> -> vector<16x50xf32>
    %4 = vector.broadcast %2 : vector<1x50xf32> to vector<16x50xf32>
    %5 = arith.addf %3, %4 : vector<16x50xf32>
    %c0_5 = arith.constant 0 : index
    %c0_6 = arith.constant 0 : index
    %6 = vector.load %arg5[%c0_5, %c0_6] : memref<16x50xf32, #tpu.memory_space<vmem>>, vector<16x50xf32>
    tpu.vector_store %arg5[%c0_5, %c0_6], %5 {strides = array<i32>} : memref<16x50xf32, #tpu.memory_space<vmem>>, vector<16x50xf32>,
    return
  }
  func.func @transform_0(%arg0: i32, %arg1: i32) -> (i32, i32) {
    %c0_i32 = arith.constant 0 : i32
    %c0_i32_0 = arith.constant 0 : i32
    return %arg1, %c0_i32 : i32, i32
  }
  func.func @transform_1(%arg0: i32, %arg1: i32) -> (i32, i32) {
    %c0_i32 = arith.constant 0 : i32
    %c0_i32_0 = arith.constant 0 : i32
    return %c0_i32, %arg0 : i32, i32
  }
  func.func @transform_2(%arg0: i32, %arg1: i32) -> (i32, i32) {
    %c0_i32 = arith.constant 0 : i32
    %c0_i32_0 = arith.constant 0 : i32
    return %c0_i32, %arg0 : i32, i32
  }
  func.func @transform_3(%arg0: i32, %arg1: i32) -> (i32, i32) {
    %c0_i32 = arith.constant 0 : i32
    return %arg1, %arg0 : i32, i32
  }
}

</mosaic_0001>

<llo_original>
// kernel: decoder_transformer_forward.24
$region0: #{decoder_transformer_forward.24}
  #allocation0 [shape = 'u32[]', space=smem, size = 0x4, offset = 0x4, fixed_abs, tag = 'smem constant byte address 0x4 - core index']
  #allocation1 [shape = 'u32[144,128]{1,0:T(1,128)}', space=vmem, size = 0x12000, scoped, tag = 'internal scratch']
  %s0 = inlined_call_operand.vmem [shape: bf16[16,32], index: 0, kind: input, shape index: {}]
  %s1 = inlined_call_operand.vmem [shape: bf16[16,32], index: 1, kind: input, shape index: {}]
  %s2 = inlined_call_operand.vmem [shape: f32[1,32], index: 2, kind: input, shape index: {}]
  %s3 = inlined_call_operand.vmem [shape: f32[1,32], index: 3, kind: input, shape index: {}]
  %s4 = inlined_call_operand.vmem [shape: bf16[16,32], index: 4, kind: output, shape index: {}]
  %s5 = sld [smem:[#allocation0]]
  $region26: #{decoder_transformer_forward.24} parent=0
    _
  %s7 = ssub.s32 1, %s5
  %s8 = scalar_select 0, %s7, %s5
  // Predicated region
  $region2: #{decoder_transformer_forward.24} parent=0 // pred_check
    _
  $region3: #{decoder_transformer_forward.24} parent=0 // pred_check_branch
    %10 = sbr.rel (0) target = $region5
  $region4: #{decoder_transformer_forward.24} parent=0 // pred_region
    _
  $region5: #{decoder_transformer_forward.24} parent=0 // pred_fallthru
    _
  // Predicated region
  $region6: #{decoder_transformer_forward.24} parent=0 // pred_check
    _
  $region7: #{decoder_transformer_forward.24} parent=0 // pred_check_branch
    %12 = sbr.rel (0) target = $region9
  $region8: #{decoder_transformer_forward.24} parent=0 // pred_region
    _
  $region9: #{decoder_transformer_forward.24} parent=0 // pred_fallthru
    _
  // Predicated region
  $region10: #{decoder_transformer_forward.24} parent=0 // pred_check
    _
  $region11: #{decoder_transformer_forward.24} parent=0 // pred_check_branch
    %14 = sbr.rel (0) target = $region13
  $region12: #{decoder_transformer_forward.24} parent=0 // pred_region
    _
  $region13: #{decoder_transformer_forward.24} parent=0 // pred_fallthru
    _
  // Predicated region
  $region14: #{decoder_transformer_forward.24} parent=0 // pred_check
    _
  $region15: #{decoder_transformer_forward.24} parent=0 // pred_check_branch
    %16 = sbr.rel (0) target = $region17
  $region16: #{decoder_transformer_forward.24} parent=0 // pred_region
    _
  $region17: #{decoder_transformer_forward.24} parent=0 // pred_fallthru
    _
  %v17 = vld [vmem:[%s0] sm:$0xf]
  %v18 = vld [vmem:[%s0 + $0x4] sm:$0xf]
  %v19 = vunpack.c.l.bf16 %v17
  %v20 = vunpack.c.l.bf16 %v18
  %v21 = vld [vmem:[%s1] sm:$0xf]
  %v22 = vld [vmem:[%s1 + $0x4] sm:$0xf]
  %v23 = vunpack.c.l.bf16 %v21
  %v24 = vunpack.c.l.bf16 %v22
  %v25 = vadd.f32 %v19, %v23
  %v26 = vadd.f32 %v20, %v24
  %vm27 = vcmask 261120
  %v28 = vsel %vm27, %v25, 0.0
  %29 = vadd.xlane.f32.xlu0 %v28
  %v30 = vpop.xlane.xlu0 %29
  %v31 = vsel %vm27, %v26, 0.0
  %32 = vadd.xlane.f32.xlu0 %v31
  %v33 = vpop.xlane.xlu0 %32
  %v34 = vrcp.pop 32.0
  %v35 = vmul.f32 %v30, %v34
  %v36 = vmul.f32 %v33, %v34
  %v37 = vsub.f32 %v25, %v35
  %v38 = vsub.f32 %v26, %v36
  %v39 = vmul.f32 %v37, %v37
  %v40 = vmul.f32 %v38, %v38
  %v41 = vsel %vm27, %v39, 0.0
  %42 = vadd.xlane.f32.xlu0 %v41
  %v43 = vpop.xlane.xlu0 %42
  %v44 = vsel %vm27, %v40, 0.0
  %45 = vadd.xlane.f32.xlu0 %v44
  %v46 = vpop.xlane.xlu0 %45
  %v47 = vmul.f32 %v43, %v34
  %v48 = vmul.f32 %v46, %v34
  %v49 = vadd.f32 %v47, 1e-05
  %v50 = vadd.f32 %v48, 1e-05
  %v51 = vrsqrt.pop %v49
  %v52 = vrsqrt.pop %v50
  %v53 = vmul.f32 %v37, %v51
  %v54 = vmul.f32 %v38, %v52
  %v55 = vld [vmem:[%s2] sm:$0x1]
  %v57 = vlaneseq
  %v58 = vshrl.u32 %v57, 7
  %v59 = vsub.s32 0, %v58
  %v60 = vrot.slane %v55, %v59
  %v62 = vmul.f32 %v53, %v60
  %v63 = vmul.f32 %v54, %v60
  %v64 = vld [vmem:[%s3] sm:$0x1]
  %v66 = vlaneseq
  %v67 = vshrl.u32 %v66, 7
  %v68 = vsub.s32 0, %v67
  %v69 = vrot.slane %v64, %v68
  %v71 = vadd.f32 %v62, %v69
  %v72 = vadd.f32 %v63, %v69
  %v73 = vpack.c.bf16 %v72, %v71
  %v75 = vunpack.c.l.b16 %v73
  %v76 = vunpack.c.h.b16 %v73
  %v77 = vpack.c.b16 %v75, %v75
  %v78 = vpack.c.b16 %v76, %v76
  %vm81 = vcmask 257024
  %82 = vst.msk [vmem:[%s4] sm:$0xf] %vm81, %v77
  %83 = vst.msk [vmem:[%s4 + $0x4] sm:$0xf] %vm81, %v78
  // Predicated region
  $region18: #{decoder_transformer_forward.24} parent=0 // pred_check
    _
  $region19: #{decoder_transformer_forward.24} parent=0 // pred_check_branch
    %85 = sbr.rel (0) target = $region21
  $region20: #{decoder_transformer_forward.24} parent=0 // pred_region
    _
  $region21: #{decoder_transformer_forward.24} parent=0 // pred_fallthru
    _
  // Predicated region
  $region22: #{decoder_transformer_forward.24} parent=0 // pred_check
    _
  $region23: #{decoder_transformer_forward.24} parent=0 // pred_check_branch
    %87 = sbr.rel (0) target = $region25
  $region24: #{decoder_transformer_forward.24} parent=0 // pred_region
    _
  $region25: #{decoder_transformer_forward.24} parent=0 // pred_fallthru
    _

// kernel: decoder_transformer_forward.22
$region0: #{decoder_transformer_forward.22}
  #allocation0 [shape = 'u32[]', space=smem, size = 0x4, offset = 0x4, fixed_abs, tag = 'smem constant byte address 0x4 - core index']
  #allocation1 [shape = 'u32[144,128]{1,0:T(1,128)}', space=vmem, size = 0x12000, scoped, tag = 'internal scratch']
  #allocation2 [shape = 'f32[8,1]{1,0:T(8,128)}', space=vmem, size = 0x1000, scoped, tag = 'scratch operand']
  #allocation3 [shape = 'f32[8,1]{1,0:T(8,128)}', space=vmem, size = 0x1000, scoped, tag = 'scratch operand']
  #allocation4 [shape = 'f32[8,128]{1,0:T(8,128)}', space=vmem, size = 0x1000, scoped, tag = 'scratch operand']
  #allocation5 [shape = 's32[1]{0}', space=sflag, size = 0x4, scoped, tag = 'scoped memory for decoder_transformer_forward.22']
  #allocation6 [shape = 's32[1]{0:T(128)S(6)}', space=smem, size = 0x200, scoped, tag = 'prefetched SMEM operand 0']
  #allocation7 [shape = 's32[1]{0:T(128)S(6)}', space=smem, size = 0x200, scoped, tag = 'prefetched SMEM operand 1']
  %s0 = inlined_call_operand.<no memory space> [shape: s32[1], index: 0, kind: input, shape index: {}, may-alias: {0,1}]
  %s1 = inlined_call_operand.<no memory space> [shape: s32[1], index: 1, kind: input, shape index: {}, may-alias: {0,1}]
  %s2 = inlined_call_operand.vmem [shape: bf16[2,8,512], index: 2, kind: input, shape index: {}]
  %s3 = inlined_call_operand.vmem [shape: bf16[2,8,512], index: 3, kind: input, shape index: {}]
  %s4 = inlined_call_operand.vmem [shape: bf16[2,8,512], index: 4, kind: input, shape index: {}]
  %s5 = inlined_call_operand.vmem [shape: bf16[2,8,512], index: 5, kind: output, shape index: {}]
  %s6 = sld [smem:[#allocation0]]
  $region53: #{decoder_transformer_forward.22} parent=0
    _
  %s8 = ssub.s32 1, %s6
  %s9 = scalar_select 0, %s8, %s6
  %10 = sst [smem:[#allocation6]] %s0
  %11 = sst [smem:[#allocation7]] %s1
  loop: start=0, step=1, limit=10
  $region2: #{decoder_transformer_forward.22} parent=0 // loop_pre_header
    _
  $region3: #{decoder_transformer_forward.22} parent=0 // loop_header
    %s13 = sphi 0, %s17
    %p14 = scmp.ge.s32.totalorder %s13, 10
    %s20 = sphi 0, %s39
    %s21 = sphi 0, %s35
    %s22 = sphi 0, %s31
    %s23 = sphi 0, %s20
    %s24 = sphi 0, %s21
    %s25 = sphi 0, %s22
    %s26 = sphi 0, %s23
    %s27 = sphi 0, %s24
    %s28 = sphi 0, %s25
    %s48 = sphi 0, %s50
    %s51 = sphi 0, %s48
    %s52 = sphi 0, %s51
    %s68 = sphi 0, %s52
    %s80 = sphi 0, %s82
    %s83 = sphi 0, %s80
    %s84 = sphi 0, %s83
    %s100 = sphi 0, %s84
    %s112 = sphi 0, %s114
    %s115 = sphi 0, %s112
    %s116 = sphi 0, %s115
    %s132 = sphi 0, %s116
    %s144 = sphi 0, %s146
    %s147 = sphi 0, %s144
    %s148 = sphi 0, %s147
    %s164 = sphi 0, %s148
  $region4: #{decoder_transformer_forward.22} parent=0 // loop_header_branch
    %16 = sbr.rel (%p14) target = $region8
  $region5: #{decoder_transformer_forward.22} parent=0 // loop_body
    %s18 = ssub.s32 %s13, 1
    %s19 = ssub.s32 %s13, 2
    %s29 = sadd.s32 1, %s22
    %p30 = scmp.ge.s32.totalorder %s29, 1
    %s31 = scalar_select %p30, 0, %s29
    %s32 = sadd.s32 1, %s21
    %s33 = scalar_select %p30, %s32, %s21
    %p34 = scmp.ge.s32.totalorder %s33, 4
    %s35 = scalar_select %p34, 0, %s33
    %s36 = sadd.s32 1, %s20
    %s37 = scalar_select %p34, %s36, %s20
    %p38 = scmp.ge.s32.totalorder %s37, 2
    %s39 = scalar_select %p38, 0, %s37
    %s40 = sld [smem:[#allocation6 + %s22]]
    %s41 = sld [smem:[#allocation6 + %s31]]
    %s42 = ssub.s32 %s20, %s39
    %s43 = ssub.s32 %s40, %s41
    %s44 = sor.u32 %s42, %s43
    %s45 = ssub.s32 %s21, %s35
    %s46 = sor.u32 %s44, %s45
    %p47 = scmp.eq.s32.totalorder %s46, 0
    %s49 = sadd.s32 %s48, 1
    %s50 = scalar_select %p47, %s48, %s49
    %p53 = pneg %p47
    %p54 = scmp.eq.s32.totalorder %s13, 7
    %p55 = por %p53, %p54
    %p56 = scmp.ne.s32.totalorder %s48, %s51
    %p57 = scmp.eq.s32.totalorder %s13, 0
    %p58 = por %p56, %p57
    %p59 = scmp.ne.s32.totalorder %s48, %s51
    %p60 = scmp.eq.s32.totalorder %s18, 7
    %p61 = por %p59, %p60
    %p62 = scmp.ne.s32.totalorder %s51, %s52
    %p63 = scmp.eq.s32.totalorder %s18, 0
    %p64 = por %p62, %p63
    %p65 = scmp.ne.s32.totalorder %s51, %s52
    %p66 = scmp.eq.s32.totalorder %s19, 7
    %p67 = por %p65, %p66
    %p69 = scmp.ne.s32.totalorder %s52, %s68
    %p70 = scmp.eq.s32.totalorder %s19, 0
    %p71 = por %p69, %p70
    %s72 = sld [smem:[#allocation7 + %s22]]
    %s73 = sld [smem:[#allocation7 + %s31]]
    %s74 = ssub.s32 %s20, %s39
    %s75 = ssub.s32 %s72, %s73
    %s76 = sor.u32 %s74, %s75
    %s77 = ssub.s32 %s21, %s35
    %s78 = sor.u32 %s76, %s77
    %p79 = scmp.eq.s32.totalorder %s78, 0
    %s81 = sadd.s32 %s80, 1
    %s82 = scalar_select %p79, %s80, %s81
    %p85 = pneg %p79
    %p86 = scmp.eq.s32.totalorder %s13, 7
    %p87 = por %p85, %p86
    %p88 = scmp.ne.s32.totalorder %s80, %s83
    %p89 = scmp.eq.s32.totalorder %s13, 0
    %p90 = por %p88, %p89
    %p91 = scmp.ne.s32.totalorder %s80, %s83
    %p92 = scmp.eq.s32.totalorder %s18, 7
    %p93 = por %p91, %p92
    %p94 = scmp.ne.s32.totalorder %s83, %s84
    %p95 = scmp.eq.s32.totalorder %s18, 0
    %p96 = por %p94, %p95
    %p97 = scmp.ne.s32.totalorder %s83, %s84
    %p98 = scmp.eq.s32.totalorder %s19, 7
    %p99 = por %p97, %p98
    %p101 = scmp.ne.s32.totalorder %s84, %s100
    %p102 = scmp.eq.s32.totalorder %s19, 0
    %p103 = por %p101, %p102
    %s104 = sld [smem:[#allocation7 + %s22]]
    %s105 = sld [smem:[#allocation7 + %s31]]
    %s106 = ssub.s32 %s20, %s39
    %s107 = ssub.s32 %s104, %s105
    %s108 = sor.u32 %s106, %s107
    %s109 = ssub.s32 %s21, %s35
    %s110 = sor.u32 %s108, %s109
    %p111 = scmp.eq.s32.totalorder %s110, 0
    %s113 = sadd.s32 %s112, 1
    %s114 = scalar_select %p111, %s112, %s113
    %p117 = pneg %p111
    %p118 = scmp.eq.s32.totalorder %s13, 7
    %p119 = por %p117, %p118
    %p120 = scmp.ne.s32.totalorder %s112, %s115
    %p121 = scmp.eq.s32.totalorder %s13, 0
    %p122 = por %p120, %p121
    %p123 = scmp.ne.s32.totalorder %s112, %s115
    %p124 = scmp.eq.s32.totalorder %s18, 7
    %p125 = por %p123, %p124
    %p126 = scmp.ne.s32.totalorder %s115, %s116
    %p127 = scmp.eq.s32.totalorder %s18, 0
    %p128 = por %p126, %p127
    %p129 = scmp.ne.s32.totalorder %s115, %s116
    %p130 = scmp.eq.s32.totalorder %s19, 7
    %p131 = por %p129, %p130
    %p133 = scmp.ne.s32.totalorder %s116, %s132
    %p134 = scmp.eq.s32.totalorder %s19, 0
    %p135 = por %p133, %p134
    %s136 = sld [smem:[#allocation6 + %s22]]
    %s137 = sld [smem:[#allocation6 + %s31]]
    %s138 = ssub.s32 %s20, %s39
    %s139 = ssub.s32 %s136, %s137
    %s140 = sor.u32 %s138, %s139
    %s141 = ssub.s32 %s21, %s35
    %s142 = sor.u32 %s140, %s141
    %p143 = scmp.eq.s32.totalorder %s142, 0
    %s145 = sadd.s32 %s144, 1
    %s146 = scalar_select %p143, %s144, %s145
    %p149 = pneg %p143
    %p150 = scmp.eq.s32.totalorder %s13, 7
    %p151 = por %p149, %p150
    %p152 = scmp.ne.s32.totalorder %s144, %s147
    %p153 = scmp.eq.s32.totalorder %s13, 0
    %p154 = por %p152, %p153
    %p155 = scmp.ne.s32.totalorder %s144, %s147
    %p156 = scmp.eq.s32.totalorder %s18, 7
    %p157 = por %p155, %p156
    %p158 = scmp.ne.s32.totalorder %s147, %s148
    %p159 = scmp.eq.s32.totalorder %s18, 0
    %p160 = por %p158, %p159
    %p161 = scmp.ne.s32.totalorder %s147, %s148
    %p162 = scmp.eq.s32.totalorder %s19, 7
    %p163 = por %p161, %p162
    %p165 = scmp.ne.s32.totalorder %s148, %s164
    %p166 = scmp.eq.s32.totalorder %s19, 0
    %p167 = por %p165, %p166
    %p168 = scmp.le.s32.totalorder 1, %s13
    %p169 = scmp.lt.s32.totalorder %s13, 9
    %p170 = pnand %p168, %p169
    %p171 = pneg %p170
    // Predicated region
    $region9: #{decoder_transformer_forward.22} parent=5 // pred_check
      _
    $region10: #{decoder_transformer_forward.22} parent=5 // pred_check_branch
      %173 = sbr.rel (%p170) target = $region12
    $region11: #{decoder_transformer_forward.22} parent=5 // pred_region
      %s174 = ssub.s32 %s13, 1
    $region12: #{decoder_transformer_forward.22} parent=5 // pred_fallthru
      _
    %p175 = scmp.lt.s32.totalorder %s13, 8
    // Predicated region
    $region13: #{decoder_transformer_forward.22} parent=5 // pred_check
      %p176 = pneg %p175
    $region14: #{decoder_transformer_forward.22} parent=5 // pred_check_branch
      %178 = sbr.rel (%p176) target = $region16
    $region15: #{decoder_transformer_forward.22} parent=5 // pred_region
      // Predicated region
      $region17: #{decoder_transformer_forward.22} parent=15 // pred_check
        %p179 = pneg %p58
      $region18: #{decoder_transformer_forward.22} parent=15 // pred_check_branch
        %181 = sbr.rel (%p179) target = $region20
      $region19: #{decoder_transformer_forward.22} parent=15 // pred_region
        %s182 = sld [smem:[#allocation6 + %s22]]
        %p183 = scmp.lt.s32.totalorder %s20, 1
        %s184 = scalar_select %p183, %s20, 1
        %p185 = scmp.lt.s32.totalorder %s182, 0
        %s186 = scalar_select %p185, %s182, 0
        %p187 = scmp.lt.s32.totalorder %s21, 3
        %s188 = scalar_select %p187, %s21, 3
        %s189 = smul.addr %s186, 4
        %s190 = sadd.s32 %s188, %s189
        %s191 = smul.addr %s184, 4
        %s192 = sadd.s32 %s190, %s191
        %s193 = smul.addr %s192, 4
        %s194 = scalar_lea.vmem %s2, %s193
        %s195 = sld [smem:[#allocation6 + %s22]]
      $region20: #{decoder_transformer_forward.22} parent=15 // pred_fallthru
        _
      // Predicated region
      $region21: #{decoder_transformer_forward.22} parent=15 // pred_check
        %p196 = pneg %p90
      $region22: #{decoder_transformer_forward.22} parent=15 // pred_check_branch
        %198 = sbr.rel (%p196) target = $region24
      $region23: #{decoder_transformer_forward.22} parent=15 // pred_region
        %s199 = sld [smem:[#allocation7 + %s22]]
        %p200 = scmp.lt.s32.totalorder %s20, 1
        %s201 = scalar_select %p200, %s20, 1
        %p202 = scmp.lt.s32.totalorder %s199, 0
        %s203 = scalar_select %p202, %s199, 0
        %p204 = scmp.lt.s32.totalorder %s21, 3
        %s205 = scalar_select %p204, %s21, 3
        %s206 = smul.addr %s203, 4
        %s207 = sadd.s32 %s205, %s206
        %s208 = smul.addr %s201, 4
        %s209 = sadd.s32 %s207, %s208
        %s210 = smul.addr %s209, 4
        %s211 = scalar_lea.vmem %s3, %s210
        %s212 = sld [smem:[#allocation7 + %s22]]
      $region24: #{decoder_transformer_forward.22} parent=15 // pred_fallthru
        _
      // Predicated region
      $region25: #{decoder_transformer_forward.22} parent=15 // pred_check
        %p213 = pneg %p122
      $region26: #{decoder_transformer_forward.22} parent=15 // pred_check_branch
        %215 = sbr.rel (%p213) target = $region28
      $region27: #{decoder_transformer_forward.22} parent=15 // pred_region
        %s216 = sld [smem:[#allocation7 + %s22]]
        %p217 = scmp.lt.s32.totalorder %s20, 1
        %s218 = scalar_select %p217, %s20, 1
        %p219 = scmp.lt.s32.totalorder %s216, 0
        %s220 = scalar_select %p219, %s216, 0
        %p221 = scmp.lt.s32.totalorder %s21, 3
        %s222 = scalar_select %p221, %s21, 3
        %s223 = smul.addr %s220, 4
        %s224 = sadd.s32 %s222, %s223
        %s225 = smul.addr %s218, 4
        %s226 = sadd.s32 %s224, %s225
        %s227 = smul.addr %s226, 4
        %s228 = scalar_lea.vmem %s4, %s227
        %s229 = sld [smem:[#allocation7 + %s22]]
      $region28: #{decoder_transformer_forward.22} parent=15 // pred_fallthru
        _
    $region16: #{decoder_transformer_forward.22} parent=5 // pred_fallthru
      _
    %p230 = scmp.le.s32.totalorder 1, %s13
    %p231 = scmp.lt.s32.totalorder %s13, 9
    %p232 = pnand %p230, %p231
    %p233 = pneg %p232
    // Predicated region
    $region29: #{decoder_transformer_forward.22} parent=5 // pred_check
      _
    $region30: #{decoder_transformer_forward.22} parent=5 // pred_check_branch
      %235 = sbr.rel (%p232) target = $region32
    $region31: #{decoder_transformer_forward.22} parent=5 // pred_region
      %s236 = ssub.s32 %s13, 1
      %s237 = sld [smem:[#allocation6 + %s25]]
      %p238 = scmp.lt.s32.totalorder %s23, 1
      %s239 = scalar_select %p238, %s23, 1
      %p240 = scmp.lt.s32.totalorder %s237, 0
      %s241 = scalar_select %p240, %s237, 0
      %p242 = scmp.lt.s32.totalorder %s24, 3
      %s243 = scalar_select %p242, %s24, 3
      %s244 = smul.addr %s241, 4
      %s245 = sadd.s32 %s243, %s244
      %s246 = smul.addr %s239, 4
      %s247 = sadd.s32 %s245, %s246
      %s248 = smul.addr %s247, 4
      %s249 = scalar_lea.vmem %s2, %s248
      %p250 = pneg %p64
      %p251 = pneg %p61
      %s252 = sld [smem:[#allocation7 + %s25]]
      %p253 = scmp.lt.s32.totalorder %s23, 1
      %s254 = scalar_select %p253, %s23, 1
      %p255 = scmp.lt.s32.totalorder %s252, 0
      %s256 = scalar_select %p255, %s252, 0
      %p257 = scmp.lt.s32.totalorder %s24, 3
      %s258 = scalar_select %p257, %s24, 3
      %s259 = smul.addr %s256, 4
      %s260 = sadd.s32 %s258, %s259
      %s261 = smul.addr %s254, 4
      %s262 = sadd.s32 %s260, %s261
      %s263 = smul.addr %s262, 4
      %s264 = scalar_lea.vmem %s3, %s263
      %p265 = pneg %p96
      %p266 = pneg %p93
      %s267 = sld [smem:[#allocation7 + %s25]]
      %p268 = scmp.lt.s32.totalorder %s23, 1
      %s269 = scalar_select %p268, %s23, 1
      %p270 = scmp.lt.s32.totalorder %s267, 0
      %s271 = scalar_select %p270, %s267, 0
      %p272 = scmp.lt.s32.totalorder %s24, 3
      %s273 = scalar_select %p272, %s24, 3
      %s274 = smul.addr %s271, 4
      %s275 = sadd.s32 %s273, %s274
      %s276 = smul.addr %s269, 4
      %s277 = sadd.s32 %s275, %s276
      %s278 = smul.addr %s277, 4
      %s279 = scalar_lea.vmem %s4, %s278
      %p280 = pneg %p128
      %p281 = pneg %p125
      %p282 = pneg %p160
      %p283 = pneg %p157
      %s284 = sld [smem:[#allocation6 + %s25]]
      %p285 = scmp.lt.s32.totalorder %s23, 1
      %s286 = scalar_select %p285, %s23, 1
      %p287 = scmp.lt.s32.totalorder %s284, 0
      %s288 = scalar_select %p287, %s284, 0
      %p289 = scmp.lt.s32.totalorder %s24, 3
      %s290 = scalar_select %p289, %s24, 3
      %s291 = smul.addr %s288, 4
      %s292 = sadd.s32 %s290, %s291
      %s293 = smul.addr %s286, 4
      %s294 = sadd.s32 %s292, %s293
      %s295 = smul.addr %s294, 4
      %s296 = scalar_lea.vmem %s5, %s295
      %s297 = sld [smem:[#allocation6 + %s25]]
      %p298 = scmp.lt.s32.totalorder %s23, 1
      %s299 = scalar_select %p298, %s23, 1
      %p300 = scmp.lt.s32.totalorder %s297, 0
      %s301 = scalar_select %p300, %s297, 0
      %p302 = scmp.lt.s32.totalorder %s24, 3
      %s303 = scalar_select %p302, %s24, 3
      %s304 = smul.addr %s301, 4
      %s305 = sadd.s32 %s303, %s304
      %s306 = smul.addr %s299, 4
      %s307 = sadd.s32 %s305, %s306
      %s308 = smul.addr %s307, 4
      %s309 = scalar_lea.vmem %s2, %s308
      %s310 = sld [smem:[#allocation6 + %s25]]
      %s311 = sld [smem:[#allocation7 + %s25]]
      %p312 = scmp.lt.s32.totalorder %s23, 1
      %s313 = scalar_select %p312, %s23, 1
      %p314 = scmp.lt.s32.totalorder %s311, 0
      %s315 = scalar_select %p314, %s311, 0
      %p316 = scmp.lt.s32.totalorder %s24, 3
      %s317 = scalar_select %p316, %s24, 3
      %s318 = smul.addr %s315, 4
      %s319 = sadd.s32 %s317, %s318
      %s320 = smul.addr %s313, 4
      %s321 = sadd.s32 %s319, %s320
      %s322 = smul.addr %s321, 4
      %s323 = scalar_lea.vmem %s3, %s322
      %s324 = sld [smem:[#allocation7 + %s25]]
      %s325 = sld [smem:[#allocation7 + %s25]]
      %p326 = scmp.lt.s32.totalorder %s23, 1
      %s327 = scalar_select %p326, %s23, 1
      %p328 = scmp.lt.s32.totalorder %s325, 0
      %s329 = scalar_select %p328, %s325, 0
      %p330 = scmp.lt.s32.totalorder %s24, 3
      %s331 = scalar_select %p330, %s24, 3
      %s332 = smul.addr %s329, 4
      %s333 = sadd.s32 %s331, %s332
      %s334 = smul.addr %s327, 4
      %s335 = sadd.s32 %s333, %s334
      %s336 = smul.addr %s335, 4
      %s337 = scalar_lea.vmem %s4, %s336
      %s338 = sld [smem:[#allocation7 + %s25]]
      %s339 = sld [smem:[#allocation6 + %s25]]
      %p340 = scmp.lt.s32.totalorder %s23, 1
      %s341 = scalar_select %p340, %s23, 1
      %p342 = scmp.lt.s32.totalorder %s339, 0
      %s343 = scalar_select %p342, %s339, 0
      %p344 = scmp.lt.s32.totalorder %s24, 3
      %s345 = scalar_select %p344, %s24, 3
      %s346 = smul.addr %s343, 4
      %s347 = sadd.s32 %s345, %s346
      %s348 = smul.addr %s341, 4
      %s349 = sadd.s32 %s347, %s348
      %s350 = smul.addr %s349, 4
      %s351 = scalar_lea.vmem %s5, %s350
      %s352 = sld [smem:[#allocation6 + %s25]]
      %s354 = sld [smem:[#allocation6 + %s25]]
      %s355 = sld [smem:[#allocation7 + %s25]]
      %p356 = scmp.eq.s32.totalorder %s355, 0
      // Predicated region
      $region33: #{decoder_transformer_forward.22} parent=31 // pred_check
        %p357 = pneg %p356
      $region34: #{decoder_transformer_forward.22} parent=31 // pred_check_branch
        %359 = sbr.rel (%p357) target = $region36
      $region35: #{decoder_transformer_forward.22} parent=31 // pred_region
        %vm360 = vcmask 7168
        %361 = vst.msk [vmem:[#allocation2] sm:$0xff] %vm360, -inf
        %362 = vst.msk [vmem:[#allocation3] sm:$0xff] %vm360, 0.0
        %363 = vst [vmem:[#allocation4] sm:$0xff] 0.0
      $region36: #{decoder_transformer_forward.22} parent=31 // pred_fallthru
        _
      %v364 = vld [vmem:[%s309] sm:$0xf]
      %v365 = vld [vmem:[%s323] sm:$0xf]
      %v366 = vld [vmem:[%s337] sm:$0xf]
      %367 = vmatprep.subr.bf16.mxu0 0
      %368 = vmatpush1.bf16.xpose.msra.mxu0 %v365
      %369 = vmatprep.subr.bf16.mxu0 0
      %370 = vmatpush1.bf16.xpose.msra.mxu0 0
      %371 = vmatprep.subr.bf16.mxu0 0
      %372 = vmatpush1.bf16.xpose.msra.mxu0 0
      %373 = vmatprep.subr.bf16.mxu0 0
      %374 = vmatpush1.bf16.xpose.msra.mxu0 0
      %375 = vmatprep.subr.bf16.mxu0 0
      %376 = vmatpush1.bf16.xpose.msra.mxu0 0
      %377 = vmatprep.subr.bf16.mxu0 0
      %378 = vmatpush1.bf16.xpose.msra.mxu0 0
      %379 = vmatprep.subr.bf16.mxu0 0
      %380 = vmatpush1.bf16.xpose.msra.mxu0 0
      %381 = vmatprep.subr.bf16.mxu0 0
      %382 = vmatpush1.bf16.xpose.msra.mxu0 0
      %383 = vmatprep.subr.bf16.mxu0 0
      %384 = vmatpush1.bf16.xpose.msra.mxu0 0
      %385 = vmatprep.subr.bf16.mxu0 0
      %386 = vmatpush1.bf16.xpose.msra.mxu0 0
      %387 = vmatprep.subr.bf16.mxu0 0
      %388 = vmatpush1.bf16.xpose.msra.mxu0 0
      %389 = vmatprep.subr.bf16.mxu0 0
      %390 = vmatpush1.bf16.xpose.msra.mxu0 0
      %391 = vmatprep.subr.bf16.mxu0 0
      %392 = vmatpush1.bf16.xpose.msra.mxu0 0
      %393 = vmatprep.subr.bf16.mxu0 0
      %394 = vmatpush1.bf16.xpose.msra.mxu0 0
      %395 = vmatprep.subr.bf16.mxu0 0
      %396 = vmatpush1.bf16.xpose.msra.mxu0 0
      %397 = vmatprep.subr.bf16.mxu0 0
      %398 = vmatpush1.bf16.xpose.msra.mxu0 0
      %399 = vmatprep.mubr.bf16.mxu0 0
      %400 = vmatmul.mubr.bf16.gmra.mrb[0].mxu0 %v364
      %v401 = vpop.f32.mrb[0].mxu0
      %v402 = vadd.f32 0.0, %v401
      %v403 = vpop.f32.mrb[0].mxu0
      %v404 = vpop.f32.mrb[0].mxu0
      %v405 = vpop.f32.mrb[0].mxu0
      %406 = vdwg.mxu0
      %s407 = smul.u32 %s354, 8
      %v408 = vlaneseq
      %v409 = vshrl.u32 %v408, 7
      %v410 = vstv %s407
      %v411 = vadd.s32 %v410, %v409
      %s412 = smul.u32 %s355, 8
      %v413 = vlaneseq
      %v414 = vand.u32 %v413, 127
      %v415 = vstv %s412
      %v416 = vadd.s32 %v415, %v414
      %vm417 = vcmp.le.s32.totalorder %v416, %v411
      %v418 = vsel %vm417, %v402, -inf
      %v419 = vld [vmem:[#allocation2] sm:$0xff]
      %vm420 = vcmask 64512
      %v421 = vsel %vm420, %v418, -inf
      %422 = vmax.xlane.f32.xlu0 %v421
      %v423 = vpop.xlane.xlu0 %422
      %v424 = vmax.f32 %v419, %v423
      %v425 = vsub.f32 %v419, %v424
      %v426 = vmul.f32 %v425, 1.442695
      %v427 = vpow.pop %v426
      %429 = vset.pattern.permute.xlu0 0
      %430 = vperm.xlu0 %429, %v424
      %v431 = vpop.permute.xlu0 %430
      %v433 = vsub.f32 %v418, %v431
      %v434 = vmul.f32 %v433, 1.442695
      %v435 = vpow.pop %v434
      %v436 = vld [vmem:[#allocation3] sm:$0xff]
      %v437 = vmul.f32 %v427, %v436
      %v438 = vsel %vm420, %v435, 0.0
      %439 = vadd.xlane.f32.xlu0 %v438
      %v440 = vpop.xlane.xlu0 %439
      %v441 = vadd.f32 %v437, %v440
      %vm442 = vcmask 7168
      %443 = vst.msk [vmem:[#allocation3] sm:$0xff] %vm442, %v441
      %v444 = vld [vmem:[#allocation4] sm:$0xff]
      %446 = vset.pattern.permute.xlu0 0
      %447 = vperm.xlu0 %446, %v427
      %v448 = vpop.permute.xlu0 %447
      %v450 = vmul.f32 %v448, %v444
      %v451 = vpack.c.bf16 %v435, %v435
      %v453 = vsel %vm420, %v451, 0
      %vm455 = vcmask 1043456
      %v457 = vsel %vm455, %v366, 0
      %459 = vmatprep.subr.bf16.mxu0 0
      %460 = vmatpush1.bf16.msra.mxu0 %v457
      %461 = vmatprep.subr.bf16.mxu0 0
      %462 = vmatpush1.bf16.msra.mxu0 0
      %463 = vmatprep.subr.bf16.mxu0 0
      %464 = vmatpush1.bf16.msra.mxu0 0
      %465 = vmatprep.subr.bf16.mxu0 0
      %466 = vmatpush1.bf16.msra.mxu0 0
      %467 = vmatprep.subr.bf16.mxu0 0
      %468 = vmatpush1.bf16.msra.mxu0 0
      %469 = vmatprep.subr.bf16.mxu0 0
      %470 = vmatpush1.bf16.msra.mxu0 0
      %471 = vmatprep.subr.bf16.mxu0 0
      %472 = vmatpush1.bf16.msra.mxu0 0
      %473 = vmatprep.subr.bf16.mxu0 0
      %474 = vmatpush1.bf16.msra.mxu0 0
      %475 = vmatprep.subr.bf16.mxu0 0
      %476 = vmatpush1.bf16.msra.mxu0 0
      %477 = vmatprep.subr.bf16.mxu0 0
      %478 = vmatpush1.bf16.msra.mxu0 0
      %479 = vmatprep.subr.bf16.mxu0 0
      %480 = vmatpush1.bf16.msra.mxu0 0
      %481 = vmatprep.subr.bf16.mxu0 0
      %482 = vmatpush1.bf16.msra.mxu0 0
      %483 = vmatprep.subr.bf16.mxu0 0
      %484 = vmatpush1.bf16.msra.mxu0 0
      %485 = vmatprep.subr.bf16.mxu0 0
      %486 = vmatpush1.bf16.msra.mxu0 0
      %487 = vmatprep.subr.bf16.mxu0 0
      %488 = vmatpush1.bf16.msra.mxu0 0
      %489 = vmatprep.subr.bf16.mxu0 0
      %490 = vmatpush1.bf16.msra.mxu0 0
      %491 = vmatprep.mubr.bf16.mxu0 0
      %492 = vmatmul.mubr.bf16.gmra.mrb[0].mxu0 %v453
      %v493 = vpop.f32.mrb[0].mxu0
      %v494 = vadd.f32 0.0, %v493
      %v495 = vpop.f32.mrb[0].mxu0
      %v496 = vpop.f32.mrb[0].mxu0
      %v497 = vpop.f32.mrb[0].mxu0
      %498 = vdwg.mxu0
      %v499 = vadd.f32 %v450, %v494
      %500 = vst [vmem:[#allocation4] sm:$0xff] %v499
      %501 = vst.msk [vmem:[#allocation2] sm:$0xff] %vm442, %v424
      %p502 = scmp.eq.s32.totalorder %s355, %s354
      // Predicated region
      $region37: #{decoder_transformer_forward.22} parent=31 // pred_check
        %p503 = pneg %p502
      $region38: #{decoder_transformer_forward.22} parent=31 // pred_check_branch
        %505 = sbr.rel (%p503) target = $region40
      $region39: #{decoder_transformer_forward.22} parent=31 // pred_region
        %v506 = vld [vmem:[#allocation4] sm:$0xff]
        %v507 = vld [vmem:[#allocation3] sm:$0xff]
        %v508 = vrcp.pop %v507
        %510 = vset.pattern.permute.xlu0 0
        %511 = vperm.xlu0 %510, %v508
        %v512 = vpop.permute.xlu0 %511
        %v514 = vmul.f32 %v506, %v512
        %v515 = vpack.c.bf16 %v514, %v514
        %516 = vst [vmem:[%s351] sm:$0xf] %v515
      $region40: #{decoder_transformer_forward.22} parent=31 // pred_fallthru
        _
      %s517 = sld [smem:[#allocation6 + %s25]]
      %p518 = scmp.lt.s32.totalorder %s23, 1
      %s519 = scalar_select %p518, %s23, 1
      %p520 = scmp.lt.s32.totalorder %s517, 0
      %s521 = scalar_select %p520, %s517, 0
      %p522 = scmp.lt.s32.totalorder %s24, 3
      %s523 = scalar_select %p522, %s24, 3
      %s524 = smul.addr %s521, 4
      %s525 = sadd.s32 %s523, %s524
      %s526 = smul.addr %s519, 4
      %s527 = sadd.s32 %s525, %s526
      %s528 = smul.addr %s527, 4
      %s529 = scalar_lea.vmem %s5, %s528
      // Predicated region
      $region41: #{decoder_transformer_forward.22} parent=31 // pred_check
        %p530 = pneg %p157
      $region42: #{decoder_transformer_forward.22} parent=31 // pred_check_branch
        %532 = sbr.rel (%p530) target = $region44
      $region43: #{decoder_transformer_forward.22} parent=31 // pred_region
        %s533 = sld [smem:[#allocation6 + %s25]]
      $region44: #{decoder_transformer_forward.22} parent=31 // pred_fallthru
        _
    $region32: #{decoder_transformer_forward.22} parent=5 // pred_fallthru
      _
    %p534 = scmp.le.s32.totalorder 2, %s13
    // Predicated region
    $region45: #{decoder_transformer_forward.22} parent=5 // pred_check
      %p535 = pneg %p534
    $region46: #{decoder_transformer_forward.22} parent=5 // pred_check_branch
      %537 = sbr.rel (%p535) target = $region48
    $region47: #{decoder_transformer_forward.22} parent=5 // pred_region
      %s538 = ssub.s32 %s13, 2
      // Predicated region
      $region49: #{decoder_transformer_forward.22} parent=47 // pred_check
        %p539 = pneg %p163
      $region50: #{decoder_transformer_forward.22} parent=47 // pred_check_branch
        %541 = sbr.rel (%p539) target = $region52
      $region51: #{decoder_transformer_forward.22} parent=47 // pred_region
        %s542 = sld [smem:[#allocation6 + %s28]]
        %p543 = scmp.lt.s32.totalorder %s26, 1
        %s544 = scalar_select %p543, %s26, 1
        %p545 = scmp.lt.s32.totalorder %s542, 0
        %s546 = scalar_select %p545, %s542, 0
        %p547 = scmp.lt.s32.totalorder %s27, 3
        %s548 = scalar_select %p547, %s27, 3
        %s549 = smul.addr %s546, 4
        %s550 = sadd.s32 %s548, %s549
        %s551 = smul.addr %s544, 4
        %s552 = sadd.s32 %s550, %s551
        %s553 = smul.addr %s552, 4
        %s554 = scalar_lea.vmem %s5, %s553
      $region52: #{decoder_transformer_forward.22} parent=47 // pred_fallthru
        _
    $region48: #{decoder_transformer_forward.22} parent=5 // pred_fallthru
      _
  $region6: #{decoder_transformer_forward.22} parent=0 // loop_footer
    %s17 = sadd.s32 1, %s13
  $region7: #{decoder_transformer_forward.22} parent=0 // loop_footer_branch
    %12 = sbr.rel target = $region3
  $region8: #{decoder_transformer_forward.22} parent=0 // loop_exit
    _

// kernel: decoder_transformer_forward.23
$region0: #{decoder_transformer_forward.23}
  #allocation0 [shape = 'u32[]', space=smem, size = 0x4, offset = 0x4, fixed_abs, tag = 'smem constant byte address 0x4 - core index']
  #allocation1 [shape = 'u32[144,128]{1,0:T(1,128)}', space=vmem, size = 0x12000, scoped, tag = 'internal scratch']
  %s0 = inlined_call_operand.vmem [shape: bf16[16,512], index: 0, kind: input, shape index: {}]
  %s1 = inlined_call_operand.vmem [shape: bf16[512,32], index: 1, kind: input, shape index: {}]
  %s2 = inlined_call_operand.vmem [shape: f32[1,32], index: 2, kind: input, shape index: {}]
  %s3 = inlined_call_operand.vmem [shape: bf16[16,32], index: 3, kind: output, shape index: {}]
  %s4 = sld [smem:[#allocation0]]
  $region22: #{decoder_transformer_forward.23} parent=0
    _
  %s6 = ssub.s32 1, %s4
  %s7 = scalar_select 0, %s6, %s4
  // Predicated region
  $region2: #{decoder_transformer_forward.23} parent=0 // pred_check
    _
  $region3: #{decoder_transformer_forward.23} parent=0 // pred_check_branch
    %9 = sbr.rel (0) target = $region5
  $region4: #{decoder_transformer_forward.23} parent=0 // pred_region
    _
  $region5: #{decoder_transformer_forward.23} parent=0 // pred_fallthru
    _
  // Predicated region
  $region6: #{decoder_transformer_forward.23} parent=0 // pred_check
    _
  $region7: #{decoder_transformer_forward.23} parent=0 // pred_check_branch
    %11 = sbr.rel (0) target = $region9
  $region8: #{decoder_transformer_forward.23} parent=0 // pred_region
    _
  $region9: #{decoder_transformer_forward.23} parent=0 // pred_fallthru
    _
  // Predicated region
  $region10: #{decoder_transformer_forward.23} parent=0 // pred_check
    _
  $region11: #{decoder_transformer_forward.23} parent=0 // pred_check_branch
    %13 = sbr.rel (0) target = $region13
  $region12: #{decoder_transformer_forward.23} parent=0 // pred_region
    _
  $region13: #{decoder_transformer_forward.23} parent=0 // pred_fallthru
    _
  %v15 = vld [vmem:[%s0] sm:$0xff]
  %v16 = vld [vmem:[%s0 + $0x8] sm:$0xff]
  %v17 = vld [vmem:[%s0 + $0x10] sm:$0xff]
  %v18 = vld [vmem:[%s0 + $0x18] sm:$0xff]
  %v19 = vld [vmem:[%s1] sm:$0xf]
  %v20 = vld [vmem:[%s1 + $0x4] sm:$0xf]
  %v21 = vld [vmem:[%s1 + $0x8] sm:$0xf]
  %v22 = vld [vmem:[%s1 + $0xc] sm:$0xf]
  %v23 = vld [vmem:[%s1 + $0x10] sm:$0xf]
  %v24 = vld [vmem:[%s1 + $0x14] sm:$0xf]
  %v25 = vld [vmem:[%s1 + $0x18] sm:$0xf]
  %v26 = vld [vmem:[%s1 + $0x1c] sm:$0xf]
  %v27 = vld [vmem:[%s1 + $0x20] sm:$0xf]
  %v28 = vld [vmem:[%s1 + $0x24] sm:$0xf]
  %v29 = vld [vmem:[%s1 + $0x28] sm:$0xf]
  %v30 = vld [vmem:[%s1 + $0x2c] sm:$0xf]
  %v31 = vld [vmem:[%s1 + $0x30] sm:$0xf]
  %v32 = vld [vmem:[%s1 + $0x34] sm:$0xf]
  %v33 = vld [vmem:[%s1 + $0x38] sm:$0xf]
  %v34 = vld [vmem:[%s1 + $0x3c] sm:$0xf]
  %v35 = vld [vmem:[%s1 + $0x40] sm:$0xf]
  %v36 = vld [vmem:[%s1 + $0x44] sm:$0xf]
  %v37 = vld [vmem:[%s1 + $0x48] sm:$0xf]
  %v38 = vld [vmem:[%s1 + $0x4c] sm:$0xf]
  %v39 = vld [vmem:[%s1 + $0x50] sm:$0xf]
  %v40 = vld [vmem:[%s1 + $0x54] sm:$0xf]
  %v41 = vld [vmem:[%s1 + $0x58] sm:$0xf]
  %v42 = vld [vmem:[%s1 + $0x5c] sm:$0xf]
  %v43 = vld [vmem:[%s1 + $0x60] sm:$0xf]
  %v44 = vld [vmem:[%s1 + $0x64] sm:$0xf]
  %v45 = vld [vmem:[%s1 + $0x68] sm:$0xf]
  %v46 = vld [vmem:[%s1 + $0x6c] sm:$0xf]
  %v47 = vld [vmem:[%s1 + $0x70] sm:$0xf]
  %v48 = vld [vmem:[%s1 + $0x74] sm:$0xf]
  %v49 = vld [vmem:[%s1 + $0x78] sm:$0xf]
  %v50 = vld [vmem:[%s1 + $0x7c] sm:$0xf]
  %v51 = vld [vmem:[%s1 + $0x80] sm:$0xf]
  %v52 = vld [vmem:[%s1 + $0x84] sm:$0xf]
  %v53 = vld [vmem:[%s1 + $0x88] sm:$0xf]
  %v54 = vld [vmem:[%s1 + $0x8c] sm:$0xf]
  %v55 = vld [vmem:[%s1 + $0x90] sm:$0xf]
  %v56 = vld [vmem:[%s1 + $0x94] sm:$0xf]
  %v57 = vld [vmem:[%s1 + $0x98] sm:$0xf]
  %v58 = vld [vmem:[%s1 + $0x9c] sm:$0xf]
  %v59 = vld [vmem:[%s1 + $0xa0] sm:$0xf]
  %v60 = vld [vmem:[%s1 + $0xa4] sm:$0xf]
  %v61 = vld [vmem:[%s1 + $0xa8] sm:$0xf]
  %v62 = vld [vmem:[%s1 + $0xac] sm:$0xf]
  %v63 = vld [vmem:[%s1 + $0xb0] sm:$0xf]
  %v64 = vld [vmem:[%s1 + $0xb4] sm:$0xf]
  %v65 = vld [vmem:[%s1 + $0xb8] sm:$0xf]
  %v66 = vld [vmem:[%s1 + $0xbc] sm:$0xf]
  %v67 = vld [vmem:[%s1 + $0xc0] sm:$0xf]
  %v68 = vld [vmem:[%s1 + $0xc4] sm:$0xf]
  %v69 = vld [vmem:[%s1 + $0xc8] sm:$0xf]
  %v70 = vld [vmem:[%s1 + $0xcc] sm:$0xf]
  %v71 = vld [vmem:[%s1 + $0xd0] sm:$0xf]
  %v72 = vld [vmem:[%s1 + $0xd4] sm:$0xf]
  %v73 = vld [vmem:[%s1 + $0xd8] sm:$0xf]
  %v74 = vld [vmem:[%s1 + $0xdc] sm:$0xf]
  %v75 = vld [vmem:[%s1 + $0xe0] sm:$0xf]
  %v76 = vld [vmem:[%s1 + $0xe4] sm:$0xf]
  %v77 = vld [vmem:[%s1 + $0xe8] sm:$0xf]
  %v78 = vld [vmem:[%s1 + $0xec] sm:$0xf]
  %v79 = vld [vmem:[%s1 + $0xf0] sm:$0xf]
  %v80 = vld [vmem:[%s1 + $0xf4] sm:$0xf]
  %v81 = vld [vmem:[%s1 + $0xf8] sm:$0xf]
  %v82 = vld [vmem:[%s1 + $0xfc] sm:$0xf]
  %v83 = vld [vmem:[%s2] sm:$0x1]
  %v85 = vlaneseq
  %v86 = vshrl.u32 %v85, 7
  %v87 = vsub.s32 0, %v86
  %v88 = vrot.slane %v83, %v87
  %v94 = vunpack.c.l.b16 %v15
  %v95 = vunpack.c.h.b16 %v15
  %v96 = vunpack.c.l.b16 %v16
  %v97 = vunpack.c.h.b16 %v16
  %v98 = vunpack.c.l.b16 %v17
  %v99 = vunpack.c.h.b16 %v17
  %v100 = vunpack.c.l.b16 %v18
  %v101 = vunpack.c.h.b16 %v18
  %v102 = vpack.c.b16 %v98, %v94
  %v103 = vpack.c.b16 %v99, %v95
  %v104 = vpack.c.b16 %v100, %v96
  %v105 = vpack.c.b16 %v101, %v97
  %v174 = vunpack.c.l.b16 %v19
  %v175 = vunpack.c.l.b16 %v20
  %v176 = vunpack.c.l.b16 %v21
  %v177 = vunpack.c.l.b16 %v22
  %v178 = vunpack.c.l.b16 %v23
  %v179 = vunpack.c.l.b16 %v24
  %v180 = vunpack.c.l.b16 %v25
  %v181 = vunpack.c.l.b16 %v26
  %v182 = vunpack.c.l.b16 %v27
  %v183 = vunpack.c.l.b16 %v28
  %v184 = vunpack.c.l.b16 %v29
  %v185 = vunpack.c.l.b16 %v30
  %v186 = vunpack.c.l.b16 %v31
  %v187 = vunpack.c.l.b16 %v32
  %v188 = vunpack.c.l.b16 %v33
  %v189 = vunpack.c.l.b16 %v34
  %v190 = vunpack.c.l.b16 %v35
  %v191 = vunpack.c.l.b16 %v36
  %v192 = vunpack.c.l.b16 %v37
  %v193 = vunpack.c.l.b16 %v38
  %v194 = vunpack.c.l.b16 %v39
  %v195 = vunpack.c.l.b16 %v40
  %v196 = vunpack.c.l.b16 %v41
  %v197 = vunpack.c.l.b16 %v42
  %v198 = vunpack.c.l.b16 %v43
  %v199 = vunpack.c.l.b16 %v44
  %v200 = vunpack.c.l.b16 %v45
  %v201 = vunpack.c.l.b16 %v46
  %v202 = vunpack.c.l.b16 %v47
  %v203 = vunpack.c.l.b16 %v48
  %v204 = vunpack.c.l.b16 %v49
  %v205 = vunpack.c.l.b16 %v50
  %v206 = vunpack.c.l.b16 %v51
  %v207 = vunpack.c.l.b16 %v52
  %v208 = vunpack.c.l.b16 %v53
  %v209 = vunpack.c.l.b16 %v54
  %v210 = vunpack.c.l.b16 %v55
  %v211 = vunpack.c.l.b16 %v56
  %v212 = vunpack.c.l.b16 %v57
  %v213 = vunpack.c.l.b16 %v58
  %v214 = vunpack.c.l.b16 %v59
  %v215 = vunpack.c.l.b16 %v60
  %v216 = vunpack.c.l.b16 %v61
  %v217 = vunpack.c.l.b16 %v62
  %v218 = vunpack.c.l.b16 %v63
  %v219 = vunpack.c.l.b16 %v64
  %v220 = vunpack.c.l.b16 %v65
  %v221 = vunpack.c.l.b16 %v66
  %v222 = vunpack.c.l.b16 %v67
  %v223 = vunpack.c.l.b16 %v68
  %v224 = vunpack.c.l.b16 %v69
  %v225 = vunpack.c.l.b16 %v70
  %v226 = vunpack.c.l.b16 %v71
  %v227 = vunpack.c.l.b16 %v72
  %v228 = vunpack.c.l.b16 %v73
  %v229 = vunpack.c.l.b16 %v74
  %v230 = vunpack.c.l.b16 %v75
  %v231 = vunpack.c.l.b16 %v76
  %v232 = vunpack.c.l.b16 %v77
  %v233 = vunpack.c.l.b16 %v78
  %v234 = vunpack.c.l.b16 %v79
  %v235 = vunpack.c.l.b16 %v80
  %v236 = vunpack.c.l.b16 %v81
  %v237 = vunpack.c.l.b16 %v82
  %v238 = vpack.c.b16 %v175, %v174
  %v239 = vpack.c.b16 %v177, %v176
  %v240 = vpack.c.b16 %v179, %v178
  %v241 = vpack.c.b16 %v181, %v180
  %v242 = vpack.c.b16 %v183, %v182
  %v243 = vpack.c.b16 %v185, %v184
  %v244 = vpack.c.b16 %v187, %v186
  %v245 = vpack.c.b16 %v189, %v188
  %v246 = vpack.c.b16 %v191, %v190
  %v247 = vpack.c.b16 %v193, %v192
  %v248 = vpack.c.b16 %v195, %v194
  %v249 = vpack.c.b16 %v197, %v196
  %v250 = vpack.c.b16 %v199, %v198
  %v251 = vpack.c.b16 %v201, %v200
  %v252 = vpack.c.b16 %v203, %v202
  %v253 = vpack.c.b16 %v205, %v204
  %v254 = vpack.c.b16 %v207, %v206
  %v255 = vpack.c.b16 %v209, %v208
  %v256 = vpack.c.b16 %v211, %v210
  %v257 = vpack.c.b16 %v213, %v212
  %v258 = vpack.c.b16 %v215, %v214
  %v259 = vpack.c.b16 %v217, %v216
  %v260 = vpack.c.b16 %v219, %v218
  %v261 = vpack.c.b16 %v221, %v220
  %v262 = vpack.c.b16 %v223, %v222
  %v263 = vpack.c.b16 %v225, %v224
  %v264 = vpack.c.b16 %v227, %v226
  %v265 = vpack.c.b16 %v229, %v228
  %v266 = vpack.c.b16 %v231, %v230
  %v267 = vpack.c.b16 %v233, %v232
  %v268 = vpack.c.b16 %v235, %v234
  %v269 = vpack.c.b16 %v237, %v236
  %302 = vmatprep.subr.bf16.mxu0 0
  %303 = vmatpush1.bf16.msra.mxu0 %v238
  %304 = vmatprep.subr.bf16.mxu0 0
  %305 = vmatpush1.bf16.msra.mxu0 %v239
  %306 = vmatprep.subr.bf16.mxu0 0
  %307 = vmatpush1.bf16.msra.mxu0 %v240
  %308 = vmatprep.subr.bf16.mxu0 0
  %309 = vmatpush1.bf16.msra.mxu0 %v241
  %310 = vmatprep.subr.bf16.mxu0 0
  %311 = vmatpush1.bf16.msra.mxu0 %v242
  %312 = vmatprep.subr.bf16.mxu0 0
  %313 = vmatpush1.bf16.msra.mxu0 %v243
  %314 = vmatprep.subr.bf16.mxu0 0
  %315 = vmatpush1.bf16.msra.mxu0 %v244
  %316 = vmatprep.subr.bf16.mxu0 0
  %317 = vmatpush1.bf16.msra.mxu0 %v245
  %318 = vmatprep.subr.bf16.mxu0 0
  %319 = vmatpush1.bf16.msra.mxu0 %v246
  %320 = vmatprep.subr.bf16.mxu0 0
  %321 = vmatpush1.bf16.msra.mxu0 %v247
  %322 = vmatprep.subr.bf16.mxu0 0
  %323 = vmatpush1.bf16.msra.mxu0 %v248
  %324 = vmatprep.subr.bf16.mxu0 0
  %325 = vmatpush1.bf16.msra.mxu0 %v249
  %326 = vmatprep.subr.bf16.mxu0 0
  %327 = vmatpush1.bf16.msra.mxu0 %v250
  %328 = vmatprep.subr.bf16.mxu0 0
  %329 = vmatpush1.bf16.msra.mxu0 %v251
  %330 = vmatprep.subr.bf16.mxu0 0
  %331 = vmatpush1.bf16.msra.mxu0 %v252
  %332 = vmatprep.subr.bf16.mxu0 0
  %333 = vmatpush1.bf16.msra.mxu0 %v253
  %334 = vmatprep.mubr.bf16.mxu0 %v103
  %335 = vmatmul.mubr.bf16.gmra.mrb[0].mxu0 %v102
  %v336 = vpop.f32.mrb[0].mxu0
  %v337 = vadd.f32 %v88, %v336
  %v338 = vpop.f32.mrb[0].mxu0
  %v339 = vpop.f32.mrb[0].mxu0
  %v340 = vadd.f32 %v88, %v339
  %v341 = vpop.f32.mrb[0].mxu0
  %342 = vdwg.mxu0
  %343 = vmatprep.subr.bf16.mxu0 0
  %344 = vmatpush1.bf16.msra.mxu0 %v254
  %345 = vmatprep.subr.bf16.mxu0 0
  %346 = vmatpush1.bf16.msra.mxu0 %v255
  %347 = vmatprep.subr.bf16.mxu0 0
  %348 = vmatpush1.bf16.msra.mxu0 %v256
  %349 = vmatprep.subr.bf16.mxu0 0
  %350 = vmatpush1.bf16.msra.mxu0 %v257
  %351 = vmatprep.subr.bf16.mxu0 0
  %352 = vmatpush1.bf16.msra.mxu0 %v258
  %353 = vmatprep.subr.bf16.mxu0 0
  %354 = vmatpush1.bf16.msra.mxu0 %v259
  %355 = vmatprep.subr.bf16.mxu0 0
  %356 = vmatpush1.bf16.msra.mxu0 %v260
  %357 = vmatprep.subr.bf16.mxu0 0
  %358 = vmatpush1.bf16.msra.mxu0 %v261
  %359 = vmatprep.subr.bf16.mxu0 0
  %360 = vmatpush1.bf16.msra.mxu0 %v262
  %361 = vmatprep.subr.bf16.mxu0 0
  %362 = vmatpush1.bf16.msra.mxu0 %v263
  %363 = vmatprep.subr.bf16.mxu0 0
  %364 = vmatpush1.bf16.msra.mxu0 %v264
  %365 = vmatprep.subr.bf16.mxu0 0
  %366 = vmatpush1.bf16.msra.mxu0 %v265
  %367 = vmatprep.subr.bf16.mxu0 0
  %368 = vmatpush1.bf16.msra.mxu0 %v266
  %369 = vmatprep.subr.bf16.mxu0 0
  %370 = vmatpush1.bf16.msra.mxu0 %v267
  %371 = vmatprep.subr.bf16.mxu0 0
  %372 = vmatpush1.bf16.msra.mxu0 %v268
  %373 = vmatprep.subr.bf16.mxu0 0
  %374 = vmatpush1.bf16.msra.mxu0 %v269
  %375 = vmatprep.mubr.bf16.mxu0 %v105
  %376 = vmatmul.mubr.bf16.gmra.mrb[0].mxu0 %v104
  %v377 = vpop.f32.mrb[0].mxu0
  %v378 = vadd.f32 %v337, %v377
  %v379 = vpop.f32.mrb[0].mxu0
  %v380 = vpop.f32.mrb[0].mxu0
  %v381 = vadd.f32 %v340, %v380
  %v382 = vpop.f32.mrb[0].mxu0
  %383 = vdwg.mxu0
  %v384 = vpack.c.bf16 %v381, %v378
  %v386 = vunpack.c.l.b16 %v384
  %v387 = vunpack.c.h.b16 %v384
  %v388 = vpack.c.b16 %v386, %v386
  %v389 = vpack.c.b16 %v387, %v387
  %vm392 = vcmask 257024
  %393 = vst.msk [vmem:[%s3] sm:$0xf] %vm392, %v388
  %394 = vst.msk [vmem:[%s3 + $0x4] sm:$0xf] %vm392, %v389
  // Predicated region
  $region14: #{decoder_transformer_forward.23} parent=0 // pred_check
    _
  $region15: #{decoder_transformer_forward.23} parent=0 // pred_check_branch
    %396 = sbr.rel (0) target = $region17
  $region16: #{decoder_transformer_forward.23} parent=0 // pred_region
    _
  $region17: #{decoder_transformer_forward.23} parent=0 // pred_fallthru
    _
  // Predicated region
  $region18: #{decoder_transformer_forward.23} parent=0 // pred_check
    _
  $region19: #{decoder_transformer_forward.23} parent=0 // pred_check_branch
    %398 = sbr.rel (0) target = $region21
  $region20: #{decoder_transformer_forward.23} parent=0 // pred_region
    _
  $region21: #{decoder_transformer_forward.23} parent=0 // pred_fallthru
    _

// kernel: decoder_transformer_forward.21
$region0: #{decoder_transformer_forward.21}
  #allocation0 [shape = 'u32[]', space=smem, size = 0x4, offset = 0x4, fixed_abs, tag = 'smem constant byte address 0x4 - core index']
  #allocation1 [shape = 'u32[144,128]{1,0:T(1,128)}', space=vmem, size = 0x12000, scoped, tag = 'internal scratch']
  %s0 = inlined_call_operand.vmem [shape: bf16[16,32], index: 0, kind: input, shape index: {}]
  %s1 = inlined_call_operand.vmem [shape: bf16[32,512], index: 1, kind: input, shape index: {}]
  %s2 = inlined_call_operand.vmem [shape: bf16[32,512], index: 2, kind: input, shape index: {}]
  %s3 = inlined_call_operand.vmem [shape: bf16[32,512], index: 3, kind: input, shape index: {}]
  %s4 = inlined_call_operand.vmem [shape: f32[1,512], index: 4, kind: input, shape index: {}]
  %s5 = inlined_call_operand.vmem [shape: f32[1,512], index: 5, kind: input, shape index: {}]
  %s6 = inlined_call_operand.vmem [shape: f32[1,512], index: 6, kind: input, shape index: {}]
  %s7 = inlined_call_operand.vmem [shape: bf16[16,512], index: 7, kind: output, shape index: {0}]
  %s8 = inlined_call_operand.vmem [shape: bf16[16,512], index: 8, kind: output, shape index: {1}]
  %s9 = inlined_call_operand.vmem [shape: bf16[16,512], index: 9, kind: output, shape index: {2}]
  %10 = xla_tuple %s7, %s8, %s9
  %s11 = sld [smem:[#allocation0]]
  $region54: #{decoder_transformer_forward.21} parent=0
    _
  %s13 = ssub.s32 1, %s11
  %s14 = scalar_select 0, %s13, %s11
  // Predicated region
  $region2: #{decoder_transformer_forward.21} parent=0 // pred_check
    _
  $region3: #{decoder_transformer_forward.21} parent=0 // pred_check_branch
    %16 = sbr.rel (0) target = $region5
  $region4: #{decoder_transformer_forward.21} parent=0 // pred_region
    _
  $region5: #{decoder_transformer_forward.21} parent=0 // pred_fallthru
    _
  // Predicated region
  $region6: #{decoder_transformer_forward.21} parent=0 // pred_check
    _
  $region7: #{decoder_transformer_forward.21} parent=0 // pred_check_branch
    %18 = sbr.rel (0) target = $region9
  $region8: #{decoder_transformer_forward.21} parent=0 // pred_region
    _
  $region9: #{decoder_transformer_forward.21} parent=0 // pred_fallthru
    _
  // Predicated region
  $region10: #{decoder_transformer_forward.21} parent=0 // pred_check
    _
  $region11: #{decoder_transformer_forward.21} parent=0 // pred_check_branch
    %20 = sbr.rel (0) target = $region13
  $region12: #{decoder_transformer_forward.21} parent=0 // pred_region
    _
  $region13: #{decoder_transformer_forward.21} parent=0 // pred_fallthru
    _
  // Predicated region
  $region14: #{decoder_transformer_forward.21} parent=0 // pred_check
    _
  $region15: #{decoder_transformer_forward.21} parent=0 // pred_check_branch
    %22 = sbr.rel (0) target = $region17
  $region16: #{decoder_transformer_forward.21} parent=0 // pred_region
    _
  $region17: #{decoder_transformer_forward.21} parent=0 // pred_fallthru
    _
  // Predicated region
  $region18: #{decoder_transformer_forward.21} parent=0 // pred_check
    _
  $region19: #{decoder_transformer_forward.21} parent=0 // pred_check_branch
    %24 = sbr.rel (0) target = $region21
  $region20: #{decoder_transformer_forward.21} parent=0 // pred_region
    _
  $region21: #{decoder_transformer_forward.21} parent=0 // pred_fallthru
    _
  // Predicated region
  $region22: #{decoder_transformer_forward.21} parent=0 // pred_check
    _
  $region23: #{decoder_transformer_forward.21} parent=0 // pred_check_branch
    %26 = sbr.rel (0) target = $region25
  $region24: #{decoder_transformer_forward.21} parent=0 // pred_region
    _
  $region25: #{decoder_transformer_forward.21} parent=0 // pred_fallthru
    _
  // Predicated region
  $region26: #{decoder_transformer_forward.21} parent=0 // pred_check
    _
  $region27: #{decoder_transformer_forward.21} parent=0 // pred_check_branch
    %28 = sbr.rel (0) target = $region29
  $region28: #{decoder_transformer_forward.21} parent=0 // pred_region
    _
  $region29: #{decoder_transformer_forward.21} parent=0 // pred_fallthru
    _
  %v30 = vld [vmem:[%s0] sm:$0xf]
  %v31 = vld [vmem:[%s0 + $0x4] sm:$0xf]
  %v32 = vld [vmem:[%s1] sm:$0xff]
  %v33 = vld [vmem:[%s1 + $0x8] sm:$0xff]
  %v34 = vld [vmem:[%s1 + $0x10] sm:$0xff]
  %v35 = vld [vmem:[%s1 + $0x18] sm:$0xff]
  %v36 = vld [vmem:[%s1 + $0x20] sm:$0xff]
  %v37 = vld [vmem:[%s1 + $0x28] sm:$0xff]
  %v38 = vld [vmem:[%s1 + $0x30] sm:$0xff]
  %v39 = vld [vmem:[%s1 + $0x38] sm:$0xff]
  %v40 = vld [vmem:[%s4] sm:$0xf]
  %v42 = vlaneseq
  %v43 = vshrl.u32 %v42, 7
  %v44 = vsub.s32 0, %v43
  %v45 = vrot.slane %v40, %v44
  %v46 = vlaneseq
  %v47 = vshrl.u32 %v46, 7
  %v48 = vsub.s32 1, %v47
  %v49 = vrot.slane %v40, %v48
  %v50 = vlaneseq
  %v51 = vshrl.u32 %v50, 7
  %v52 = vsub.s32 2, %v51
  %v53 = vrot.slane %v40, %v52
  %v54 = vlaneseq
  %v55 = vshrl.u32 %v54, 7
  %v56 = vsub.s32 3, %v55
  %v57 = vrot.slane %v40, %v56
  %v64 = vunpack.c.l.b16 %v30
  %v65 = vunpack.c.l.b16 %v31
  %v66 = vpack.c.b16 %v65, %v64
  %v75 = vunpack.c.l.b16 %v32
  %v76 = vunpack.c.h.b16 %v32
  %v77 = vunpack.c.l.b16 %v33
  %v78 = vunpack.c.h.b16 %v33
  %v79 = vunpack.c.l.b16 %v34
  %v80 = vunpack.c.h.b16 %v34
  %v81 = vunpack.c.l.b16 %v35
  %v82 = vunpack.c.h.b16 %v35
  %v83 = vunpack.c.l.b16 %v36
  %v84 = vunpack.c.h.b16 %v36
  %v85 = vunpack.c.l.b16 %v37
  %v86 = vunpack.c.h.b16 %v37
  %v87 = vunpack.c.l.b16 %v38
  %v88 = vunpack.c.h.b16 %v38
  %v89 = vunpack.c.l.b16 %v39
  %v90 = vunpack.c.h.b16 %v39
  %v91 = vpack.c.b16 %v79, %v75
  %v92 = vpack.c.b16 %v80, %v76
  %v93 = vpack.c.b16 %v81, %v77
  %v94 = vpack.c.b16 %v82, %v78
  %v95 = vpack.c.b16 %v87, %v83
  %v96 = vpack.c.b16 %v88, %v84
  %v97 = vpack.c.b16 %v89, %v85
  %v98 = vpack.c.b16 %v90, %v86
  %vm107 = vcmask 261120
  %v109 = vsel %vm107, %v66, 0
  %111 = vmatprep.subr.bf16.mxu0 %v92
  %112 = vmatpush1.bf16.msra.mxu0 %v91
  %113 = vmatprep.subr.bf16.mxu0 %v96
  %114 = vmatpush1.bf16.msra.mxu0 %v95
  %115 = vmatprep.subr.bf16.mxu0 0
  %116 = vmatpush1.bf16.msra.mxu0 0
  %117 = vmatprep.subr.bf16.mxu0 0
  %118 = vmatpush1.bf16.msra.mxu0 0
  %119 = vmatprep.subr.bf16.mxu0 0
  %120 = vmatpush1.bf16.msra.mxu0 0
  %121 = vmatprep.subr.bf16.mxu0 0
  %122 = vmatpush1.bf16.msra.mxu0 0
  %123 = vmatprep.subr.bf16.mxu0 0
  %124 = vmatpush1.bf16.msra.mxu0 0
  %125 = vmatprep.subr.bf16.mxu0 0
  %126 = vmatpush1.bf16.msra.mxu0 0
  %127 = vmatprep.subr.bf16.mxu0 0
  %128 = vmatpush1.bf16.msra.mxu0 0
  %129 = vmatprep.subr.bf16.mxu0 0
  %130 = vmatpush1.bf16.msra.mxu0 0
  %131 = vmatprep.subr.bf16.mxu0 0
  %132 = vmatpush1.bf16.msra.mxu0 0
  %133 = vmatprep.subr.bf16.mxu0 0
  %134 = vmatpush1.bf16.msra.mxu0 0
  %135 = vmatprep.subr.bf16.mxu0 0
  %136 = vmatpush1.bf16.msra.mxu0 0
  %137 = vmatprep.subr.bf16.mxu0 0
  %138 = vmatpush1.bf16.msra.mxu0 0
  %139 = vmatprep.subr.bf16.mxu0 0
  %140 = vmatpush1.bf16.msra.mxu0 0
  %141 = vmatprep.subr.bf16.mxu0 0
  %142 = vmatpush1.bf16.msra.mxu0 0
  %143 = vmatprep.mubr.bf16.mxu0 0
  %144 = vmatmul.mubr.bf16.gmra.mrb[0].mxu0 %v109
  %v145 = vpop.f32.mrb[0].mxu0
  %v146 = vadd.f32 %v45, %v145
  %v147 = vpop.f32.mrb[0].mxu0
  %v148 = vadd.f32 %v49, %v147
  %v149 = vpop.f32.mrb[0].mxu0
  %v150 = vadd.f32 %v45, %v149
  %v151 = vpop.f32.mrb[0].mxu0
  %v152 = vadd.f32 %v49, %v151
  %153 = vdwg.mxu0
  %154 = vmatprep.subr.bf16.mxu0 %v94
  %155 = vmatpush1.bf16.msra.mxu0 %v93
  %156 = vmatprep.subr.bf16.mxu0 %v98
  %157 = vmatpush1.bf16.msra.mxu0 %v97
  %158 = vmatprep.subr.bf16.mxu0 0
  %159 = vmatpush1.bf16.msra.mxu0 0
  %160 = vmatprep.subr.bf16.mxu0 0
  %161 = vmatpush1.bf16.msra.mxu0 0
  %162 = vmatprep.subr.bf16.mxu0 0
  %163 = vmatpush1.bf16.msra.mxu0 0
  %164 = vmatprep.subr.bf16.mxu0 0
  %165 = vmatpush1.bf16.msra.mxu0 0
  %166 = vmatprep.subr.bf16.mxu0 0
  %167 = vmatpush1.bf16.msra.mxu0 0
  %168 = vmatprep.subr.bf16.mxu0 0
  %169 = vmatpush1.bf16.msra.mxu0 0
  %170 = vmatprep.subr.bf16.mxu0 0
  %171 = vmatpush1.bf16.msra.mxu0 0
  %172 = vmatprep.subr.bf16.mxu0 0
  %173 = vmatpush1.bf16.msra.mxu0 0
  %174 = vmatprep.subr.bf16.mxu0 0
  %175 = vmatpush1.bf16.msra.mxu0 0
  %176 = vmatprep.subr.bf16.mxu0 0
  %177 = vmatpush1.bf16.msra.mxu0 0
  %178 = vmatprep.subr.bf16.mxu0 0
  %179 = vmatpush1.bf16.msra.mxu0 0
  %180 = vmatprep.subr.bf16.mxu0 0
  %181 = vmatpush1.bf16.msra.mxu0 0
  %182 = vmatprep.subr.bf16.mxu0 0
  %183 = vmatpush1.bf16.msra.mxu0 0
  %184 = vmatprep.subr.bf16.mxu0 0
  %185 = vmatpush1.bf16.msra.mxu0 0
  %186 = vmatprep.mubr.bf16.mxu0 0
  %187 = vmatmul.mubr.bf16.gmra.mrb[0].mxu0 %v109
  %v188 = vpop.f32.mrb[0].mxu0
  %v189 = vadd.f32 %v53, %v188
  %v190 = vpop.f32.mrb[0].mxu0
  %v191 = vadd.f32 %v57, %v190
  %v192 = vpop.f32.mrb[0].mxu0
  %v193 = vadd.f32 %v53, %v192
  %v194 = vpop.f32.mrb[0].mxu0
  %v195 = vadd.f32 %v57, %v194
  %196 = vdwg.mxu0
  %v197 = vpack.c.bf16 %v150, %v146
  %v198 = vpack.c.bf16 %v152, %v148
  %v199 = vpack.c.bf16 %v193, %v189
  %v200 = vpack.c.bf16 %v195, %v191
  %v205 = vunpack.c.l.b16 %v197
  %v206 = vunpack.c.l.b16 %v198
  %v207 = vunpack.c.l.b16 %v199
  %v208 = vunpack.c.l.b16 %v200
  %v209 = vunpack.c.h.b16 %v197
  %v210 = vunpack.c.h.b16 %v198
  %v211 = vunpack.c.h.b16 %v199
  %v212 = vunpack.c.h.b16 %v200
  %v213 = vpack.c.b16 %v206, %v205
  %v214 = vpack.c.b16 %v208, %v207
  %v215 = vpack.c.b16 %v210, %v209
  %v216 = vpack.c.b16 %v212, %v211
  %221 = vst [vmem:[%s7] sm:$0xff] %v213
  %222 = vst [vmem:[%s7 + $0x8] sm:$0xff] %v214
  %223 = vst [vmem:[%s7 + $0x10] sm:$0xff] %v215
  %224 = vst [vmem:[%s7 + $0x18] sm:$0xff] %v216
  %v225 = vld [vmem:[%s2] sm:$0xff]
  %v226 = vld [vmem:[%s2 + $0x8] sm:$0xff]
  %v227 = vld [vmem:[%s2 + $0x10] sm:$0xff]
  %v228 = vld [vmem:[%s2 + $0x18] sm:$0xff]
  %v229 = vld [vmem:[%s2 + $0x20] sm:$0xff]
  %v230 = vld [vmem:[%s2 + $0x28] sm:$0xff]
  %v231 = vld [vmem:[%s2 + $0x30] sm:$0xff]
  %v232 = vld [vmem:[%s2 + $0x38] sm:$0xff]
  %v233 = vld [vmem:[%s5] sm:$0xf]
  %v235 = vlaneseq
  %v236 = vshrl.u32 %v235, 7
  %v237 = vsub.s32 0, %v236
  %v238 = vrot.slane %v233, %v237
  %v239 = vlaneseq
  %v240 = vshrl.u32 %v239, 7
  %v241 = vsub.s32 1, %v240
  %v242 = vrot.slane %v233, %v241
  %v243 = vlaneseq
  %v244 = vshrl.u32 %v243, 7
  %v245 = vsub.s32 2, %v244
  %v246 = vrot.slane %v233, %v245
  %v247 = vlaneseq
  %v248 = vshrl.u32 %v247, 7
  %v249 = vsub.s32 3, %v248
  %v250 = vrot.slane %v233, %v249
  %v263 = vunpack.c.l.b16 %v225
  %v264 = vunpack.c.h.b16 %v225
  %v265 = vunpack.c.l.b16 %v226
  %v266 = vunpack.c.h.b16 %v226
  %v267 = vunpack.c.l.b16 %v227
  %v268 = vunpack.c.h.b16 %v227
  %v269 = vunpack.c.l.b16 %v228
  %v270 = vunpack.c.h.b16 %v228
  %v271 = vunpack.c.l.b16 %v229
  %v272 = vunpack.c.h.b16 %v229
  %v273 = vunpack.c.l.b16 %v230
  %v274 = vunpack.c.h.b16 %v230
  %v275 = vunpack.c.l.b16 %v231
  %v276 = vunpack.c.h.b16 %v231
  %v277 = vunpack.c.l.b16 %v232
  %v278 = vunpack.c.h.b16 %v232
  %v279 = vpack.c.b16 %v267, %v263
  %v280 = vpack.c.b16 %v268, %v264
  %v281 = vpack.c.b16 %v269, %v265
  %v282 = vpack.c.b16 %v270, %v266
  %v283 = vpack.c.b16 %v275, %v271
  %v284 = vpack.c.b16 %v276, %v272
  %v285 = vpack.c.b16 %v277, %v273
  %v286 = vpack.c.b16 %v278, %v274
  %295 = vmatprep.subr.bf16.mxu0 %v280
  %296 = vmatpush1.bf16.msra.mxu0 %v279
  %297 = vmatprep.subr.bf16.mxu0 %v284
  %298 = vmatpush1.bf16.msra.mxu0 %v283
  %299 = vmatprep.subr.bf16.mxu0 0
  %300 = vmatpush1.bf16.msra.mxu0 0
  %301 = vmatprep.subr.bf16.mxu0 0
  %302 = vmatpush1.bf16.msra.mxu0 0
  %303 = vmatprep.subr.bf16.mxu0 0
  %304 = vmatpush1.bf16.msra.mxu0 0
  %305 = vmatprep.subr.bf16.mxu0 0
  %306 = vmatpush1.bf16.msra.mxu0 0
  %307 = vmatprep.subr.bf16.mxu0 0
  %308 = vmatpush1.bf16.msra.mxu0 0
  %309 = vmatprep.subr.bf16.mxu0 0
  %310 = vmatpush1.bf16.msra.mxu0 0
  %311 = vmatprep.subr.bf16.mxu0 0
  %312 = vmatpush1.bf16.msra.mxu0 0
  %313 = vmatprep.subr.bf16.mxu0 0
  %314 = vmatpush1.bf16.msra.mxu0 0
  %315 = vmatprep.subr.bf16.mxu0 0
  %316 = vmatpush1.bf16.msra.mxu0 0
  %317 = vmatprep.subr.bf16.mxu0 0
  %318 = vmatpush1.bf16.msra.mxu0 0
  %319 = vmatprep.subr.bf16.mxu0 0
  %320 = vmatpush1.bf16.msra.mxu0 0
  %321 = vmatprep.subr.bf16.mxu0 0
  %322 = vmatpush1.bf16.msra.mxu0 0
  %323 = vmatprep.subr.bf16.mxu0 0
  %324 = vmatpush1.bf16.msra.mxu0 0
  %325 = vmatprep.subr.bf16.mxu0 0
  %326 = vmatpush1.bf16.msra.mxu0 0
  %327 = vmatprep.mubr.bf16.mxu0 0
  %328 = vmatmul.mubr.bf16.gmra.mrb[0].mxu0 %v109
  %v329 = vpop.f32.mrb[0].mxu0
  %v330 = vadd.f32 %v238, %v329
  %v331 = vpop.f32.mrb[0].mxu0
  %v332 = vadd.f32 %v242, %v331
  %v333 = vpop.f32.mrb[0].mxu0
  %v334 = vadd.f32 %v238, %v333
  %v335 = vpop.f32.mrb[0].mxu0
  %v336 = vadd.f32 %v242, %v335
  %337 = vdwg.mxu0
  %338 = vmatprep.subr.bf16.mxu0 %v282
  %339 = vmatpush1.bf16.msra.mxu0 %v281
  %340 = vmatprep.subr.bf16.mxu0 %v286
  %341 = vmatpush1.bf16.msra.mxu0 %v285
  %342 = vmatprep.subr.bf16.mxu0 0
  %343 = vmatpush1.bf16.msra.mxu0 0
  %344 = vmatprep.subr.bf16.mxu0 0
  %345 = vmatpush1.bf16.msra.mxu0 0
  %346 = vmatprep.subr.bf16.mxu0 0
  %347 = vmatpush1.bf16.msra.mxu0 0
  %348 = vmatprep.subr.bf16.mxu0 0
  %349 = vmatpush1.bf16.msra.mxu0 0
  %350 = vmatprep.subr.bf16.mxu0 0
  %351 = vmatpush1.bf16.msra.mxu0 0
  %352 = vmatprep.subr.bf16.mxu0 0
  %353 = vmatpush1.bf16.msra.mxu0 0
  %354 = vmatprep.subr.bf16.mxu0 0
  %355 = vmatpush1.bf16.msra.mxu0 0
  %356 = vmatprep.subr.bf16.mxu0 0
  %357 = vmatpush1.bf16.msra.mxu0 0
  %358 = vmatprep.subr.bf16.mxu0 0
  %359 = vmatpush1.bf16.msra.mxu0 0
  %360 = vmatprep.subr.bf16.mxu0 0
  %361 = vmatpush1.bf16.msra.mxu0 0
  %362 = vmatprep.subr.bf16.mxu0 0
  %363 = vmatpush1.bf16.msra.mxu0 0
  %364 = vmatprep.subr.bf16.mxu0 0
  %365 = vmatpush1.bf16.msra.mxu0 0
  %366 = vmatprep.subr.bf16.mxu0 0
  %367 = vmatpush1.bf16.msra.mxu0 0
  %368 = vmatprep.subr.bf16.mxu0 0
  %369 = vmatpush1.bf16.msra.mxu0 0
  %370 = vmatprep.mubr.bf16.mxu0 0
  %371 = vmatmul.mubr.bf16.gmra.mrb[0].mxu0 %v109
  %v372 = vpop.f32.mrb[0].mxu0
  %v373 = vadd.f32 %v246, %v372
  %v374 = vpop.f32.mrb[0].mxu0
  %v375 = vadd.f32 %v250, %v374
  %v376 = vpop.f32.mrb[0].mxu0
  %v377 = vadd.f32 %v246, %v376
  %v378 = vpop.f32.mrb[0].mxu0
  %v379 = vadd.f32 %v250, %v378
  %380 = vdwg.mxu0
  %v381 = vpack.c.bf16 %v334, %v330
  %v382 = vpack.c.bf16 %v336, %v332
  %v383 = vpack.c.bf16 %v377, %v373
  %v384 = vpack.c.bf16 %v379, %v375
  %v389 = vunpack.c.l.b16 %v381
  %v390 = vunpack.c.l.b16 %v382
  %v391 = vunpack.c.l.b16 %v383
  %v392 = vunpack.c.l.b16 %v384
  %v393 = vunpack.c.h.b16 %v381
  %v394 = vunpack.c.h.b16 %v382
  %v395 = vunpack.c.h.b16 %v383
  %v396 = vunpack.c.h.b16 %v384
  %v397 = vpack.c.b16 %v390, %v389
  %v398 = vpack.c.b16 %v392, %v391
  %v399 = vpack.c.b16 %v394, %v393
  %v400 = vpack.c.b16 %v396, %v395
  %405 = vst [vmem:[%s8] sm:$0xff] %v397
  %406 = vst [vmem:[%s8 + $0x8] sm:$0xff] %v398
  %407 = vst [vmem:[%s8 + $0x10] sm:$0xff] %v399
  %408 = vst [vmem:[%s8 + $0x18] sm:$0xff] %v400
  %v409 = vld [vmem:[%s3] sm:$0xff]
  %v410 = vld [vmem:[%s3 + $0x8] sm:$0xff]
  %v411 = vld [vmem:[%s3 + $0x10] sm:$0xff]
  %v412 = vld [vmem:[%s3 + $0x18] sm:$0xff]
  %v413 = vld [vmem:[%s3 + $0x20] sm:$0xff]
  %v414 = vld [vmem:[%s3 + $0x28] sm:$0xff]
  %v415 = vld [vmem:[%s3 + $0x30] sm:$0xff]
  %v416 = vld [vmem:[%s3 + $0x38] sm:$0xff]
  %v417 = vld [vmem:[%s6] sm:$0xf]
  %v419 = vlaneseq
  %v420 = vshrl.u32 %v419, 7
  %v421 = vsub.s32 0, %v420
  %v422 = vrot.slane %v417, %v421
  %v423 = vlaneseq
  %v424 = vshrl.u32 %v423, 7
  %v425 = vsub.s32 1, %v424
  %v426 = vrot.slane %v417, %v425
  %v427 = vlaneseq
  %v428 = vshrl.u32 %v427, 7
  %v429 = vsub.s32 2, %v428
  %v430 = vrot.slane %v417, %v429
  %v431 = vlaneseq
  %v432 = vshrl.u32 %v431, 7
  %v433 = vsub.s32 3, %v432
  %v434 = vrot.slane %v417, %v433
  %v447 = vunpack.c.l.b16 %v409
  %v448 = vunpack.c.h.b16 %v409
  %v449 = vunpack.c.l.b16 %v410
  %v450 = vunpack.c.h.b16 %v410
  %v451 = vunpack.c.l.b16 %v411
  %v452 = vunpack.c.h.b16 %v411
  %v453 = vunpack.c.l.b16 %v412
  %v454 = vunpack.c.h.b16 %v412
  %v455 = vunpack.c.l.b16 %v413
  %v456 = vunpack.c.h.b16 %v413
  %v457 = vunpack.c.l.b16 %v414
  %v458 = vunpack.c.h.b16 %v414
  %v459 = vunpack.c.l.b16 %v415
  %v460 = vunpack.c.h.b16 %v415
  %v461 = vunpack.c.l.b16 %v416
  %v462 = vunpack.c.h.b16 %v416
  %v463 = vpack.c.b16 %v451, %v447
  %v464 = vpack.c.b16 %v452, %v448
  %v465 = vpack.c.b16 %v453, %v449
  %v466 = vpack.c.b16 %v454, %v450
  %v467 = vpack.c.b16 %v459, %v455
  %v468 = vpack.c.b16 %v460, %v456
  %v469 = vpack.c.b16 %v461, %v457
  %v470 = vpack.c.b16 %v462, %v458
  %479 = vmatprep.subr.bf16.mxu0 %v464
  %480 = vmatpush1.bf16.msra.mxu0 %v463
  %481 = vmatprep.subr.bf16.mxu0 %v468
  %482 = vmatpush1.bf16.msra.mxu0 %v467
  %483 = vmatprep.subr.bf16.mxu0 0
  %484 = vmatpush1.bf16.msra.mxu0 0
  %485 = vmatprep.subr.bf16.mxu0 0
  %486 = vmatpush1.bf16.msra.mxu0 0
  %487 = vmatprep.subr.bf16.mxu0 0
  %488 = vmatpush1.bf16.msra.mxu0 0
  %489 = vmatprep.subr.bf16.mxu0 0
  %490 = vmatpush1.bf16.msra.mxu0 0
  %491 = vmatprep.subr.bf16.mxu0 0
  %492 = vmatpush1.bf16.msra.mxu0 0
  %493 = vmatprep.subr.bf16.mxu0 0
  %494 = vmatpush1.bf16.msra.mxu0 0
  %495 = vmatprep.subr.bf16.mxu0 0
  %496 = vmatpush1.bf16.msra.mxu0 0
  %497 = vmatprep.subr.bf16.mxu0 0
  %498 = vmatpush1.bf16.msra.mxu0 0
  %499 = vmatprep.subr.bf16.mxu0 0
  %500 = vmatpush1.bf16.msra.mxu0 0
  %501 = vmatprep.subr.bf16.mxu0 0
  %502 = vmatpush1.bf16.msra.mxu0 0
  %503 = vmatprep.subr.bf16.mxu0 0
  %504 = vmatpush1.bf16.msra.mxu0 0
  %505 = vmatprep.subr.bf16.mxu0 0
  %506 = vmatpush1.bf16.msra.mxu0 0
  %507 = vmatprep.subr.bf16.mxu0 0
  %508 = vmatpush1.bf16.msra.mxu0 0
  %509 = vmatprep.subr.bf16.mxu0 0
  %510 = vmatpush1.bf16.msra.mxu0 0
  %511 = vmatprep.mubr.bf16.mxu0 0
  %512 = vmatmul.mubr.bf16.gmra.mrb[0].mxu0 %v109
  %v513 = vpop.f32.mrb[0].mxu0
  %v514 = vadd.f32 %v422, %v513
  %v515 = vpop.f32.mrb[0].mxu0
  %v516 = vadd.f32 %v426, %v515
  %v517 = vpop.f32.mrb[0].mxu0
  %v518 = vadd.f32 %v422, %v517
  %v519 = vpop.f32.mrb[0].mxu0
  %v520 = vadd.f32 %v426, %v519
  %521 = vdwg.mxu0
  %522 = vmatprep.subr.bf16.mxu0 %v466
  %523 = vmatpush1.bf16.msra.mxu0 %v465
  %524 = vmatprep.subr.bf16.mxu0 %v470
  %525 = vmatpush1.bf16.msra.mxu0 %v469
  %526 = vmatprep.subr.bf16.mxu0 0
  %527 = vmatpush1.bf16.msra.mxu0 0
  %528 = vmatprep.subr.bf16.mxu0 0
  %529 = vmatpush1.bf16.msra.mxu0 0
  %530 = vmatprep.subr.bf16.mxu0 0
  %531 = vmatpush1.bf16.msra.mxu0 0
  %532 = vmatprep.subr.bf16.mxu0 0
  %533 = vmatpush1.bf16.msra.mxu0 0
  %534 = vmatprep.subr.bf16.mxu0 0
  %535 = vmatpush1.bf16.msra.mxu0 0
  %536 = vmatprep.subr.bf16.mxu0 0
  %537 = vmatpush1.bf16.msra.mxu0 0
  %538 = vmatprep.subr.bf16.mxu0 0
  %539 = vmatpush1.bf16.msra.mxu0 0
  %540 = vmatprep.subr.bf16.mxu0 0
  %541 = vmatpush1.bf16.msra.mxu0 0
  %542 = vmatprep.subr.bf16.mxu0 0
  %543 = vmatpush1.bf16.msra.mxu0 0
  %544 = vmatprep.subr.bf16.mxu0 0
  %545 = vmatpush1.bf16.msra.mxu0 0
  %546 = vmatprep.subr.bf16.mxu0 0
  %547 = vmatpush1.bf16.msra.mxu0 0
  %548 = vmatprep.subr.bf16.mxu0 0
  %549 = vmatpush1.bf16.msra.mxu0 0
  %550 = vmatprep.subr.bf16.mxu0 0
  %551 = vmatpush1.bf16.msra.mxu0 0
  %552 = vmatprep.subr.bf16.mxu0 0
  %553 = vmatpush1.bf16.msra.mxu0 0
  %554 = vmatprep.mubr.bf16.mxu0 0
  %555 = vmatmul.mubr.bf16.gmra.mrb[0].mxu0 %v109
  %v556 = vpop.f32.mrb[0].mxu0
  %v557 = vadd.f32 %v430, %v556
  %v558 = vpop.f32.mrb[0].mxu0
  %v559 = vadd.f32 %v434, %v558
  %v560 = vpop.f32.mrb[0].mxu0
  %v561 = vadd.f32 %v430, %v560
  %v562 = vpop.f32.mrb[0].mxu0
  %v563 = vadd.f32 %v434, %v562
  %564 = vdwg.mxu0
  %v565 = vpack.c.bf16 %v518, %v514
  %v566 = vpack.c.bf16 %v520, %v516
  %v567 = vpack.c.bf16 %v561, %v557
  %v568 = vpack.c.bf16 %v563, %v559
  %v573 = vunpack.c.l.b16 %v565
  %v574 = vunpack.c.l.b16 %v566
  %v575 = vunpack.c.l.b16 %v567
  %v576 = vunpack.c.l.b16 %v568
  %v577 = vunpack.c.h.b16 %v565
  %v578 = vunpack.c.h.b16 %v566
  %v579 = vunpack.c.h.b16 %v567
  %v580 = vunpack.c.h.b16 %v568
  %v581 = vpack.c.b16 %v574, %v573
  %v582 = vpack.c.b16 %v576, %v575
  %v583 = vpack.c.b16 %v578, %v577
  %v584 = vpack.c.b16 %v580, %v579
  %589 = vst [vmem:[%s9] sm:$0xff] %v581
  %590 = vst [vmem:[%s9 + $0x8] sm:$0xff] %v582
  %591 = vst [vmem:[%s9 + $0x10] sm:$0xff] %v583
  %592 = vst [vmem:[%s9 + $0x18] sm:$0xff] %v584
  // Predicated region
  $region30: #{decoder_transformer_forward.21} parent=0 // pred_check
    _
  $region31: #{decoder_transformer_forward.21} parent=0 // pred_check_branch
    %594 = sbr.rel (0) target = $region33
  $region32: #{decoder_transformer_forward.21} parent=0 // pred_region
    _
  $region33: #{decoder_transformer_forward.21} parent=0 // pred_fallthru
    _
  // Predicated region
  $region34: #{decoder_transformer_forward.21} parent=0 // pred_check
    _
  $region35: #{decoder_transformer_forward.21} parent=0 // pred_check_branch
    %596 = sbr.rel (0) target = $region37
  $region36: #{decoder_transformer_forward.21} parent=0 // pred_region
    _
  $region37: #{decoder_transformer_forward.21} parent=0 // pred_fallthru
    _
  // Predicated region
  $region38: #{decoder_transformer_forward.21} parent=0 // pred_check
    _
  $region39: #{decoder_transformer_forward.21} parent=0 // pred_check_branch
    %598 = sbr.rel (0) target = $region41
  $region40: #{decoder_transformer_forward.21} parent=0 // pred_region
    _
  $region41: #{decoder_transformer_forward.21} parent=0 // pred_fallthru
    _
  // Predicated region
  $region42: #{decoder_transformer_forward.21} parent=0 // pred_check
    _
  $region43: #{decoder_transformer_forward.21} parent=0 // pred_check_branch
    %600 = sbr.rel (0) target = $region45
  $region44: #{decoder_transformer_forward.21} parent=0 // pred_region
    _
  $region45: #{decoder_transformer_forward.21} parent=0 // pred_fallthru
    _
  // Predicated region
  $region46: #{decoder_transformer_forward.21} parent=0 // pred_check
    _
  $region47: #{decoder_transformer_forward.21} parent=0 // pred_check_branch
    %602 = sbr.rel (0) target = $region49
  $region48: #{decoder_transformer_forward.21} parent=0 // pred_region
    _
  $region49: #{decoder_transformer_forward.21} parent=0 // pred_fallthru
    _
  // Predicated region
  $region50: #{decoder_transformer_forward.21} parent=0 // pred_check
    _
  $region51: #{decoder_transformer_forward.21} parent=0 // pred_check_branch
    %604 = sbr.rel (0) target = $region53
  $region52: #{decoder_transformer_forward.21} parent=0 // pred_region
    _
  $region53: #{decoder_transformer_forward.21} parent=0 // pred_fallthru
    _

// kernel: decoder_transformer_forward.26
$region0: #{decoder_transformer_forward.26}
  #allocation0 [shape = 'u32[]', space=smem, size = 0x4, offset = 0x4, fixed_abs, tag = 'smem constant byte address 0x4 - core index']
  #allocation1 [shape = 'u32[144,128]{1,0:T(1,128)}', space=vmem, size = 0x12000, scoped, tag = 'internal scratch']
  %s0 = inlined_call_operand.vmem [shape: bf16[16,32], index: 0, kind: input, shape index: {}]
  %s1 = inlined_call_operand.vmem [shape: bf16[32,512], index: 1, kind: input, shape index: {}]
  %s2 = inlined_call_operand.vmem [shape: f32[1,512], index: 2, kind: input, shape index: {}]
  %s3 = inlined_call_operand.vmem [shape: bf16[16,512], index: 3, kind: output, shape index: {}]
  %s4 = sld [smem:[#allocation0]]
  $region22: #{decoder_transformer_forward.26} parent=0
    _
  %s6 = ssub.s32 1, %s4
  %s7 = scalar_select 0, %s6, %s4
  // Predicated region
  $region2: #{decoder_transformer_forward.26} parent=0 // pred_check
    _
  $region3: #{decoder_transformer_forward.26} parent=0 // pred_check_branch
    %9 = sbr.rel (0) target = $region5
  $region4: #{decoder_transformer_forward.26} parent=0 // pred_region
    _
  $region5: #{decoder_transformer_forward.26} parent=0 // pred_fallthru
    _
  // Predicated region
  $region6: #{decoder_transformer_forward.26} parent=0 // pred_check
    _
  $region7: #{decoder_transformer_forward.26} parent=0 // pred_check_branch
    %11 = sbr.rel (0) target = $region9
  $region8: #{decoder_transformer_forward.26} parent=0 // pred_region
    _
  $region9: #{decoder_transformer_forward.26} parent=0 // pred_fallthru
    _
  // Predicated region
  $region10: #{decoder_transformer_forward.26} parent=0 // pred_check
    _
  $region11: #{decoder_transformer_forward.26} parent=0 // pred_check_branch
    %13 = sbr.rel (0) target = $region13
  $region12: #{decoder_transformer_forward.26} parent=0 // pred_region
    _
  $region13: #{decoder_transformer_forward.26} parent=0 // pred_fallthru
    _
  %v15 = vld [vmem:[%s0] sm:$0xf]
  %v16 = vld [vmem:[%s0 + $0x4] sm:$0xf]
  %v17 = vld [vmem:[%s1] sm:$0xff]
  %v18 = vld [vmem:[%s1 + $0x8] sm:$0xff]
  %v19 = vld [vmem:[%s1 + $0x10] sm:$0xff]
  %v20 = vld [vmem:[%s1 + $0x18] sm:$0xff]
  %v21 = vld [vmem:[%s1 + $0x20] sm:$0xff]
  %v22 = vld [vmem:[%s1 + $0x28] sm:$0xff]
  %v23 = vld [vmem:[%s1 + $0x30] sm:$0xff]
  %v24 = vld [vmem:[%s1 + $0x38] sm:$0xff]
  %v25 = vld [vmem:[%s2] sm:$0xf]
  %v27 = vlaneseq
  %v28 = vshrl.u32 %v27, 7
  %v29 = vsub.s32 0, %v28
  %v30 = vrot.slane %v25, %v29
  %v31 = vlaneseq
  %v32 = vshrl.u32 %v31, 7
  %v33 = vsub.s32 1, %v32
  %v34 = vrot.slane %v25, %v33
  %v35 = vlaneseq
  %v36 = vshrl.u32 %v35, 7
  %v37 = vsub.s32 2, %v36
  %v38 = vrot.slane %v25, %v37
  %v39 = vlaneseq
  %v40 = vshrl.u32 %v39, 7
  %v41 = vsub.s32 3, %v40
  %v42 = vrot.slane %v25, %v41
  %v49 = vunpack.c.l.b16 %v15
  %v50 = vunpack.c.l.b16 %v16
  %v51 = vpack.c.b16 %v50, %v49
  %v60 = vunpack.c.l.b16 %v17
  %v61 = vunpack.c.h.b16 %v17
  %v62 = vunpack.c.l.b16 %v18
  %v63 = vunpack.c.h.b16 %v18
  %v64 = vunpack.c.l.b16 %v19
  %v65 = vunpack.c.h.b16 %v19
  %v66 = vunpack.c.l.b16 %v20
  %v67 = vunpack.c.h.b16 %v20
  %v68 = vunpack.c.l.b16 %v21
  %v69 = vunpack.c.h.b16 %v21
  %v70 = vunpack.c.l.b16 %v22
  %v71 = vunpack.c.h.b16 %v22
  %v72 = vunpack.c.l.b16 %v23
  %v73 = vunpack.c.h.b16 %v23
  %v74 = vunpack.c.l.b16 %v24
  %v75 = vunpack.c.h.b16 %v24
  %v76 = vpack.c.b16 %v64, %v60
  %v77 = vpack.c.b16 %v65, %v61
  %v78 = vpack.c.b16 %v66, %v62
  %v79 = vpack.c.b16 %v67, %v63
  %v80 = vpack.c.b16 %v72, %v68
  %v81 = vpack.c.b16 %v73, %v69
  %v82 = vpack.c.b16 %v74, %v70
  %v83 = vpack.c.b16 %v75, %v71
  %vm92 = vcmask 261120
  %v94 = vsel %vm92, %v51, 0
  %96 = vmatprep.subr.bf16.mxu0 %v77
  %97 = vmatpush1.bf16.msra.mxu0 %v76
  %98 = vmatprep.subr.bf16.mxu0 %v81
  %99 = vmatpush1.bf16.msra.mxu0 %v80
  %100 = vmatprep.subr.bf16.mxu0 0
  %101 = vmatpush1.bf16.msra.mxu0 0
  %102 = vmatprep.subr.bf16.mxu0 0
  %103 = vmatpush1.bf16.msra.mxu0 0
  %104 = vmatprep.subr.bf16.mxu0 0
  %105 = vmatpush1.bf16.msra.mxu0 0
  %106 = vmatprep.subr.bf16.mxu0 0
  %107 = vmatpush1.bf16.msra.mxu0 0
  %108 = vmatprep.subr.bf16.mxu0 0
  %109 = vmatpush1.bf16.msra.mxu0 0
  %110 = vmatprep.subr.bf16.mxu0 0
  %111 = vmatpush1.bf16.msra.mxu0 0
  %112 = vmatprep.subr.bf16.mxu0 0
  %113 = vmatpush1.bf16.msra.mxu0 0
  %114 = vmatprep.subr.bf16.mxu0 0
  %115 = vmatpush1.bf16.msra.mxu0 0
  %116 = vmatprep.subr.bf16.mxu0 0
  %117 = vmatpush1.bf16.msra.mxu0 0
  %118 = vmatprep.subr.bf16.mxu0 0
  %119 = vmatpush1.bf16.msra.mxu0 0
  %120 = vmatprep.subr.bf16.mxu0 0
  %121 = vmatpush1.bf16.msra.mxu0 0
  %122 = vmatprep.subr.bf16.mxu0 0
  %123 = vmatpush1.bf16.msra.mxu0 0
  %124 = vmatprep.subr.bf16.mxu0 0
  %125 = vmatpush1.bf16.msra.mxu0 0
  %126 = vmatprep.subr.bf16.mxu0 0
  %127 = vmatpush1.bf16.msra.mxu0 0
  %128 = vmatprep.mubr.bf16.mxu0 0
  %129 = vmatmul.mubr.bf16.gmra.mrb[0].mxu0 %v94
  %v130 = vpop.f32.mrb[0].mxu0
  %v131 = vadd.f32 %v30, %v130
  %v132 = vpop.f32.mrb[0].mxu0
  %v133 = vadd.f32 %v34, %v132
  %v134 = vpop.f32.mrb[0].mxu0
  %v135 = vadd.f32 %v30, %v134
  %v136 = vpop.f32.mrb[0].mxu0
  %v137 = vadd.f32 %v34, %v136
  %138 = vdwg.mxu0
  %139 = vmatprep.subr.bf16.mxu0 %v79
  %140 = vmatpush1.bf16.msra.mxu0 %v78
  %141 = vmatprep.subr.bf16.mxu0 %v83
  %142 = vmatpush1.bf16.msra.mxu0 %v82
  %143 = vmatprep.subr.bf16.mxu0 0
  %144 = vmatpush1.bf16.msra.mxu0 0
  %145 = vmatprep.subr.bf16.mxu0 0
  %146 = vmatpush1.bf16.msra.mxu0 0
  %147 = vmatprep.subr.bf16.mxu0 0
  %148 = vmatpush1.bf16.msra.mxu0 0
  %149 = vmatprep.subr.bf16.mxu0 0
  %150 = vmatpush1.bf16.msra.mxu0 0
  %151 = vmatprep.subr.bf16.mxu0 0
  %152 = vmatpush1.bf16.msra.mxu0 0
  %153 = vmatprep.subr.bf16.mxu0 0
  %154 = vmatpush1.bf16.msra.mxu0 0
  %155 = vmatprep.subr.bf16.mxu0 0
  %156 = vmatpush1.bf16.msra.mxu0 0
  %157 = vmatprep.subr.bf16.mxu0 0
  %158 = vmatpush1.bf16.msra.mxu0 0
  %159 = vmatprep.subr.bf16.mxu0 0
  %160 = vmatpush1.bf16.msra.mxu0 0
  %161 = vmatprep.subr.bf16.mxu0 0
  %162 = vmatpush1.bf16.msra.mxu0 0
  %163 = vmatprep.subr.bf16.mxu0 0
  %164 = vmatpush1.bf16.msra.mxu0 0
  %165 = vmatprep.subr.bf16.mxu0 0
  %166 = vmatpush1.bf16.msra.mxu0 0
  %167 = vmatprep.subr.bf16.mxu0 0
  %168 = vmatpush1.bf16.msra.mxu0 0
  %169 = vmatprep.subr.bf16.mxu0 0
  %170 = vmatpush1.bf16.msra.mxu0 0
  %171 = vmatprep.mubr.bf16.mxu0 0
  %172 = vmatmul.mubr.bf16.gmra.mrb[0].mxu0 %v94
  %v173 = vpop.f32.mrb[0].mxu0
  %v174 = vadd.f32 %v38, %v173
  %v175 = vpop.f32.mrb[0].mxu0
  %v176 = vadd.f32 %v42, %v175
  %v177 = vpop.f32.mrb[0].mxu0
  %v178 = vadd.f32 %v38, %v177
  %v179 = vpop.f32.mrb[0].mxu0
  %v180 = vadd.f32 %v42, %v179
  %181 = vdwg.mxu0
  %v182 = vpack.c.bf16 %v135, %v131
  %v183 = vpack.c.bf16 %v137, %v133
  %v184 = vpack.c.bf16 %v178, %v174
  %v185 = vpack.c.bf16 %v180, %v176
  %v190 = vunpack.c.l.b16 %v182
  %v191 = vunpack.c.l.b16 %v183
  %v192 = vunpack.c.l.b16 %v184
  %v193 = vunpack.c.l.b16 %v185
  %v194 = vunpack.c.h.b16 %v182
  %v195 = vunpack.c.h.b16 %v183
  %v196 = vunpack.c.h.b16 %v184
  %v197 = vunpack.c.h.b16 %v185
  %v198 = vpack.c.b16 %v191, %v190
  %v199 = vpack.c.b16 %v193, %v192
  %v200 = vpack.c.b16 %v195, %v194
  %v201 = vpack.c.b16 %v197, %v196
  %206 = vst [vmem:[%s3] sm:$0xff] %v198
  %207 = vst [vmem:[%s3 + $0x8] sm:$0xff] %v199
  %208 = vst [vmem:[%s3 + $0x10] sm:$0xff] %v200
  %209 = vst [vmem:[%s3 + $0x18] sm:$0xff] %v201
  // Predicated region
  $region14: #{decoder_transformer_forward.26} parent=0 // pred_check
    _
  $region15: #{decoder_transformer_forward.26} parent=0 // pred_check_branch
    %211 = sbr.rel (0) target = $region17
  $region16: #{decoder_transformer_forward.26} parent=0 // pred_region
    _
  $region17: #{decoder_transformer_forward.26} parent=0 // pred_fallthru
    _
  // Predicated region
  $region18: #{decoder_transformer_forward.26} parent=0 // pred_check
    _
  $region19: #{decoder_transformer_forward.26} parent=0 // pred_check_branch
    %213 = sbr.rel (0) target = $region21
  $region20: #{decoder_transformer_forward.26} parent=0 // pred_region
    _
  $region21: #{decoder_transformer_forward.26} parent=0 // pred_fallthru
    _

// kernel: decoder_transformer_forward.30
$region0: #{decoder_transformer_forward.30}
  #allocation0 [shape = 'u32[]', space=smem, size = 0x4, offset = 0x4, fixed_abs, tag = 'smem constant byte address 0x4 - core index']
  #allocation1 [shape = 'u32[144,128]{1,0:T(1,128)}', space=vmem, size = 0x12000, scoped, tag = 'internal scratch']
  #allocation2 [shape = 'f32[16,32]{1,0:T(8,128)}', space=vmem, size = 0x2000, scoped, tag = 'scratch operand']
  %s0 = inlined_call_operand.vmem [shape: bf16[16,32], index: 0, kind: input, shape index: {}]
  %s1 = inlined_call_operand.vmem [shape: bf16[32,64], index: 1, kind: input, shape index: {}]
  %s2 = inlined_call_operand.vmem [shape: f32[1,64], index: 2, kind: input, shape index: {}]
  %s3 = inlined_call_operand.vmem [shape: bf16[64,32], index: 3, kind: input, shape index: {}]
  %s4 = inlined_call_operand.vmem [shape: f32[1,32], index: 4, kind: input, shape index: {}]
  %s5 = inlined_call_operand.vmem [shape: f32[1,32], index: 5, kind: input, shape index: {}]
  %s6 = inlined_call_operand.vmem [shape: f32[1,32], index: 6, kind: input, shape index: {}]
  %s7 = inlined_call_operand.vmem [shape: bf16[16,32], index: 7, kind: output, shape index: {}]
  %s8 = sld [smem:[#allocation0]]
  $region46: #{decoder_transformer_forward.30} parent=0
    _
  %s10 = ssub.s32 1, %s8
  %s11 = scalar_select 0, %s10, %s8
  // Predicated region
  $region2: #{decoder_transformer_forward.30} parent=0 // pred_check
    _
  $region3: #{decoder_transformer_forward.30} parent=0 // pred_check_branch
    %13 = sbr.rel (0) target = $region5
  $region4: #{decoder_transformer_forward.30} parent=0 // pred_region
    _
  $region5: #{decoder_transformer_forward.30} parent=0 // pred_fallthru
    _
  // Predicated region
  $region6: #{decoder_transformer_forward.30} parent=0 // pred_check
    _
  $region7: #{decoder_transformer_forward.30} parent=0 // pred_check_branch
    %15 = sbr.rel (0) target = $region9
  $region8: #{decoder_transformer_forward.30} parent=0 // pred_region
    _
  $region9: #{decoder_transformer_forward.30} parent=0 // pred_fallthru
    _
  // Predicated region
  $region10: #{decoder_transformer_forward.30} parent=0 // pred_check
    _
  $region11: #{decoder_transformer_forward.30} parent=0 // pred_check_branch
    %17 = sbr.rel (0) target = $region13
  $region12: #{decoder_transformer_forward.30} parent=0 // pred_region
    _
  $region13: #{decoder_transformer_forward.30} parent=0 // pred_fallthru
    _
  // Predicated region
  $region14: #{decoder_transformer_forward.30} parent=0 // pred_check
    _
  $region15: #{decoder_transformer_forward.30} parent=0 // pred_check_branch
    %19 = sbr.rel (0) target = $region17
  $region16: #{decoder_transformer_forward.30} parent=0 // pred_region
    _
  $region17: #{decoder_transformer_forward.30} parent=0 // pred_fallthru
    _
  // Predicated region
  $region18: #{decoder_transformer_forward.30} parent=0 // pred_check
    _
  $region19: #{decoder_transformer_forward.30} parent=0 // pred_check_branch
    %21 = sbr.rel (0) target = $region21
  $region20: #{decoder_transformer_forward.30} parent=0 // pred_region
    _
  $region21: #{decoder_transformer_forward.30} parent=0 // pred_fallthru
    _
  // Predicated region
  $region22: #{decoder_transformer_forward.30} parent=0 // pred_check
    _
  $region23: #{decoder_transformer_forward.30} parent=0 // pred_check_branch
    %23 = sbr.rel (0) target = $region25
  $region24: #{decoder_transformer_forward.30} parent=0 // pred_region
    _
  $region25: #{decoder_transformer_forward.30} parent=0 // pred_fallthru
    _
  // Predicated region
  $region26: #{decoder_transformer_forward.30} parent=0 // pred_check
    _
  $region27: #{decoder_transformer_forward.30} parent=0 // pred_check_branch
    %25 = sbr.rel (0) target = $region29
  $region28: #{decoder_transformer_forward.30} parent=0 // pred_region
    _
  $region29: #{decoder_transformer_forward.30} parent=0 // pred_fallthru
    _
  %p27 = scmp.eq.s32.totalorder 0, 0
  // Predicated region
  $region30: #{decoder_transformer_forward.30} parent=0 // pred_check
    %p28 = pneg %p27
  $region31: #{decoder_transformer_forward.30} parent=0 // pred_check_branch
    %30 = sbr.rel (%p28) target = $region33
  $region32: #{decoder_transformer_forward.30} parent=0 // pred_region
    %vm31 = vcmask 261120
    %32 = vst.msk [vmem:[#allocation2] sm:$0xff] %vm31, 0.0
    %33 = vst.msk [vmem:[#allocation2 + $0x8] sm:$0xff] %vm31, 0.0
  $region33: #{decoder_transformer_forward.30} parent=0 // pred_fallthru
    _
  %v34 = vld [vmem:[%s0] sm:$0xf]
  %v35 = vld [vmem:[%s0 + $0x4] sm:$0xf]
  %v36 = vld [vmem:[%s1] sm:$0xf]
  %v37 = vld [vmem:[%s1 + $0x4] sm:$0xf]
  %v38 = vld [vmem:[%s1 + $0x8] sm:$0xf]
  %v39 = vld [vmem:[%s1 + $0xc] sm:$0xf]
  %v40 = vld [vmem:[%s2] sm:$0x1]
  %v42 = vlaneseq
  %v43 = vshrl.u32 %v42, 7
  %v44 = vsub.s32 0, %v43
  %v45 = vrot.slane %v40, %v44
  %v49 = vunpack.c.l.b16 %v34
  %v50 = vunpack.c.l.b16 %v35
  %v51 = vpack.c.b16 %v50, %v49
  %v56 = vunpack.c.l.b16 %v36
  %v57 = vunpack.c.l.b16 %v37
  %v58 = vunpack.c.l.b16 %v38
  %v59 = vunpack.c.l.b16 %v39
  %v60 = vpack.c.b16 %v57, %v56
  %v61 = vpack.c.b16 %v59, %v58
  %vm64 = vcmask 261120
  %v66 = vsel %vm64, %v51, 0
  %68 = vmatprep.subr.bf16.mxu0 0
  %69 = vmatpush1.bf16.msra.mxu0 %v60
  %70 = vmatprep.subr.bf16.mxu0 0
  %71 = vmatpush1.bf16.msra.mxu0 %v61
  %72 = vmatprep.subr.bf16.mxu0 0
  %73 = vmatpush1.bf16.msra.mxu0 0
  %74 = vmatprep.subr.bf16.mxu0 0
  %75 = vmatpush1.bf16.msra.mxu0 0
  %76 = vmatprep.subr.bf16.mxu0 0
  %77 = vmatpush1.bf16.msra.mxu0 0
  %78 = vmatprep.subr.bf16.mxu0 0
  %79 = vmatpush1.bf16.msra.mxu0 0
  %80 = vmatprep.subr.bf16.mxu0 0
  %81 = vmatpush1.bf16.msra.mxu0 0
  %82 = vmatprep.subr.bf16.mxu0 0
  %83 = vmatpush1.bf16.msra.mxu0 0
  %84 = vmatprep.subr.bf16.mxu0 0
  %85 = vmatpush1.bf16.msra.mxu0 0
  %86 = vmatprep.subr.bf16.mxu0 0
  %87 = vmatpush1.bf16.msra.mxu0 0
  %88 = vmatprep.subr.bf16.mxu0 0
  %89 = vmatpush1.bf16.msra.mxu0 0
  %90 = vmatprep.subr.bf16.mxu0 0
  %91 = vmatpush1.bf16.msra.mxu0 0
  %92 = vmatprep.subr.bf16.mxu0 0
  %93 = vmatpush1.bf16.msra.mxu0 0
  %94 = vmatprep.subr.bf16.mxu0 0
  %95 = vmatpush1.bf16.msra.mxu0 0
  %96 = vmatprep.subr.bf16.mxu0 0
  %97 = vmatpush1.bf16.msra.mxu0 0
  %98 = vmatprep.subr.bf16.mxu0 0
  %99 = vmatpush1.bf16.msra.mxu0 0
  %100 = vmatprep.mubr.bf16.mxu0 0
  %101 = vmatmul.mubr.bf16.gmra.mrb[0].mxu0 %v66
  %v102 = vpop.f32.mrb[0].mxu0
  %v103 = vadd.f32 %v45, %v102
  %v104 = vpop.f32.mrb[0].mxu0
  %v105 = vpop.f32.mrb[0].mxu0
  %v106 = vadd.f32 %v45, %v105
  %v107 = vpop.f32.mrb[0].mxu0
  %108 = vdwg.mxu0
  %v109 = vmax.f32 %v103, 0.0
  %v110 = vmax.f32 %v106, 0.0
  %v111 = vld [vmem:[#allocation2] sm:$0xff]
  %v112 = vld [vmem:[#allocation2 + $0x8] sm:$0xff]
  %v113 = vpack.c.bf16 %v110, %v109
  %v114 = vld [vmem:[%s3] sm:$0xf]
  %v115 = vld [vmem:[%s3 + $0x4] sm:$0xf]
  %v116 = vld [vmem:[%s3 + $0x8] sm:$0xf]
  %v117 = vld [vmem:[%s3 + $0xc] sm:$0xf]
  %v118 = vld [vmem:[%s3 + $0x10] sm:$0xf]
  %v119 = vld [vmem:[%s3 + $0x14] sm:$0xf]
  %v120 = vld [vmem:[%s3 + $0x18] sm:$0xf]
  %v121 = vld [vmem:[%s3 + $0x1c] sm:$0xf]
  %v130 = vunpack.c.l.b16 %v114
  %v131 = vunpack.c.l.b16 %v115
  %v132 = vunpack.c.l.b16 %v116
  %v133 = vunpack.c.l.b16 %v117
  %v134 = vunpack.c.l.b16 %v118
  %v135 = vunpack.c.l.b16 %v119
  %v136 = vunpack.c.l.b16 %v120
  %v137 = vunpack.c.l.b16 %v121
  %v138 = vpack.c.b16 %v131, %v130
  %v139 = vpack.c.b16 %v133, %v132
  %v140 = vpack.c.b16 %v135, %v134
  %v141 = vpack.c.b16 %v137, %v136
  %vm146 = vcmask 523264
  %v148 = vsel %vm146, %v113, 0
  %150 = vmatprep.subr.bf16.mxu0 0
  %151 = vmatpush1.bf16.msra.mxu0 %v138
  %152 = vmatprep.subr.bf16.mxu0 0
  %153 = vmatpush1.bf16.msra.mxu0 %v139
  %154 = vmatprep.subr.bf16.mxu0 0
  %155 = vmatpush1.bf16.msra.mxu0 %v140
  %156 = vmatprep.subr.bf16.mxu0 0
  %157 = vmatpush1.bf16.msra.mxu0 %v141
  %158 = vmatprep.subr.bf16.mxu0 0
  %159 = vmatpush1.bf16.msra.mxu0 0
  %160 = vmatprep.subr.bf16.mxu0 0
  %161 = vmatpush1.bf16.msra.mxu0 0
  %162 = vmatprep.subr.bf16.mxu0 0
  %163 = vmatpush1.bf16.msra.mxu0 0
  %164 = vmatprep.subr.bf16.mxu0 0
  %165 = vmatpush1.bf16.msra.mxu0 0
  %166 = vmatprep.subr.bf16.mxu0 0
  %167 = vmatpush1.bf16.msra.mxu0 0
  %168 = vmatprep.subr.bf16.mxu0 0
  %169 = vmatpush1.bf16.msra.mxu0 0
  %170 = vmatprep.subr.bf16.mxu0 0
  %171 = vmatpush1.bf16.msra.mxu0 0
  %172 = vmatprep.subr.bf16.mxu0 0
  %173 = vmatpush1.bf16.msra.mxu0 0
  %174 = vmatprep.subr.bf16.mxu0 0
  %175 = vmatpush1.bf16.msra.mxu0 0
  %176 = vmatprep.subr.bf16.mxu0 0
  %177 = vmatpush1.bf16.msra.mxu0 0
  %178 = vmatprep.subr.bf16.mxu0 0
  %179 = vmatpush1.bf16.msra.mxu0 0
  %180 = vmatprep.subr.bf16.mxu0 0
  %181 = vmatpush1.bf16.msra.mxu0 0
  %182 = vmatprep.mubr.bf16.mxu0 0
  %183 = vmatmul.mubr.bf16.gmra.mrb[0].mxu0 %v148
  %v184 = vpop.f32.mrb[0].mxu0
  %v185 = vadd.f32 0.0, %v184
  %v186 = vpop.f32.mrb[0].mxu0
  %v187 = vpop.f32.mrb[0].mxu0
  %v188 = vadd.f32 0.0, %v187
  %v189 = vpop.f32.mrb[0].mxu0
  %190 = vdwg.mxu0
  %v191 = vadd.f32 %v111, %v185
  %v192 = vadd.f32 %v112, %v188
  %193 = vst.msk [vmem:[#allocation2] sm:$0xff] %vm64, %v191
  %194 = vst.msk [vmem:[#allocation2 + $0x8] sm:$0xff] %vm64, %v192
  // Predicated region
  $region34: #{decoder_transformer_forward.30} parent=0 // pred_check
    %p195 = pneg %p27
  $region35: #{decoder_transformer_forward.30} parent=0 // pred_check_branch
    %197 = sbr.rel (%p195) target = $region37
  $region36: #{decoder_transformer_forward.30} parent=0 // pred_region
    %v198 = vld [vmem:[#allocation2] sm:$0xff]
    %v199 = vld [vmem:[#allocation2 + $0x8] sm:$0xff]
    %v200 = vld [vmem:[%s4] sm:$0x1]
    %v202 = vlaneseq
    %v203 = vshrl.u32 %v202, 7
    %v204 = vsub.s32 0, %v203
    %v205 = vrot.slane %v200, %v204
    %v207 = vadd.f32 %v198, %v205
    %v208 = vadd.f32 %v199, %v205
    %v209 = vld [vmem:[%s0] sm:$0xf]
    %v210 = vld [vmem:[%s0 + $0x4] sm:$0xf]
    %v211 = vunpack.c.l.bf16 %v209
    %v212 = vunpack.c.l.bf16 %v210
    %v213 = vadd.f32 %v207, %v211
    %v214 = vadd.f32 %v208, %v212
    %v215 = vsel %vm64, %v213, 0.0
    %216 = vadd.xlane.f32.xlu0 %v215
    %v217 = vpop.xlane.xlu0 %216
    %v218 = vsel %vm64, %v214, 0.0
    %219 = vadd.xlane.f32.xlu0 %v218
    %v220 = vpop.xlane.xlu0 %219
    %v221 = vrcp.pop 32.0
    %v222 = vmul.f32 %v217, %v221
    %v223 = vmul.f32 %v220, %v221
    %v224 = vsub.f32 %v213, %v222
    %v225 = vsub.f32 %v214, %v223
    %v226 = vmul.f32 %v224, %v224
    %v227 = vmul.f32 %v225, %v225
    %v228 = vsel %vm64, %v226, 0.0
    %229 = vadd.xlane.f32.xlu0 %v228
    %v230 = vpop.xlane.xlu0 %229
    %v231 = vsel %vm64, %v227, 0.0
    %232 = vadd.xlane.f32.xlu0 %v231
    %v233 = vpop.xlane.xlu0 %232
    %v234 = vmul.f32 %v230, %v221
    %v235 = vmul.f32 %v233, %v221
    %v236 = vadd.f32 %v234, 1e-05
    %v237 = vadd.f32 %v235, 1e-05
    %v238 = vrsqrt.pop %v236
    %v239 = vrsqrt.pop %v237
    %v240 = vmul.f32 %v224, %v238
    %v241 = vmul.f32 %v225, %v239
    %v242 = vld [vmem:[%s5] sm:$0x1]
    %v244 = vlaneseq
    %v245 = vshrl.u32 %v244, 7
    %v246 = vsub.s32 0, %v245
    %v247 = vrot.slane %v242, %v246
    %v249 = vmul.f32 %v240, %v247
    %v250 = vmul.f32 %v241, %v247
    %v251 = vld [vmem:[%s6] sm:$0x1]
    %v253 = vlaneseq
    %v254 = vshrl.u32 %v253, 7
    %v255 = vsub.s32 0, %v254
    %v256 = vrot.slane %v251, %v255
    %v258 = vadd.f32 %v249, %v256
    %v259 = vadd.f32 %v250, %v256
    %v260 = vpack.c.bf16 %v259, %v258
    %v262 = vunpack.c.l.b16 %v260
    %v263 = vunpack.c.h.b16 %v260
    %v264 = vpack.c.b16 %v262, %v262
    %v265 = vpack.c.b16 %v263, %v263
    %vm268 = vcmask 257024
    %269 = vst.msk [vmem:[%s7] sm:$0xf] %vm268, %v264
    %270 = vst.msk [vmem:[%s7 + $0x4] sm:$0xf] %vm268, %v265
  $region37: #{decoder_transformer_forward.30} parent=0 // pred_fallthru
    _
  // Predicated region
  $region38: #{decoder_transformer_forward.30} parent=0 // pred_check
    _
  $region39: #{decoder_transformer_forward.30} parent=0 // pred_check_branch
    %272 = sbr.rel (0) target = $region41
  $region40: #{decoder_transformer_forward.30} parent=0 // pred_region
    _
  $region41: #{decoder_transformer_forward.30} parent=0 // pred_fallthru
    _
  // Predicated region
  $region42: #{decoder_transformer_forward.30} parent=0 // pred_check
    _
  $region43: #{decoder_transformer_forward.30} parent=0 // pred_check_branch
    %274 = sbr.rel (0) target = $region45
  $region44: #{decoder_transformer_forward.30} parent=0 // pred_region
    _
  $region45: #{decoder_transformer_forward.30} parent=0 // pred_fallthru
    _

// kernel: decoder_transformer_forward.27
$region0: #{decoder_transformer_forward.27}
  #allocation0 [shape = 'u32[]', space=smem, size = 0x4, offset = 0x4, fixed_abs, tag = 'smem constant byte address 0x4 - core index']
  #allocation1 [shape = 'u32[144,128]{1,0:T(1,128)}', space=vmem, size = 0x12000, scoped, tag = 'internal scratch']
  #allocation2 [shape = 'f32[8,1]{1,0:T(8,128)}', space=vmem, size = 0x1000, scoped, tag = 'scratch operand']
  #allocation3 [shape = 'f32[8,1]{1,0:T(8,128)}', space=vmem, size = 0x1000, scoped, tag = 'scratch operand']
  #allocation4 [shape = 'f32[8,128]{1,0:T(8,128)}', space=vmem, size = 0x1000, scoped, tag = 'scratch operand']
  %s0 = inlined_call_operand.vmem [shape: bf16[2,8,512], index: 0, kind: input, shape index: {}]
  %s1 = inlined_call_operand.vmem [shape: bf16[2,8,512], index: 1, kind: input, shape index: {}]
  %s2 = inlined_call_operand.vmem [shape: bf16[2,8,512], index: 2, kind: input, shape index: {}]
  %s3 = inlined_call_operand.vmem [shape: bf16[2,8,512], index: 3, kind: output, shape index: {}]
  %s4 = sld [smem:[#allocation0]]
  $region53: #{decoder_transformer_forward.27} parent=0
    _
  %s6 = ssub.s32 1, %s4
  %s7 = scalar_select 0, %s6, %s4
  loop: start=0, step=1, limit=10
  $region2: #{decoder_transformer_forward.27} parent=0 // loop_pre_header
    _
  $region3: #{decoder_transformer_forward.27} parent=0 // loop_header
    %s9 = sphi 0, %s13
    %p10 = scmp.ge.s32.totalorder %s9, 10
    %s16 = sphi 0, %s42
    %s17 = sphi 0, %s38
    %s18 = sphi 0, %s34
    %s19 = sphi 0, %s30
    %s20 = sphi 0, %s16
    %s21 = sphi 0, %s17
    %s22 = sphi 0, %s18
    %s23 = sphi 0, %s19
    %s24 = sphi 0, %s20
    %s25 = sphi 0, %s21
    %s26 = sphi 0, %s22
    %s27 = sphi 0, %s23
    %s49 = sphi 0, %s51
    %s52 = sphi 0, %s49
    %s53 = sphi 0, %s52
    %s69 = sphi 0, %s53
    %s79 = sphi 0, %s81
    %s82 = sphi 0, %s79
    %s83 = sphi 0, %s82
    %s99 = sphi 0, %s83
    %s109 = sphi 0, %s111
    %s112 = sphi 0, %s109
    %s113 = sphi 0, %s112
    %s129 = sphi 0, %s113
    %s139 = sphi 0, %s141
    %s142 = sphi 0, %s139
    %s143 = sphi 0, %s142
    %s159 = sphi 0, %s143
  $region4: #{decoder_transformer_forward.27} parent=0 // loop_header_branch
    %12 = sbr.rel (%p10) target = $region8
  $region5: #{decoder_transformer_forward.27} parent=0 // loop_body
    %s14 = ssub.s32 %s9, 1
    %s15 = ssub.s32 %s9, 2
    %s28 = sadd.s32 1, %s19
    %p29 = scmp.ge.s32.totalorder %s28, 1
    %s30 = scalar_select %p29, 0, %s28
    %s31 = sadd.s32 1, %s18
    %s32 = scalar_select %p29, %s31, %s18
    %p33 = scmp.ge.s32.totalorder %s32, 1
    %s34 = scalar_select %p33, 0, %s32
    %s35 = sadd.s32 1, %s17
    %s36 = scalar_select %p33, %s35, %s17
    %p37 = scmp.ge.s32.totalorder %s36, 4
    %s38 = scalar_select %p37, 0, %s36
    %s39 = sadd.s32 1, %s16
    %s40 = scalar_select %p37, %s39, %s16
    %p41 = scmp.ge.s32.totalorder %s40, 2
    %s42 = scalar_select %p41, 0, %s40
    %s43 = ssub.s32 %s16, %s42
    %s44 = ssub.s32 %s18, %s34
    %s45 = sor.u32 %s43, %s44
    %s46 = ssub.s32 %s17, %s38
    %s47 = sor.u32 %s45, %s46
    %p48 = scmp.eq.s32.totalorder %s47, 0
    %s50 = sadd.s32 %s49, 1
    %s51 = scalar_select %p48, %s49, %s50
    %p54 = pneg %p48
    %p55 = scmp.eq.s32.totalorder %s9, 7
    %p56 = por %p54, %p55
    %p57 = scmp.ne.s32.totalorder %s49, %s52
    %p58 = scmp.eq.s32.totalorder %s9, 0
    %p59 = por %p57, %p58
    %p60 = scmp.ne.s32.totalorder %s49, %s52
    %p61 = scmp.eq.s32.totalorder %s14, 7
    %p62 = por %p60, %p61
    %p63 = scmp.ne.s32.totalorder %s52, %s53
    %p64 = scmp.eq.s32.totalorder %s14, 0
    %p65 = por %p63, %p64
    %p66 = scmp.ne.s32.totalorder %s52, %s53
    %p67 = scmp.eq.s32.totalorder %s15, 7
    %p68 = por %p66, %p67
    %p70 = scmp.ne.s32.totalorder %s53, %s69
    %p71 = scmp.eq.s32.totalorder %s15, 0
    %p72 = por %p70, %p71
    %s73 = ssub.s32 %s16, %s42
    %s74 = ssub.s32 %s19, %s30
    %s75 = sor.u32 %s73, %s74
    %s76 = ssub.s32 %s17, %s38
    %s77 = sor.u32 %s75, %s76
    %p78 = scmp.eq.s32.totalorder %s77, 0
    %s80 = sadd.s32 %s79, 1
    %s81 = scalar_select %p78, %s79, %s80
    %p84 = pneg %p78
    %p85 = scmp.eq.s32.totalorder %s9, 7
    %p86 = por %p84, %p85
    %p87 = scmp.ne.s32.totalorder %s79, %s82
    %p88 = scmp.eq.s32.totalorder %s9, 0
    %p89 = por %p87, %p88
    %p90 = scmp.ne.s32.totalorder %s79, %s82
    %p91 = scmp.eq.s32.totalorder %s14, 7
    %p92 = por %p90, %p91
    %p93 = scmp.ne.s32.totalorder %s82, %s83
    %p94 = scmp.eq.s32.totalorder %s14, 0
    %p95 = por %p93, %p94
    %p96 = scmp.ne.s32.totalorder %s82, %s83
    %p97 = scmp.eq.s32.totalorder %s15, 7
    %p98 = por %p96, %p97
    %p100 = scmp.ne.s32.totalorder %s83, %s99
    %p101 = scmp.eq.s32.totalorder %s15, 0
    %p102 = por %p100, %p101
    %s103 = ssub.s32 %s16, %s42
    %s104 = ssub.s32 %s19, %s30
    %s105 = sor.u32 %s103, %s104
    %s106 = ssub.s32 %s17, %s38
    %s107 = sor.u32 %s105, %s106
    %p108 = scmp.eq.s32.totalorder %s107, 0
    %s110 = sadd.s32 %s109, 1
    %s111 = scalar_select %p108, %s109, %s110
    %p114 = pneg %p108
    %p115 = scmp.eq.s32.totalorder %s9, 7
    %p116 = por %p114, %p115
    %p117 = scmp.ne.s32.totalorder %s109, %s112
    %p118 = scmp.eq.s32.totalorder %s9, 0
    %p119 = por %p117, %p118
    %p120 = scmp.ne.s32.totalorder %s109, %s112
    %p121 = scmp.eq.s32.totalorder %s14, 7
    %p122 = por %p120, %p121
    %p123 = scmp.ne.s32.totalorder %s112, %s113
    %p124 = scmp.eq.s32.totalorder %s14, 0
    %p125 = por %p123, %p124
    %p126 = scmp.ne.s32.totalorder %s112, %s113
    %p127 = scmp.eq.s32.totalorder %s15, 7
    %p128 = por %p126, %p127
    %p130 = scmp.ne.s32.totalorder %s113, %s129
    %p131 = scmp.eq.s32.totalorder %s15, 0
    %p132 = por %p130, %p131
    %s133 = ssub.s32 %s16, %s42
    %s134 = ssub.s32 %s18, %s34
    %s135 = sor.u32 %s133, %s134
    %s136 = ssub.s32 %s17, %s38
    %s137 = sor.u32 %s135, %s136
    %p138 = scmp.eq.s32.totalorder %s137, 0
    %s140 = sadd.s32 %s139, 1
    %s141 = scalar_select %p138, %s139, %s140
    %p144 = pneg %p138
    %p145 = scmp.eq.s32.totalorder %s9, 7
    %p146 = por %p144, %p145
    %p147 = scmp.ne.s32.totalorder %s139, %s142
    %p148 = scmp.eq.s32.totalorder %s9, 0
    %p149 = por %p147, %p148
    %p150 = scmp.ne.s32.totalorder %s139, %s142
    %p151 = scmp.eq.s32.totalorder %s14, 7
    %p152 = por %p150, %p151
    %p153 = scmp.ne.s32.totalorder %s142, %s143
    %p154 = scmp.eq.s32.totalorder %s14, 0
    %p155 = por %p153, %p154
    %p156 = scmp.ne.s32.totalorder %s142, %s143
    %p157 = scmp.eq.s32.totalorder %s15, 7
    %p158 = por %p156, %p157
    %p160 = scmp.ne.s32.totalorder %s143, %s159
    %p161 = scmp.eq.s32.totalorder %s15, 0
    %p162 = por %p160, %p161
    %p163 = scmp.le.s32.totalorder 1, %s9
    %p164 = scmp.lt.s32.totalorder %s9, 9
    %p165 = pnand %p163, %p164
    %p166 = pneg %p165
    // Predicated region
    $region9: #{decoder_transformer_forward.27} parent=5 // pred_check
      _
    $region10: #{decoder_transformer_forward.27} parent=5 // pred_check_branch
      %168 = sbr.rel (%p165) target = $region12
    $region11: #{decoder_transformer_forward.27} parent=5 // pred_region
      %s169 = ssub.s32 %s9, 1
    $region12: #{decoder_transformer_forward.27} parent=5 // pred_fallthru
      _
    %p170 = scmp.lt.s32.totalorder %s9, 8
    // Predicated region
    $region13: #{decoder_transformer_forward.27} parent=5 // pred_check
      %p171 = pneg %p170
    $region14: #{decoder_transformer_forward.27} parent=5 // pred_check_branch
      %173 = sbr.rel (%p171) target = $region16
    $region15: #{decoder_transformer_forward.27} parent=5 // pred_region
      // Predicated region
      $region17: #{decoder_transformer_forward.27} parent=15 // pred_check
        %p174 = pneg %p59
      $region18: #{decoder_transformer_forward.27} parent=15 // pred_check_branch
        %176 = sbr.rel (%p174) target = $region20
      $region19: #{decoder_transformer_forward.27} parent=15 // pred_region
        %p177 = scmp.lt.s32.totalorder %s16, 1
        %s178 = scalar_select %p177, %s16, 1
        %p179 = scmp.lt.s32.totalorder %s18, 0
        %s180 = scalar_select %p179, %s18, 0
        %p181 = scmp.lt.s32.totalorder %s17, 3
        %s182 = scalar_select %p181, %s17, 3
        %s183 = smul.addr %s180, 4
        %s184 = sadd.s32 %s182, %s183
        %s185 = smul.addr %s178, 4
        %s186 = sadd.s32 %s184, %s185
        %s187 = smul.addr %s186, 4
        %s188 = scalar_lea.vmem %s0, %s187
      $region20: #{decoder_transformer_forward.27} parent=15 // pred_fallthru
        _
      // Predicated region
      $region21: #{decoder_transformer_forward.27} parent=15 // pred_check
        %p189 = pneg %p89
      $region22: #{decoder_transformer_forward.27} parent=15 // pred_check_branch
        %191 = sbr.rel (%p189) target = $region24
      $region23: #{decoder_transformer_forward.27} parent=15 // pred_region
        %p192 = scmp.lt.s32.totalorder %s16, 1
        %s193 = scalar_select %p192, %s16, 1
        %p194 = scmp.lt.s32.totalorder %s19, 0
        %s195 = scalar_select %p194, %s19, 0
        %p196 = scmp.lt.s32.totalorder %s17, 3
        %s197 = scalar_select %p196, %s17, 3
        %s198 = smul.addr %s195, 4
        %s199 = sadd.s32 %s197, %s198
        %s200 = smul.addr %s193, 4
        %s201 = sadd.s32 %s199, %s200
        %s202 = smul.addr %s201, 4
        %s203 = scalar_lea.vmem %s1, %s202
      $region24: #{decoder_transformer_forward.27} parent=15 // pred_fallthru
        _
      // Predicated region
      $region25: #{decoder_transformer_forward.27} parent=15 // pred_check
        %p204 = pneg %p119
      $region26: #{decoder_transformer_forward.27} parent=15 // pred_check_branch
        %206 = sbr.rel (%p204) target = $region28
      $region27: #{decoder_transformer_forward.27} parent=15 // pred_region
        %p207 = scmp.lt.s32.totalorder %s16, 1
        %s208 = scalar_select %p207, %s16, 1
        %p209 = scmp.lt.s32.totalorder %s19, 0
        %s210 = scalar_select %p209, %s19, 0
        %p211 = scmp.lt.s32.totalorder %s17, 3
        %s212 = scalar_select %p211, %s17, 3
        %s213 = smul.addr %s210, 4
        %s214 = sadd.s32 %s212, %s213
        %s215 = smul.addr %s208, 4
        %s216 = sadd.s32 %s214, %s215
        %s217 = smul.addr %s216, 4
        %s218 = scalar_lea.vmem %s2, %s217
      $region28: #{decoder_transformer_forward.27} parent=15 // pred_fallthru
        _
    $region16: #{decoder_transformer_forward.27} parent=5 // pred_fallthru
      _
    %p219 = scmp.le.s32.totalorder 1, %s9
    %p220 = scmp.lt.s32.totalorder %s9, 9
    %p221 = pnand %p219, %p220
    %p222 = pneg %p221
    // Predicated region
    $region29: #{decoder_transformer_forward.27} parent=5 // pred_check
      _
    $region30: #{decoder_transformer_forward.27} parent=5 // pred_check_branch
      %224 = sbr.rel (%p221) target = $region32
    $region31: #{decoder_transformer_forward.27} parent=5 // pred_region
      %s225 = ssub.s32 %s9, 1
      %p226 = scmp.lt.s32.totalorder %s20, 1
      %s227 = scalar_select %p226, %s20, 1
      %p228 = scmp.lt.s32.totalorder %s22, 0
      %s229 = scalar_select %p228, %s22, 0
      %p230 = scmp.lt.s32.totalorder %s21, 3
      %s231 = scalar_select %p230, %s21, 3
      %s232 = smul.addr %s229, 4
      %s233 = sadd.s32 %s231, %s232
      %s234 = smul.addr %s227, 4
      %s235 = sadd.s32 %s233, %s234
      %s236 = smul.addr %s235, 4
      %s237 = scalar_lea.vmem %s0, %s236
      %p238 = pneg %p65
      %p239 = pneg %p62
      %p240 = scmp.lt.s32.totalorder %s20, 1
      %s241 = scalar_select %p240, %s20, 1
      %p242 = scmp.lt.s32.totalorder %s23, 0
      %s243 = scalar_select %p242, %s23, 0
      %p244 = scmp.lt.s32.totalorder %s21, 3
      %s245 = scalar_select %p244, %s21, 3
      %s246 = smul.addr %s243, 4
      %s247 = sadd.s32 %s245, %s246
      %s248 = smul.addr %s241, 4
      %s249 = sadd.s32 %s247, %s248
      %s250 = smul.addr %s249, 4
      %s251 = scalar_lea.vmem %s1, %s250
      %p252 = pneg %p95
      %p253 = pneg %p92
      %p254 = scmp.lt.s32.totalorder %s20, 1
      %s255 = scalar_select %p254, %s20, 1
      %p256 = scmp.lt.s32.totalorder %s23, 0
      %s257 = scalar_select %p256, %s23, 0
      %p258 = scmp.lt.s32.totalorder %s21, 3
      %s259 = scalar_select %p258, %s21, 3
      %s260 = smul.addr %s257, 4
      %s261 = sadd.s32 %s259, %s260
      %s262 = smul.addr %s255, 4
      %s263 = sadd.s32 %s261, %s262
      %s264 = smul.addr %s263, 4
      %s265 = scalar_lea.vmem %s2, %s264
      %p266 = pneg %p125
      %p267 = pneg %p122
      %p268 = pneg %p155
      %p269 = pneg %p152
      %p270 = scmp.lt.s32.totalorder %s20, 1
      %s271 = scalar_select %p270, %s20, 1
      %p272 = scmp.lt.s32.totalorder %s22, 0
      %s273 = scalar_select %p272, %s22, 0
      %p274 = scmp.lt.s32.totalorder %s21, 3
      %s275 = scalar_select %p274, %s21, 3
      %s276 = smul.addr %s273, 4
      %s277 = sadd.s32 %s275, %s276
      %s278 = smul.addr %s271, 4
      %s279 = sadd.s32 %s277, %s278
      %s280 = smul.addr %s279, 4
      %s281 = scalar_lea.vmem %s3, %s280
      %p282 = scmp.lt.s32.totalorder %s20, 1
      %s283 = scalar_select %p282, %s20, 1
      %p284 = scmp.lt.s32.totalorder %s22, 0
      %s285 = scalar_select %p284, %s22, 0
      %p286 = scmp.lt.s32.totalorder %s21, 3
      %s287 = scalar_select %p286, %s21, 3
      %s288 = smul.addr %s285, 4
      %s289 = sadd.s32 %s287, %s288
      %s290 = smul.addr %s283, 4
      %s291 = sadd.s32 %s289, %s290
      %s292 = smul.addr %s291, 4
      %s293 = scalar_lea.vmem %s0, %s292
      %p294 = scmp.lt.s32.totalorder %s20, 1
      %s295 = scalar_select %p294, %s20, 1
      %p296 = scmp.lt.s32.totalorder %s23, 0
      %s297 = scalar_select %p296, %s23, 0
      %p298 = scmp.lt.s32.totalorder %s21, 3
      %s299 = scalar_select %p298, %s21, 3
      %s300 = smul.addr %s297, 4
      %s301 = sadd.s32 %s299, %s300
      %s302 = smul.addr %s295, 4
      %s303 = sadd.s32 %s301, %s302
      %s304 = smul.addr %s303, 4
      %s305 = scalar_lea.vmem %s1, %s304
      %p306 = scmp.lt.s32.totalorder %s20, 1
      %s307 = scalar_select %p306, %s20, 1
      %p308 = scmp.lt.s32.totalorder %s23, 0
      %s309 = scalar_select %p308, %s23, 0
      %p310 = scmp.lt.s32.totalorder %s21, 3
      %s311 = scalar_select %p310, %s21, 3
      %s312 = smul.addr %s309, 4
      %s313 = sadd.s32 %s311, %s312
      %s314 = smul.addr %s307, 4
      %s315 = sadd.s32 %s313, %s314
      %s316 = smul.addr %s315, 4
      %s317 = scalar_lea.vmem %s2, %s316
      %p318 = scmp.lt.s32.totalorder %s20, 1
      %s319 = scalar_select %p318, %s20, 1
      %p320 = scmp.lt.s32.totalorder %s22, 0
      %s321 = scalar_select %p320, %s22, 0
      %p322 = scmp.lt.s32.totalorder %s21, 3
      %s323 = scalar_select %p322, %s21, 3
      %s324 = smul.addr %s321, 4
      %s325 = sadd.s32 %s323, %s324
      %s326 = smul.addr %s319, 4
      %s327 = sadd.s32 %s325, %s326
      %s328 = smul.addr %s327, 4
      %s329 = scalar_lea.vmem %s3, %s328
      %p331 = scmp.eq.s32.totalorder %s23, 0
      // Predicated region
      $region33: #{decoder_transformer_forward.27} parent=31 // pred_check
        %p332 = pneg %p331
      $region34: #{decoder_transformer_forward.27} parent=31 // pred_check_branch
        %334 = sbr.rel (%p332) target = $region36
      $region35: #{decoder_transformer_forward.27} parent=31 // pred_region
        %vm335 = vcmask 7168
        %336 = vst.msk [vmem:[#allocation2] sm:$0xff] %vm335, -inf
        %337 = vst.msk [vmem:[#allocation3] sm:$0xff] %vm335, 0.0
        %338 = vst [vmem:[#allocation4] sm:$0xff] 0.0
      $region36: #{decoder_transformer_forward.27} parent=31 // pred_fallthru
        _
      %v339 = vld [vmem:[%s293] sm:$0xf]
      %v340 = vld [vmem:[%s305] sm:$0xf]
      %v341 = vld [vmem:[%s317] sm:$0xf]
      %342 = vmatprep.subr.bf16.mxu0 0
      %343 = vmatpush1.bf16.xpose.msra.mxu0 %v340
      %344 = vmatprep.subr.bf16.mxu0 0
      %345 = vmatpush1.bf16.xpose.msra.mxu0 0
      %346 = vmatprep.subr.bf16.mxu0 0
      %347 = vmatpush1.bf16.xpose.msra.mxu0 0
      %348 = vmatprep.subr.bf16.mxu0 0
      %349 = vmatpush1.bf16.xpose.msra.mxu0 0
      %350 = vmatprep.subr.bf16.mxu0 0
      %351 = vmatpush1.bf16.xpose.msra.mxu0 0
      %352 = vmatprep.subr.bf16.mxu0 0
      %353 = vmatpush1.bf16.xpose.msra.mxu0 0
      %354 = vmatprep.subr.bf16.mxu0 0
      %355 = vmatpush1.bf16.xpose.msra.mxu0 0
      %356 = vmatprep.subr.bf16.mxu0 0
      %357 = vmatpush1.bf16.xpose.msra.mxu0 0
      %358 = vmatprep.subr.bf16.mxu0 0
      %359 = vmatpush1.bf16.xpose.msra.mxu0 0
      %360 = vmatprep.subr.bf16.mxu0 0
      %361 = vmatpush1.bf16.xpose.msra.mxu0 0
      %362 = vmatprep.subr.bf16.mxu0 0
      %363 = vmatpush1.bf16.xpose.msra.mxu0 0
      %364 = vmatprep.subr.bf16.mxu0 0
      %365 = vmatpush1.bf16.xpose.msra.mxu0 0
      %366 = vmatprep.subr.bf16.mxu0 0
      %367 = vmatpush1.bf16.xpose.msra.mxu0 0
      %368 = vmatprep.subr.bf16.mxu0 0
      %369 = vmatpush1.bf16.xpose.msra.mxu0 0
      %370 = vmatprep.subr.bf16.mxu0 0
      %371 = vmatpush1.bf16.xpose.msra.mxu0 0
      %372 = vmatprep.subr.bf16.mxu0 0
      %373 = vmatpush1.bf16.xpose.msra.mxu0 0
      %374 = vmatprep.mubr.bf16.mxu0 0
      %375 = vmatmul.mubr.bf16.gmra.mrb[0].mxu0 %v339
      %v376 = vpop.f32.mrb[0].mxu0
      %v377 = vadd.f32 0.0, %v376
      %v378 = vpop.f32.mrb[0].mxu0
      %v379 = vpop.f32.mrb[0].mxu0
      %v380 = vpop.f32.mrb[0].mxu0
      %381 = vdwg.mxu0
      %v382 = vld [vmem:[#allocation2] sm:$0xff]
      %vm383 = vcmask 64512
      %v384 = vsel %vm383, %v377, -inf
      %385 = vmax.xlane.f32.xlu0 %v384
      %v386 = vpop.xlane.xlu0 %385
      %v387 = vmax.f32 %v382, %v386
      %v388 = vsub.f32 %v382, %v387
      %v389 = vmul.f32 %v388, 1.442695
      %v390 = vpow.pop %v389
      %392 = vset.pattern.permute.xlu0 0
      %393 = vperm.xlu0 %392, %v387
      %v394 = vpop.permute.xlu0 %393
      %v396 = vsub.f32 %v377, %v394
      %v397 = vmul.f32 %v396, 1.442695
      %v398 = vpow.pop %v397
      %v399 = vld [vmem:[#allocation3] sm:$0xff]
      %v400 = vmul.f32 %v390, %v399
      %v401 = vsel %vm383, %v398, 0.0
      %402 = vadd.xlane.f32.xlu0 %v401
      %v403 = vpop.xlane.xlu0 %402
      %v404 = vadd.f32 %v400, %v403
      %vm405 = vcmask 7168
      %406 = vst.msk [vmem:[#allocation3] sm:$0xff] %vm405, %v404
      %v407 = vld [vmem:[#allocation4] sm:$0xff]
      %409 = vset.pattern.permute.xlu0 0
      %410 = vperm.xlu0 %409, %v390
      %v411 = vpop.permute.xlu0 %410
      %v413 = vmul.f32 %v411, %v407
      %v414 = vpack.c.bf16 %v398, %v398
      %v416 = vsel %vm383, %v414, 0
      %vm418 = vcmask 1043456
      %v420 = vsel %vm418, %v341, 0
      %422 = vmatprep.subr.bf16.mxu0 0
      %423 = vmatpush1.bf16.msra.mxu0 %v420
      %424 = vmatprep.subr.bf16.mxu0 0
      %425 = vmatpush1.bf16.msra.mxu0 0
      %426 = vmatprep.subr.bf16.mxu0 0
      %427 = vmatpush1.bf16.msra.mxu0 0
      %428 = vmatprep.subr.bf16.mxu0 0
      %429 = vmatpush1.bf16.msra.mxu0 0
      %430 = vmatprep.subr.bf16.mxu0 0
      %431 = vmatpush1.bf16.msra.mxu0 0
      %432 = vmatprep.subr.bf16.mxu0 0
      %433 = vmatpush1.bf16.msra.mxu0 0
      %434 = vmatprep.subr.bf16.mxu0 0
      %435 = vmatpush1.bf16.msra.mxu0 0
      %436 = vmatprep.subr.bf16.mxu0 0
      %437 = vmatpush1.bf16.msra.mxu0 0
      %438 = vmatprep.subr.bf16.mxu0 0
      %439 = vmatpush1.bf16.msra.mxu0 0
      %440 = vmatprep.subr.bf16.mxu0 0
      %441 = vmatpush1.bf16.msra.mxu0 0
      %442 = vmatprep.subr.bf16.mxu0 0
      %443 = vmatpush1.bf16.msra.mxu0 0
      %444 = vmatprep.subr.bf16.mxu0 0
      %445 = vmatpush1.bf16.msra.mxu0 0
      %446 = vmatprep.subr.bf16.mxu0 0
      %447 = vmatpush1.bf16.msra.mxu0 0
      %448 = vmatprep.subr.bf16.mxu0 0
      %449 = vmatpush1.bf16.msra.mxu0 0
      %450 = vmatprep.subr.bf16.mxu0 0
      %451 = vmatpush1.bf16.msra.mxu0 0
      %452 = vmatprep.subr.bf16.mxu0 0
      %453 = vmatpush1.bf16.msra.mxu0 0
      %454 = vmatprep.mubr.bf16.mxu0 0
      %455 = vmatmul.mubr.bf16.gmra.mrb[0].mxu0 %v416
      %v456 = vpop.f32.mrb[0].mxu0
      %v457 = vadd.f32 0.0, %v456
      %v458 = vpop.f32.mrb[0].mxu0
      %v459 = vpop.f32.mrb[0].mxu0
      %v460 = vpop.f32.mrb[0].mxu0
      %461 = vdwg.mxu0
      %v462 = vadd.f32 %v413, %v457
      %463 = vst [vmem:[#allocation4] sm:$0xff] %v462
      %464 = vst.msk [vmem:[#allocation2] sm:$0xff] %vm405, %v387
      // Predicated region
      $region37: #{decoder_transformer_forward.27} parent=31 // pred_check
        %p465 = pneg %p331
      $region38: #{decoder_transformer_forward.27} parent=31 // pred_check_branch
        %467 = sbr.rel (%p465) target = $region40
      $region39: #{decoder_transformer_forward.27} parent=31 // pred_region
        %v468 = vld [vmem:[#allocation4] sm:$0xff]
        %v469 = vld [vmem:[#allocation3] sm:$0xff]
        %v470 = vrcp.pop %v469
        %472 = vset.pattern.permute.xlu0 0
        %473 = vperm.xlu0 %472, %v470
        %v474 = vpop.permute.xlu0 %473
        %v476 = vmul.f32 %v468, %v474
        %v477 = vpack.c.bf16 %v476, %v476
        %478 = vst [vmem:[%s329] sm:$0xf] %v477
      $region40: #{decoder_transformer_forward.27} parent=31 // pred_fallthru
        _
      %p479 = scmp.lt.s32.totalorder %s20, 1
      %s480 = scalar_select %p479, %s20, 1
      %p481 = scmp.lt.s32.totalorder %s22, 0
      %s482 = scalar_select %p481, %s22, 0
      %p483 = scmp.lt.s32.totalorder %s21, 3
      %s484 = scalar_select %p483, %s21, 3
      %s485 = smul.addr %s482, 4
      %s486 = sadd.s32 %s484, %s485
      %s487 = smul.addr %s480, 4
      %s488 = sadd.s32 %s486, %s487
      %s489 = smul.addr %s488, 4
      %s490 = scalar_lea.vmem %s3, %s489
      // Predicated region
      $region41: #{decoder_transformer_forward.27} parent=31 // pred_check
        %p491 = pneg %p152
      $region42: #{decoder_transformer_forward.27} parent=31 // pred_check_branch
        %493 = sbr.rel (%p491) target = $region44
      $region43: #{decoder_transformer_forward.27} parent=31 // pred_region
        _
      $region44: #{decoder_transformer_forward.27} parent=31 // pred_fallthru
        _
    $region32: #{decoder_transformer_forward.27} parent=5 // pred_fallthru
      _
    %p494 = scmp.le.s32.totalorder 2, %s9
    // Predicated region
    $region45: #{decoder_transformer_forward.27} parent=5 // pred_check
      %p495 = pneg %p494
    $region46: #{decoder_transformer_forward.27} parent=5 // pred_check_branch
      %497 = sbr.rel (%p495) target = $region48
    $region47: #{decoder_transformer_forward.27} parent=5 // pred_region
      %s498 = ssub.s32 %s9, 2
      // Predicated region
      $region49: #{decoder_transformer_forward.27} parent=47 // pred_check
        %p499 = pneg %p158
      $region50: #{decoder_transformer_forward.27} parent=47 // pred_check_branch
        %501 = sbr.rel (%p499) target = $region52
      $region51: #{decoder_transformer_forward.27} parent=47 // pred_region
        %p502 = scmp.lt.s32.totalorder %s24, 1
        %s503 = scalar_select %p502, %s24, 1
        %p504 = scmp.lt.s32.totalorder %s26, 0
        %s505 = scalar_select %p504, %s26, 0
        %p506 = scmp.lt.s32.totalorder %s25, 3
        %s507 = scalar_select %p506, %s25, 3
        %s508 = smul.addr %s505, 4
        %s509 = sadd.s32 %s507, %s508
        %s510 = smul.addr %s503, 4
        %s511 = sadd.s32 %s509, %s510
        %s512 = smul.addr %s511, 4
        %s513 = scalar_lea.vmem %s3, %s512
      $region52: #{decoder_transformer_forward.27} parent=47 // pred_fallthru
        _
    $region48: #{decoder_transformer_forward.27} parent=5 // pred_fallthru
      _
  $region6: #{decoder_transformer_forward.27} parent=0 // loop_footer
    %s13 = sadd.s32 1, %s9
  $region7: #{decoder_transformer_forward.27} parent=0 // loop_footer_branch
    %8 = sbr.rel target = $region3
  $region8: #{decoder_transformer_forward.27} parent=0 // loop_exit
    _

// kernel: decoder_transformer_forward.25
$region0: #{decoder_transformer_forward.25}
  #allocation0 [shape = 'u32[]', space=smem, size = 0x4, offset = 0x4, fixed_abs, tag = 'smem constant byte address 0x4 - core index']
  #allocation1 [shape = 'u32[144,128]{1,0:T(1,128)}', space=vmem, size = 0x12000, scoped, tag = 'internal scratch']
  %s0 = inlined_call_operand.vmem [shape: bf16[16,32], index: 0, kind: input, shape index: {}]
  %s1 = inlined_call_operand.vmem [shape: bf16[32,512], index: 1, kind: input, shape index: {}]
  %s2 = inlined_call_operand.vmem [shape: bf16[32,512], index: 2, kind: input, shape index: {}]
  %s3 = inlined_call_operand.vmem [shape: f32[1,512], index: 3, kind: input, shape index: {}]
  %s4 = inlined_call_operand.vmem [shape: f32[1,512], index: 4, kind: input, shape index: {}]
  %s5 = inlined_call_operand.vmem [shape: bf16[16,512], index: 5, kind: output, shape index: {0}]
  %s6 = inlined_call_operand.vmem [shape: bf16[16,512], index: 6, kind: output, shape index: {1}]
  %7 = xla_tuple %s5, %s6
  %s8 = sld [smem:[#allocation0]]
  $region38: #{decoder_transformer_forward.25} parent=0
    _
  %s10 = ssub.s32 1, %s8
  %s11 = scalar_select 0, %s10, %s8
  // Predicated region
  $region2: #{decoder_transformer_forward.25} parent=0 // pred_check
    _
  $region3: #{decoder_transformer_forward.25} parent=0 // pred_check_branch
    %13 = sbr.rel (0) target = $region5
  $region4: #{decoder_transformer_forward.25} parent=0 // pred_region
    _
  $region5: #{decoder_transformer_forward.25} parent=0 // pred_fallthru
    _
  // Predicated region
  $region6: #{decoder_transformer_forward.25} parent=0 // pred_check
    _
  $region7: #{decoder_transformer_forward.25} parent=0 // pred_check_branch
    %15 = sbr.rel (0) target = $region9
  $region8: #{decoder_transformer_forward.25} parent=0 // pred_region
    _
  $region9: #{decoder_transformer_forward.25} parent=0 // pred_fallthru
    _
  // Predicated region
  $region10: #{decoder_transformer_forward.25} parent=0 // pred_check
    _
  $region11: #{decoder_transformer_forward.25} parent=0 // pred_check_branch
    %17 = sbr.rel (0) target = $region13
  $region12: #{decoder_transformer_forward.25} parent=0 // pred_region
    _
  $region13: #{decoder_transformer_forward.25} parent=0 // pred_fallthru
    _
  // Predicated region
  $region14: #{decoder_transformer_forward.25} parent=0 // pred_check
    _
  $region15: #{decoder_transformer_forward.25} parent=0 // pred_check_branch
    %19 = sbr.rel (0) target = $region17
  $region16: #{decoder_transformer_forward.25} parent=0 // pred_region
    _
  $region17: #{decoder_transformer_forward.25} parent=0 // pred_fallthru
    _
  // Predicated region
  $region18: #{decoder_transformer_forward.25} parent=0 // pred_check
    _
  $region19: #{decoder_transformer_forward.25} parent=0 // pred_check_branch
    %21 = sbr.rel (0) target = $region21
  $region20: #{decoder_transformer_forward.25} parent=0 // pred_region
    _
  $region21: #{decoder_transformer_forward.25} parent=0 // pred_fallthru
    _
  %v23 = vld [vmem:[%s0] sm:$0xf]
  %v24 = vld [vmem:[%s0 + $0x4] sm:$0xf]
  %v25 = vld [vmem:[%s1] sm:$0xff]
  %v26 = vld [vmem:[%s1 + $0x8] sm:$0xff]
  %v27 = vld [vmem:[%s1 + $0x10] sm:$0xff]
  %v28 = vld [vmem:[%s1 + $0x18] sm:$0xff]
  %v29 = vld [vmem:[%s1 + $0x20] sm:$0xff]
  %v30 = vld [vmem:[%s1 + $0x28] sm:$0xff]
  %v31 = vld [vmem:[%s1 + $0x30] sm:$0xff]
  %v32 = vld [vmem:[%s1 + $0x38] sm:$0xff]
  %v33 = vld [vmem:[%s3] sm:$0xf]
  %v35 = vlaneseq
  %v36 = vshrl.u32 %v35, 7
  %v37 = vsub.s32 0, %v36
  %v38 = vrot.slane %v33, %v37
  %v39 = vlaneseq
  %v40 = vshrl.u32 %v39, 7
  %v41 = vsub.s32 1, %v40
  %v42 = vrot.slane %v33, %v41
  %v43 = vlaneseq
  %v44 = vshrl.u32 %v43, 7
  %v45 = vsub.s32 2, %v44
  %v46 = vrot.slane %v33, %v45
  %v47 = vlaneseq
  %v48 = vshrl.u32 %v47, 7
  %v49 = vsub.s32 3, %v48
  %v50 = vrot.slane %v33, %v49
  %v57 = vunpack.c.l.b16 %v23
  %v58 = vunpack.c.l.b16 %v24
  %v59 = vpack.c.b16 %v58, %v57
  %v68 = vunpack.c.l.b16 %v25
  %v69 = vunpack.c.h.b16 %v25
  %v70 = vunpack.c.l.b16 %v26
  %v71 = vunpack.c.h.b16 %v26
  %v72 = vunpack.c.l.b16 %v27
  %v73 = vunpack.c.h.b16 %v27
  %v74 = vunpack.c.l.b16 %v28
  %v75 = vunpack.c.h.b16 %v28
  %v76 = vunpack.c.l.b16 %v29
  %v77 = vunpack.c.h.b16 %v29
  %v78 = vunpack.c.l.b16 %v30
  %v79 = vunpack.c.h.b16 %v30
  %v80 = vunpack.c.l.b16 %v31
  %v81 = vunpack.c.h.b16 %v31
  %v82 = vunpack.c.l.b16 %v32
  %v83 = vunpack.c.h.b16 %v32
  %v84 = vpack.c.b16 %v72, %v68
  %v85 = vpack.c.b16 %v73, %v69
  %v86 = vpack.c.b16 %v74, %v70
  %v87 = vpack.c.b16 %v75, %v71
  %v88 = vpack.c.b16 %v80, %v76
  %v89 = vpack.c.b16 %v81, %v77
  %v90 = vpack.c.b16 %v82, %v78
  %v91 = vpack.c.b16 %v83, %v79
  %vm100 = vcmask 261120
  %v102 = vsel %vm100, %v59, 0
  %104 = vmatprep.subr.bf16.mxu0 %v85
  %105 = vmatpush1.bf16.msra.mxu0 %v84
  %106 = vmatprep.subr.bf16.mxu0 %v89
  %107 = vmatpush1.bf16.msra.mxu0 %v88
  %108 = vmatprep.subr.bf16.mxu0 0
  %109 = vmatpush1.bf16.msra.mxu0 0
  %110 = vmatprep.subr.bf16.mxu0 0
  %111 = vmatpush1.bf16.msra.mxu0 0
  %112 = vmatprep.subr.bf16.mxu0 0
  %113 = vmatpush1.bf16.msra.mxu0 0
  %114 = vmatprep.subr.bf16.mxu0 0
  %115 = vmatpush1.bf16.msra.mxu0 0
  %116 = vmatprep.subr.bf16.mxu0 0
  %117 = vmatpush1.bf16.msra.mxu0 0
  %118 = vmatprep.subr.bf16.mxu0 0
  %119 = vmatpush1.bf16.msra.mxu0 0
  %120 = vmatprep.subr.bf16.mxu0 0
  %121 = vmatpush1.bf16.msra.mxu0 0
  %122 = vmatprep.subr.bf16.mxu0 0
  %123 = vmatpush1.bf16.msra.mxu0 0
  %124 = vmatprep.subr.bf16.mxu0 0
  %125 = vmatpush1.bf16.msra.mxu0 0
  %126 = vmatprep.subr.bf16.mxu0 0
  %127 = vmatpush1.bf16.msra.mxu0 0
  %128 = vmatprep.subr.bf16.mxu0 0
  %129 = vmatpush1.bf16.msra.mxu0 0
  %130 = vmatprep.subr.bf16.mxu0 0
  %131 = vmatpush1.bf16.msra.mxu0 0
  %132 = vmatprep.subr.bf16.mxu0 0
  %133 = vmatpush1.bf16.msra.mxu0 0
  %134 = vmatprep.subr.bf16.mxu0 0
  %135 = vmatpush1.bf16.msra.mxu0 0
  %136 = vmatprep.mubr.bf16.mxu0 0
  %137 = vmatmul.mubr.bf16.gmra.mrb[0].mxu0 %v102
  %v138 = vpop.f32.mrb[0].mxu0
  %v139 = vadd.f32 %v38, %v138
  %v140 = vpop.f32.mrb[0].mxu0
  %v141 = vadd.f32 %v42, %v140
  %v142 = vpop.f32.mrb[0].mxu0
  %v143 = vadd.f32 %v38, %v142
  %v144 = vpop.f32.mrb[0].mxu0
  %v145 = vadd.f32 %v42, %v144
  %146 = vdwg.mxu0
  %147 = vmatprep.subr.bf16.mxu0 %v87
  %148 = vmatpush1.bf16.msra.mxu0 %v86
  %149 = vmatprep.subr.bf16.mxu0 %v91
  %150 = vmatpush1.bf16.msra.mxu0 %v90
  %151 = vmatprep.subr.bf16.mxu0 0
  %152 = vmatpush1.bf16.msra.mxu0 0
  %153 = vmatprep.subr.bf16.mxu0 0
  %154 = vmatpush1.bf16.msra.mxu0 0
  %155 = vmatprep.subr.bf16.mxu0 0
  %156 = vmatpush1.bf16.msra.mxu0 0
  %157 = vmatprep.subr.bf16.mxu0 0
  %158 = vmatpush1.bf16.msra.mxu0 0
  %159 = vmatprep.subr.bf16.mxu0 0
  %160 = vmatpush1.bf16.msra.mxu0 0
  %161 = vmatprep.subr.bf16.mxu0 0
  %162 = vmatpush1.bf16.msra.mxu0 0
  %163 = vmatprep.subr.bf16.mxu0 0
  %164 = vmatpush1.bf16.msra.mxu0 0
  %165 = vmatprep.subr.bf16.mxu0 0
  %166 = vmatpush1.bf16.msra.mxu0 0
  %167 = vmatprep.subr.bf16.mxu0 0
  %168 = vmatpush1.bf16.msra.mxu0 0
  %169 = vmatprep.subr.bf16.mxu0 0
  %170 = vmatpush1.bf16.msra.mxu0 0
  %171 = vmatprep.subr.bf16.mxu0 0
  %172 = vmatpush1.bf16.msra.mxu0 0
  %173 = vmatprep.subr.bf16.mxu0 0
  %174 = vmatpush1.bf16.msra.mxu0 0
  %175 = vmatprep.subr.bf16.mxu0 0
  %176 = vmatpush1.bf16.msra.mxu0 0
  %177 = vmatprep.subr.bf16.mxu0 0
  %178 = vmatpush1.bf16.msra.mxu0 0
  %179 = vmatprep.mubr.bf16.mxu0 0
  %180 = vmatmul.mubr.bf16.gmra.mrb[0].mxu0 %v102
  %v181 = vpop.f32.mrb[0].mxu0
  %v182 = vadd.f32 %v46, %v181
  %v183 = vpop.f32.mrb[0].mxu0
  %v184 = vadd.f32 %v50, %v183
  %v185 = vpop.f32.mrb[0].mxu0
  %v186 = vadd.f32 %v46, %v185
  %v187 = vpop.f32.mrb[0].mxu0
  %v188 = vadd.f32 %v50, %v187
  %189 = vdwg.mxu0
  %v190 = vpack.c.bf16 %v143, %v139
  %v191 = vpack.c.bf16 %v145, %v141
  %v192 = vpack.c.bf16 %v186, %v182
  %v193 = vpack.c.bf16 %v188, %v184
  %v198 = vunpack.c.l.b16 %v190
  %v199 = vunpack.c.l.b16 %v191
  %v200 = vunpack.c.l.b16 %v192
  %v201 = vunpack.c.l.b16 %v193
  %v202 = vunpack.c.h.b16 %v190
  %v203 = vunpack.c.h.b16 %v191
  %v204 = vunpack.c.h.b16 %v192
  %v205 = vunpack.c.h.b16 %v193
  %v206 = vpack.c.b16 %v199, %v198
  %v207 = vpack.c.b16 %v201, %v200
  %v208 = vpack.c.b16 %v203, %v202
  %v209 = vpack.c.b16 %v205, %v204
  %214 = vst [vmem:[%s5] sm:$0xff] %v206
  %215 = vst [vmem:[%s5 + $0x8] sm:$0xff] %v207
  %216 = vst [vmem:[%s5 + $0x10] sm:$0xff] %v208
  %217 = vst [vmem:[%s5 + $0x18] sm:$0xff] %v209
  %v218 = vld [vmem:[%s2] sm:$0xff]
  %v219 = vld [vmem:[%s2 + $0x8] sm:$0xff]
  %v220 = vld [vmem:[%s2 + $0x10] sm:$0xff]
  %v221 = vld [vmem:[%s2 + $0x18] sm:$0xff]
  %v222 = vld [vmem:[%s2 + $0x20] sm:$0xff]
  %v223 = vld [vmem:[%s2 + $0x28] sm:$0xff]
  %v224 = vld [vmem:[%s2 + $0x30] sm:$0xff]
  %v225 = vld [vmem:[%s2 + $0x38] sm:$0xff]
  %v226 = vld [vmem:[%s4] sm:$0xf]
  %v228 = vlaneseq
  %v229 = vshrl.u32 %v228, 7
  %v230 = vsub.s32 0, %v229
  %v231 = vrot.slane %v226, %v230
  %v232 = vlaneseq
  %v233 = vshrl.u32 %v232, 7
  %v234 = vsub.s32 1, %v233
  %v235 = vrot.slane %v226, %v234
  %v236 = vlaneseq
  %v237 = vshrl.u32 %v236, 7
  %v238 = vsub.s32 2, %v237
  %v239 = vrot.slane %v226, %v238
  %v240 = vlaneseq
  %v241 = vshrl.u32 %v240, 7
  %v242 = vsub.s32 3, %v241
  %v243 = vrot.slane %v226, %v242
  %v256 = vunpack.c.l.b16 %v218
  %v257 = vunpack.c.h.b16 %v218
  %v258 = vunpack.c.l.b16 %v219
  %v259 = vunpack.c.h.b16 %v219
  %v260 = vunpack.c.l.b16 %v220
  %v261 = vunpack.c.h.b16 %v220
  %v262 = vunpack.c.l.b16 %v221
  %v263 = vunpack.c.h.b16 %v221
  %v264 = vunpack.c.l.b16 %v222
  %v265 = vunpack.c.h.b16 %v222
  %v266 = vunpack.c.l.b16 %v223
  %v267 = vunpack.c.h.b16 %v223
  %v268 = vunpack.c.l.b16 %v224
  %v269 = vunpack.c.h.b16 %v224
  %v270 = vunpack.c.l.b16 %v225
  %v271 = vunpack.c.h.b16 %v225
  %v272 = vpack.c.b16 %v260, %v256
  %v273 = vpack.c.b16 %v261, %v257
  %v274 = vpack.c.b16 %v262, %v258
  %v275 = vpack.c.b16 %v263, %v259
  %v276 = vpack.c.b16 %v268, %v264
  %v277 = vpack.c.b16 %v269, %v265
  %v278 = vpack.c.b16 %v270, %v266
  %v279 = vpack.c.b16 %v271, %v267
  %288 = vmatprep.subr.bf16.mxu0 %v273
  %289 = vmatpush1.bf16.msra.mxu0 %v272
  %290 = vmatprep.subr.bf16.mxu0 %v277
  %291 = vmatpush1.bf16.msra.mxu0 %v276
  %292 = vmatprep.subr.bf16.mxu0 0
  %293 = vmatpush1.bf16.msra.mxu0 0
  %294 = vmatprep.subr.bf16.mxu0 0
  %295 = vmatpush1.bf16.msra.mxu0 0
  %296 = vmatprep.subr.bf16.mxu0 0
  %297 = vmatpush1.bf16.msra.mxu0 0
  %298 = vmatprep.subr.bf16.mxu0 0
  %299 = vmatpush1.bf16.msra.mxu0 0
  %300 = vmatprep.subr.bf16.mxu0 0
  %301 = vmatpush1.bf16.msra.mxu0 0
  %302 = vmatprep.subr.bf16.mxu0 0
  %303 = vmatpush1.bf16.msra.mxu0 0
  %304 = vmatprep.subr.bf16.mxu0 0
  %305 = vmatpush1.bf16.msra.mxu0 0
  %306 = vmatprep.subr.bf16.mxu0 0
  %307 = vmatpush1.bf16.msra.mxu0 0
  %308 = vmatprep.subr.bf16.mxu0 0
  %309 = vmatpush1.bf16.msra.mxu0 0
  %310 = vmatprep.subr.bf16.mxu0 0
  %311 = vmatpush1.bf16.msra.mxu0 0
  %312 = vmatprep.subr.bf16.mxu0 0
  %313 = vmatpush1.bf16.msra.mxu0 0
  %314 = vmatprep.subr.bf16.mxu0 0
  %315 = vmatpush1.bf16.msra.mxu0 0
  %316 = vmatprep.subr.bf16.mxu0 0
  %317 = vmatpush1.bf16.msra.mxu0 0
  %318 = vmatprep.subr.bf16.mxu0 0
  %319 = vmatpush1.bf16.msra.mxu0 0
  %320 = vmatprep.mubr.bf16.mxu0 0
  %321 = vmatmul.mubr.bf16.gmra.mrb[0].mxu0 %v102
  %v322 = vpop.f32.mrb[0].mxu0
  %v323 = vadd.f32 %v231, %v322
  %v324 = vpop.f32.mrb[0].mxu0
  %v325 = vadd.f32 %v235, %v324
  %v326 = vpop.f32.mrb[0].mxu0
  %v327 = vadd.f32 %v231, %v326
  %v328 = vpop.f32.mrb[0].mxu0
  %v329 = vadd.f32 %v235, %v328
  %330 = vdwg.mxu0
  %331 = vmatprep.subr.bf16.mxu0 %v275
  %332 = vmatpush1.bf16.msra.mxu0 %v274
  %333 = vmatprep.subr.bf16.mxu0 %v279
  %334 = vmatpush1.bf16.msra.mxu0 %v278
  %335 = vmatprep.subr.bf16.mxu0 0
  %336 = vmatpush1.bf16.msra.mxu0 0
  %337 = vmatprep.subr.bf16.mxu0 0
  %338 = vmatpush1.bf16.msra.mxu0 0
  %339 = vmatprep.subr.bf16.mxu0 0
  %340 = vmatpush1.bf16.msra.mxu0 0
  %341 = vmatprep.subr.bf16.mxu0 0
  %342 = vmatpush1.bf16.msra.mxu0 0
  %343 = vmatprep.subr.bf16.mxu0 0
  %344 = vmatpush1.bf16.msra.mxu0 0
  %345 = vmatprep.subr.bf16.mxu0 0
  %346 = vmatpush1.bf16.msra.mxu0 0
  %347 = vmatprep.subr.bf16.mxu0 0
  %348 = vmatpush1.bf16.msra.mxu0 0
  %349 = vmatprep.subr.bf16.mxu0 0
  %350 = vmatpush1.bf16.msra.mxu0 0
  %351 = vmatprep.subr.bf16.mxu0 0
  %352 = vmatpush1.bf16.msra.mxu0 0
  %353 = vmatprep.subr.bf16.mxu0 0
  %354 = vmatpush1.bf16.msra.mxu0 0
  %355 = vmatprep.subr.bf16.mxu0 0
  %356 = vmatpush1.bf16.msra.mxu0 0
  %357 = vmatprep.subr.bf16.mxu0 0
  %358 = vmatpush1.bf16.msra.mxu0 0
  %359 = vmatprep.subr.bf16.mxu0 0
  %360 = vmatpush1.bf16.msra.mxu0 0
  %361 = vmatprep.subr.bf16.mxu0 0
  %362 = vmatpush1.bf16.msra.mxu0 0
  %363 = vmatprep.mubr.bf16.mxu0 0
  %364 = vmatmul.mubr.bf16.gmra.mrb[0].mxu0 %v102
  %v365 = vpop.f32.mrb[0].mxu0
  %v366 = vadd.f32 %v239, %v365
  %v367 = vpop.f32.mrb[0].mxu0
  %v368 = vadd.f32 %v243, %v367
  %v369 = vpop.f32.mrb[0].mxu0
  %v370 = vadd.f32 %v239, %v369
  %v371 = vpop.f32.mrb[0].mxu0
  %v372 = vadd.f32 %v243, %v371
  %373 = vdwg.mxu0
  %v374 = vpack.c.bf16 %v327, %v323
  %v375 = vpack.c.bf16 %v329, %v325
  %v376 = vpack.c.bf16 %v370, %v366
  %v377 = vpack.c.bf16 %v372, %v368
  %v382 = vunpack.c.l.b16 %v374
  %v383 = vunpack.c.l.b16 %v375
  %v384 = vunpack.c.l.b16 %v376
  %v385 = vunpack.c.l.b16 %v377
  %v386 = vunpack.c.h.b16 %v374
  %v387 = vunpack.c.h.b16 %v375
  %v388 = vunpack.c.h.b16 %v376
  %v389 = vunpack.c.h.b16 %v377
  %v390 = vpack.c.b16 %v383, %v382
  %v391 = vpack.c.b16 %v385, %v384
  %v392 = vpack.c.b16 %v387, %v386
  %v393 = vpack.c.b16 %v389, %v388
  %398 = vst [vmem:[%s6] sm:$0xff] %v390
  %399 = vst [vmem:[%s6 + $0x8] sm:$0xff] %v391
  %400 = vst [vmem:[%s6 + $0x10] sm:$0xff] %v392
  %401 = vst [vmem:[%s6 + $0x18] sm:$0xff] %v393
  // Predicated region
  $region22: #{decoder_transformer_forward.25} parent=0 // pred_check
    _
  $region23: #{decoder_transformer_forward.25} parent=0 // pred_check_branch
    %403 = sbr.rel (0) target = $region25
  $region24: #{decoder_transformer_forward.25} parent=0 // pred_region
    _
  $region25: #{decoder_transformer_forward.25} parent=0 // pred_fallthru
    _
  // Predicated region
  $region26: #{decoder_transformer_forward.25} parent=0 // pred_check
    _
  $region27: #{decoder_transformer_forward.25} parent=0 // pred_check_branch
    %405 = sbr.rel (0) target = $region29
  $region28: #{decoder_transformer_forward.25} parent=0 // pred_region
    _
  $region29: #{decoder_transformer_forward.25} parent=0 // pred_fallthru
    _
  // Predicated region
  $region30: #{decoder_transformer_forward.25} parent=0 // pred_check
    _
  $region31: #{decoder_transformer_forward.25} parent=0 // pred_check_branch
    %407 = sbr.rel (0) target = $region33
  $region32: #{decoder_transformer_forward.25} parent=0 // pred_region
    _
  $region33: #{decoder_transformer_forward.25} parent=0 // pred_fallthru
    _
  // Predicated region
  $region34: #{decoder_transformer_forward.25} parent=0 // pred_check
    _
  $region35: #{decoder_transformer_forward.25} parent=0 // pred_check_branch
    %409 = sbr.rel (0) target = $region37
  $region36: #{decoder_transformer_forward.25} parent=0 // pred_region
    _
  $region37: #{decoder_transformer_forward.25} parent=0 // pred_fallthru
    _

// kernel: decoder_transformer_forward.41
$region0: #{decoder_transformer_forward.41}
  #allocation0 [shape = 'u32[]', space=smem, size = 0x4, offset = 0x4, fixed_abs, tag = 'smem constant byte address 0x4 - core index']
  #allocation1 [shape = 'u32[144,128]{1,0:T(1,128)}', space=vmem, size = 0x12000, scoped, tag = 'internal scratch']
  %s0 = inlined_call_operand.vmem [shape: bf16[16,32], index: 0, kind: input, shape index: {}]
  %s1 = inlined_call_operand.vmem [shape: bf16[32,50], index: 1, kind: input, shape index: {}]
  %s2 = inlined_call_operand.vmem [shape: f32[1,50], index: 2, kind: input, shape index: {}]
  %s3 = inlined_call_operand.hbm [shape: f32[16,50], index: 3, kind: output, shape index: {}]
  %s4 = sld [smem:[#allocation0]]
  $region22: #{decoder_transformer_forward.41} parent=0
    _
  %s6 = ssub.s32 1, %s4
  %s7 = scalar_select 0, %s6, %s4
  $region1: #{decoder_transformer_forward.41} parent=0
    #allocation2 [shape = 'u8[8192]{0}', space=vmem, size = 0x2000, scoped, tag = 'output window, operand 0, single buffered']
    #allocation3 [shape = 's32[1]{0}', space=sflag, size = 0x4, scoped, tag = 'scoped memory for decoder_transformer_forward.41']
    %8 = vsyncpa [#allocation3], 0
    // Predicated region
    $region2: #{decoder_transformer_forward.41} parent=1 // pred_check
      _
    $region3: #{decoder_transformer_forward.41} parent=1 // pred_check_branch
      %10 = sbr.rel (0) target = $region5
    $region4: #{decoder_transformer_forward.41} parent=1 // pred_region
      _
    $region5: #{decoder_transformer_forward.41} parent=1 // pred_fallthru
      _
    // Predicated region
    $region6: #{decoder_transformer_forward.41} parent=1 // pred_check
      _
    $region7: #{decoder_transformer_forward.41} parent=1 // pred_check_branch
      %12 = sbr.rel (0) target = $region9
    $region8: #{decoder_transformer_forward.41} parent=1 // pred_region
      _
    $region9: #{decoder_transformer_forward.41} parent=1 // pred_fallthru
      _
    // Predicated region
    $region10: #{decoder_transformer_forward.41} parent=1 // pred_check
      _
    $region11: #{decoder_transformer_forward.41} parent=1 // pred_check_branch
      %14 = sbr.rel (0) target = $region13
    $region12: #{decoder_transformer_forward.41} parent=1 // pred_region
      _
    $region13: #{decoder_transformer_forward.41} parent=1 // pred_fallthru
      _
    %v16 = vld [vmem:[%s0] sm:$0xf]
    %v17 = vld [vmem:[%s0 + $0x4] sm:$0xf]
    %v18 = vld [vmem:[%s1] sm:$0xf]
    %v19 = vld [vmem:[%s1 + $0x4] sm:$0xf]
    %v20 = vld [vmem:[%s1 + $0x8] sm:$0xf]
    %v21 = vld [vmem:[%s1 + $0xc] sm:$0xf]
    %v22 = vld [vmem:[%s2] sm:$0x1]
    %v24 = vlaneseq
    %v25 = vshrl.u32 %v24, 7
    %v26 = vsub.s32 0, %v25
    %v27 = vrot.slane %v22, %v26
    %v31 = vunpack.c.l.b16 %v16
    %v32 = vunpack.c.l.b16 %v17
    %v33 = vpack.c.b16 %v32, %v31
    %v38 = vunpack.c.l.b16 %v18
    %v39 = vunpack.c.l.b16 %v19
    %v40 = vunpack.c.l.b16 %v20
    %v41 = vunpack.c.l.b16 %v21
    %v42 = vpack.c.b16 %v39, %v38
    %v43 = vpack.c.b16 %v41, %v40
    %vm46 = vcmask 261120
    %v48 = vsel %vm46, %v33, 0
    %50 = vmatprep.subr.bf16.mxu0 0
    %51 = vmatpush1.bf16.msra.mxu0 %v42
    %52 = vmatprep.subr.bf16.mxu0 0
    %53 = vmatpush1.bf16.msra.mxu0 %v43
    %54 = vmatprep.subr.bf16.mxu0 0
    %55 = vmatpush1.bf16.msra.mxu0 0
    %56 = vmatprep.subr.bf16.mxu0 0
    %57 = vmatpush1.bf16.msra.mxu0 0
    %58 = vmatprep.subr.bf16.mxu0 0
    %59 = vmatpush1.bf16.msra.mxu0 0
    %60 = vmatprep.subr.bf16.mxu0 0
    %61 = vmatpush1.bf16.msra.mxu0 0
    %62 = vmatprep.subr.bf16.mxu0 0
    %63 = vmatpush1.bf16.msra.mxu0 0
    %64 = vmatprep.subr.bf16.mxu0 0
    %65 = vmatpush1.bf16.msra.mxu0 0
    %66 = vmatprep.subr.bf16.mxu0 0
    %67 = vmatpush1.bf16.msra.mxu0 0
    %68 = vmatprep.subr.bf16.mxu0 0
    %69 = vmatpush1.bf16.msra.mxu0 0
    %70 = vmatprep.subr.bf16.mxu0 0
    %71 = vmatpush1.bf16.msra.mxu0 0
    %72 = vmatprep.subr.bf16.mxu0 0
    %73 = vmatpush1.bf16.msra.mxu0 0
    %74 = vmatprep.subr.bf16.mxu0 0
    %75 = vmatpush1.bf16.msra.mxu0 0
    %76 = vmatprep.subr.bf16.mxu0 0
    %77 = vmatpush1.bf16.msra.mxu0 0
    %78 = vmatprep.subr.bf16.mxu0 0
    %79 = vmatpush1.bf16.msra.mxu0 0
    %80 = vmatprep.subr.bf16.mxu0 0
    %81 = vmatpush1.bf16.msra.mxu0 0
    %82 = vmatprep.mubr.bf16.mxu0 0
    %83 = vmatmul.mubr.bf16.gmra.mrb[0].mxu0 %v48
    %v84 = vpop.f32.mrb[0].mxu0
    %v85 = vadd.f32 %v27, %v84
    %v86 = vpop.f32.mrb[0].mxu0
    %v87 = vpop.f32.mrb[0].mxu0
    %v88 = vadd.f32 %v27, %v87
    %v89 = vpop.f32.mrb[0].mxu0
    %90 = vdwg.mxu0
    %vm91 = vcmask 408576
    %92 = vst.msk [vmem:[#allocation2] sm:$0xff] %vm91, %v85
    %93 = vst.msk [vmem:[#allocation2 + $0x8] sm:$0xff] %vm91, %v88
    // Predicated region
    $region14: #{decoder_transformer_forward.41} parent=1 // pred_check
      _
    $region15: #{decoder_transformer_forward.41} parent=1 // pred_check_branch
      %95 = sbr.rel (0) target = $region17
    $region16: #{decoder_transformer_forward.41} parent=1 // pred_region
      %s97 = ssub.s32 256, 256
      %98 = vsyncadd [#allocation3], %s97
      %s99 = sshll.u32 [#allocation2], 4
      %s100 = int_to_ptr.vmem [resolvable:$true] %s99
      %105 = dma.vmem_to_hbm [thread:$0]  %s100, 256, %s3, [#allocation3], 128, 128, 8
    $region17: #{decoder_transformer_forward.41} parent=1 // pred_fallthru
      _
    // Predicated region
    $region18: #{decoder_transformer_forward.41} parent=1 // pred_check
      _
    $region19: #{decoder_transformer_forward.41} parent=1 // pred_check_branch
      %107 = sbr.rel (0) target = $region21
    $region20: #{decoder_transformer_forward.41} parent=1 // pred_region
      %108 = dma.done [#allocation3], 256
    $region21: #{decoder_transformer_forward.41} parent=1 // pred_fallthru
      _
    %109 = vsyncpa [#allocation3], 1

</llo_original>
